<compile_context>
chip_gen: v6e
topology: v6e:2x2x1
jax: 0.10.0
libtpu: 0.0.40
codegen_flags: <defaults>
</compile_context>

<pallas_src>
import math

import jax
import jax.numpy as jnp
from jax import lax
from jax.experimental import pallas as pl
from jax.experimental.pallas import tpu as pltpu


_VMEM_FLOOR_BYTES = 32 * 1024 * 1024   # never below the scoped default
_VMEM_CEIL_BYTES = 48 * 1024 * 1024    # safe on v7x (64 MiB physical VMEM / TC)


def _round_up(a, m):
    return (a + m - 1) // m * m


# ---------------------------------------------------------------------------
# Fused implicit-GEMM 3D-conv kernel.
#
# Per grid step (n, do, kd) the kernel sees one padded input depth plane
# (all H/W stride phases) in VMEM and accumulates the k*k in-plane taps into a
# resident f32 VMEM accumulator.  Bias and (optionally) the residual skip are
# fused into the accumulator init; the output plane is written once, on the
# last tap (kd == k-1).
# ---------------------------------------------------------------------------
def _make_conv3d_kernel(k, s, Ho, Wo, Cout, has_residual):
    HWo = Ho * Wo

    def kernel(*refs):
        if has_residual:
            x_ref, w_ref, b_ref, r_ref, o_ref, acc_ref = refs
        else:
            x_ref, w_ref, b_ref, o_ref, acc_ref = refs

        kd = pl.program_id(2)

        @pl.when(kd == 0)
        def _init():
            init = jnp.broadcast_to(b_ref[...].astype(jnp.float32), (HWo, Cout))
            if has_residual:
                init = init + r_ref[0].astype(jnp.float32)
            acc_ref[...] = init

        acc = acc_ref[...]
        # k*k in-plane taps, statically unrolled.  Every slice below is a
        # static, unit-stride window (the conv stride is handled by the
        # wrapper-side phase split and the grid index map).
        for kh in range(k):
            for kw in range(k):
                ph, hh = kh % s, kh // s
                pw, ww = kw % s, kw // s
                patch = x_ref[0, ph * s + pw, hh:hh + Ho, ww:ww + Wo, :]
                cin = patch.shape[-1]
                acc = acc + jnp.dot(patch.reshape(HWo, cin),
                                    w_ref[0, kh, kw],
                                    preferred_element_type=jnp.float32)
        acc_ref[...] = acc

        @pl.when(kd == k - 1)
        def _store():
            o_ref[0] = acc_ref[...].astype(o_ref.dtype)

    return kernel


# ---------------------------------------------------------------------------
# Wrapper-side prep: one cheap pass over the activation (no im2col).
# ---------------------------------------------------------------------------
def _pad_and_phase_split(x, k, s, Ho, Wo, compute_dtype):
    """Zero-pad spatially and split H/W into stride phases so every in-kernel
    tap slice is a static, unit-stride window.

    Returns (xph, Dp, Hq, Wq) with xph shaped (N*Dp, s*s, Hq, Wq, Cin)."""
    p = k // 2
    N, D, H, W, Cin = x.shape
    xc = x.astype(compute_dtype)
    xp = jnp.pad(xc, ((0, 0), (p, p), (p, p), (p, p), (0, 0)))
    Dp = D + 2 * p
    Hq = (k - 1) // s + Ho
    Wq = (k - 1) // s + Wo
    if s == 1:
        # Single phase: Hq == H + 2p, Wq == W + 2p, so this is a free reshape.
        xph = xp.reshape(N * Dp, 1, Hq, Wq, Cin)
    else:
        phases = []
        for ph in range(s):
            for pw in range(s):
                sl = xp[:, :, ph::s, pw::s, :]
                pad_h = max(Hq - sl.shape[2], 0)
                pad_w = max(Wq - sl.shape[3], 0)
                if pad_h or pad_w:
                    sl = jnp.pad(sl, ((0, 0), (0, 0), (0, pad_h),
                                      (0, pad_w), (0, 0)))
                phases.append(sl[:, :, :Hq, :Wq, :])
        xph = jnp.stack(phases, axis=2).reshape(N * Dp, s * s, Hq, Wq, Cin)
    return xph, Dp, Hq, Wq


def conv3d_pallas(x, w, b, *, stride=1, residual=None,
                  compute_dtype=jnp.bfloat16, out_dtype=jnp.bfloat16):
    """3D conv (padding=k//2) with fused bias and optional fused residual add.

    x: (N, D, H, W, Cin).  w: (Cout, Cin, k, k, k) PyTorch layout.  b: (Cout,).
    residual: optional (N, Do, Ho, Wo, Cout) added to the conv output.
    Operands run as `compute_dtype` (bf16) on the MXU with f32 accumulation;
    the result is written as `out_dtype`.  Returns (N, Do, Ho, Wo, Cout).
    """
    Cout, Cin, k, _, _ = w.shape
    s = stride
    p = k // 2
    N, D, H, W, Cin_x = x.shape
    assert Cin_x == Cin, (Cin_x, Cin)
    Do = (D + 2 * p - k) // s + 1
    Ho = (H + 2 * p - k) // s + 1
    Wo = (W + 2 * p - k) // s + 1
    HWo = Ho * Wo

    xph, Dp, Hq, Wq = _pad_and_phase_split(x, k, s, Ho, Wo, compute_dtype)
    # (Cout, Cin, kD, kH, kW) -> (kD, kH, kW, Cin, Cout)
    wt = jnp.transpose(w, (2, 3, 4, 1, 0)).astype(compute_dtype)
    b2 = b.reshape(1, Cout).astype(jnp.float32)

    has_res = residual is not None
    grid = (N, Do, k)

    x_spec = pl.BlockSpec(
        (1, s * s, Hq, Wq, Cin),
        lambda n, do, kd: (n * Dp + do * s + kd, 0, 0, 0, 0))
    w_spec = pl.BlockSpec((1, k, k, Cin, Cout),
                          lambda n, do, kd: (kd, 0, 0, 0, 0))
    b_spec = pl.BlockSpec((1, Cout), lambda n, do, kd: (0, 0))
    o_spec = pl.BlockSpec((1, HWo, Cout),
                          lambda n, do, kd: (n * Do + do, 0, 0))

    in_specs = [x_spec, w_spec, b_spec]
    operands = [xph, wt, b2]
    if has_res:
        assert residual.shape == (N, Do, Ho, Wo, Cout), residual.shape
        in_specs.append(pl.BlockSpec((1, HWo, Cout),
                                     lambda n, do, kd: (n * Do + do, 0, 0)))
        operands.append(residual.reshape(N * Do, HWo, Cout))

    # VMEM budget: double-buffered input/weight/output(/residual) blocks plus
    # the f32 accumulator, lane-padded, x4 headroom, clamped for all TPU gens.
    def _tile_bytes(shape, itemsize):
        *lead, sub, lane = shape
        return (math.prod(lead) * _round_up(sub, 8)
                * _round_up(lane, 128) * itemsize)

    itm_c = jnp.dtype(compute_dtype).itemsize
    itm_o = jnp.dtype(out_dtype).itemsize
    est = (2 * _tile_bytes((s * s, Hq, Wq, Cin), itm_c)
           + 2 * _tile_bytes((k, k, Cin, Cout), itm_c)
           + _tile_bytes((1, Cout), 4)
           + 2 * _tile_bytes((HWo, Cout), itm_o)
           + _tile_bytes((HWo, Cout), 4))
    if has_res:
        est += 2 * _tile_bytes((HWo, Cout), jnp.dtype(residual.dtype).itemsize)
    vmem_limit = int(min(max(4 * est, _VMEM_FLOOR_BYTES), _VMEM_CEIL_BYTES))

    flops = 2 * N * Do * HWo * (k ** 3) * Cin * Cout
    bytes_accessed = (N * Do * k * (s * s * Hq * Wq * Cin) * itm_c   # input planes
                      + N * Do * HWo * Cout * itm_o                  # output
                      + int(wt.size) * itm_c + int(b2.size) * 4)
    if has_res:
        bytes_accessed += N * Do * HWo * Cout * jnp.dtype(residual.dtype).itemsize

    out = pl.pallas_call(
        _make_conv3d_kernel(k, s, Ho, Wo, Cout, has_res),
        out_shape=jax.ShapeDtypeStruct((N * Do, HWo, Cout), out_dtype),
        grid=grid,
        in_specs=in_specs,
        out_specs=o_spec,
        scratch_shapes=[pltpu.VMEM((HWo, Cout), jnp.float32)],
        compiler_params=pltpu.CompilerParams(
            dimension_semantics=("parallel", "parallel", "arbitrary"),
            vmem_limit_bytes=vmem_limit),
        cost_estimate=pl.CostEstimate(flops=flops, transcendentals=0,
                                      bytes_accessed=bytes_accessed),
    )(*operands)

    return out.reshape(N, Do, Ho, Wo, Cout)


# ---------------------------------------------------------------------------
# UNetDownBlk: params + forward
# ---------------------------------------------------------------------------
def init_unet_down_blk_params(key, in_chs, out_chs, kernel_size, width):
    k = kernel_size
    keys = jax.random.split(key, 2 * width)
    params = {
        "first": {
            "w": jax.random.normal(keys[0], (out_chs, in_chs, k, k, k),
                                   jnp.float32) / jnp.sqrt(float(in_chs * k ** 3)),
            "b": 0.01 * jax.random.normal(keys[1], (out_chs,), jnp.float32),
        },
        "blks": [],
    }
    for i in range(width - 1):
        params["blks"].append({
            "w": jax.random.normal(keys[2 + 2 * i], (out_chs, out_chs, k, k, k),
                                   jnp.float32) / jnp.sqrt(float(out_chs * k ** 3)),
            "b": 0.01 * jax.random.normal(keys[3 + 2 * i], (out_chs,), jnp.float32),
        })
    return params


@jax.jit
def unet_down_blk_forward(params, x_ncdhw):
    # NoOp activation / norm (module defaults) -> identities.
    x = jnp.transpose(x_ncdhw, (0, 2, 3, 4, 1))              # NCDHW -> NDHWC
    y = conv3d_pallas(x, params["first"]["w"], params["first"]["b"], stride=2)
    for blk in params["blks"]:
        # ResConvBlk3d: conv(y) + y, the skip add is fused into the kernel.
        y = conv3d_pallas(y, blk["w"], blk["b"], stride=1, residual=y)
    return jnp.transpose(y, (0, 4, 1, 2, 3)).astype(x_ncdhw.dtype)  # -> NCDHW


# ---------------------------------------------------------------------------
# Pure-JAX reference (lax.conv) with matching bf16 operand/activation rounding,
# so the comparison isolates the conv math rather than the dtype policy.
# ---------------------------------------------------------------------------
def _ref_forward(params, x):
    q = lambda a: a.astype(jnp.bfloat16).astype(jnp.float32)

    def conv(xx, w, b, stride):
        p = w.shape[2] // 2
        y = lax.conv_general_dilated(
            q(xx), q(w), window_strides=(stride,) * 3, padding=[(p, p)] * 3,
            dimension_numbers=("NCDHW", "OIDHW", "NCDHW"),
            precision=lax.Precision.HIGHEST)
        return y + b.reshape(1, -1, 1, 1, 1)

    y = q(conv(x, params["first"]["w"], params["first"]["b"], 2))
    for blk in params["blks"]:
        y = q(conv(y, blk["w"], blk["b"], 1) + y)
    return y


if __name__ == "__main__":
    key = jax.random.PRNGKey(0)
    kx, kp = jax.random.split(key)

    in_chs, out_chs, kernel_size, width = 4, 8, 3, 2
    # NCDHW cost volume: (batch, channels, depth/disparity, H, W)
    x = jax.random.normal(kx, (2, in_chs, 8, 16, 16), jnp.float32)
    params = init_unet_down_blk_params(kp, in_chs, out_chs, kernel_size, width)

    y = unet_down_blk_forward(params, x)
    y = jax.block_until_ready(y)

    assert y.shape == (2, out_chs, 4, 8, 8), y.shape
    y_ref = _ref_forward(params, x)
    err = float(jnp.max(jnp.abs(y - y_ref)))
    # bf16 activations/operands (f32 accumulation) -> allow ~1 bf16 ulp drift.
    assert jnp.allclose(y, y_ref, atol=3e-2, rtol=3e-2), f"max abs err = {err}"

    print("KERNEL_OK")
</pallas_src>

<mosaic_0001>
module attributes {stable_mosaic.version = 11 : i64} {
  func.func @kernel(%arg0: i32, %arg1: i32, %arg2: i32, %arg3: memref<1x4x9x9x4xbf16, #tpu.memory_space<vmem>>, %arg4: memref<1x3x3x4x8xbf16, #tpu.memory_space<vmem>>, %arg5: memref<1x8xf32, #tpu.memory_space<vmem>>, %arg6: memref<1x64x8xbf16, #tpu.memory_space<vmem>>, %arg7: memref<64x8xf32, #tpu.memory_space<vmem>>) attributes {dimension_semantics = [#tpu.dimension_semantics<parallel>, #tpu.dimension_semantics<parallel>, #tpu.dimension_semantics<arbitrary>], iteration_bounds = array<i64: 2, 4, 3>, scalar_prefetch = 0 : i64, scratch_operands = 1 : i64, tpu.core_type = #tpu.core_type<tc>, window_params = [{transform_indices = @transform_0, window_bounds = array<i64: 1, 4, 9, 9, 4>}, {transform_indices = @transform_1, window_bounds = array<i64: 1, 3, 3, 4, 8>}, {pipeline_mode = #tpu.pipeline_mode<synchronous>, transform_indices = @transform_2, window_bounds = array<i64: 1, 8>}, {transform_indices = @transform_3, window_bounds = array<i64: 1, 64, 8>}]} {
    %c0_i32 = arith.constant 0 : i32
    %0 = arith.cmpi eq, %arg2, %c0_i32 : i32
    %1 = arith.extui %0 : i1 to i32
    %c0_i32_0 = arith.constant 0 : i32
    %2 = arith.cmpi ne, %1, %c0_i32_0 : i32
    scf.if %2 {
      %c0_100 = arith.constant 0 : index
      %c0_101 = arith.constant 0 : index
      %71 = vector.load %arg5[%c0_100, %c0_101] : memref<1x8xf32, #tpu.memory_space<vmem>>, vector<1x8xf32>
      %72 = vector.shape_cast %71 : vector<1x8xf32> to vector<1x8xf32>
      %73 = vector.broadcast %72 : vector<1x8xf32> to vector<64x8xf32>
      %c0_102 = arith.constant 0 : index
      %c0_103 = arith.constant 0 : index
      %74 = vector.load %arg7[%c0_102, %c0_103] : memref<64x8xf32, #tpu.memory_space<vmem>>, vector<64x8xf32>
      tpu.vector_store %arg7[%c0_102, %c0_103], %73 {strides = array<i32>} : memref<64x8xf32, #tpu.memory_space<vmem>>, vector<64x8xf32>,
    } else {
    }
    %c0 = arith.constant 0 : index
    %c0_1 = arith.constant 0 : index
    %3 = vector.load %arg7[%c0, %c0_1] : memref<64x8xf32, #tpu.memory_space<vmem>>, vector<64x8xf32>
    %c0_2 = arith.constant 0 : index
    %c0_3 = arith.constant 0 : index
    %c0_4 = arith.constant 0 : index
    %c0_5 = arith.constant 0 : index
    %c0_6 = arith.constant 0 : index
    %4 = vector.load %arg3[%c0_2, %c0_3, %c0_4, %c0_5, %c0_6] : memref<1x4x9x9x4xbf16, #tpu.memory_space<vmem>>, vector<1x1x8x8x4xbf16>
    %5 = vector.shape_cast %4 : vector<1x1x8x8x4xbf16> to vector<8x8x4xbf16>
    %6 = vector.shape_cast %5 : vector<8x8x4xbf16> to vector<64x4xbf16>
    %c0_7 = arith.constant 0 : index
    %c0_8 = arith.constant 0 : index
    %c0_9 = arith.constant 0 : index
    %c0_10 = arith.constant 0 : index
    %c0_11 = arith.constant 0 : index
    %7 = vector.load %arg4[%c0_7, %c0_8, %c0_9, %c0_10, %c0_11] : memref<1x3x3x4x8xbf16, #tpu.memory_space<vmem>>, vector<1x1x1x4x8xbf16>
    %8 = vector.shape_cast %7 : vector<1x1x1x4x8xbf16> to vector<4x8xbf16>
    %cst = arith.constant dense<0.000000e+00> : vector<64x8xf32>
    %9 = tpu.matmul %6, %8, %cst {dimension_numbers = #tpu.dot_dimension_numbers<[1], [0], [0], [1], [0, 0, 1, 1], [], []>} : vector<64x4xbf16>, vector<4x8xbf16>, vector<64x8xf32> -> vector<64x8xf32>
    %10 = arith.addf %3, %9 : vector<64x8xf32>
    %c0_12 = arith.constant 0 : index
    %c1 = arith.constant 1 : index
    %c0_13 = arith.constant 0 : index
    %c0_14 = arith.constant 0 : index
    %c0_15 = arith.constant 0 : index
    %11 = vector.load %arg3[%c0_12, %c1, %c0_13, %c0_14, %c0_15] : memref<1x4x9x9x4xbf16, #tpu.memory_space<vmem>>, vector<1x1x8x8x4xbf16>
    %12 = vector.shape_cast %11 : vector<1x1x8x8x4xbf16> to vector<8x8x4xbf16>
    %13 = vector.shape_cast %12 : vector<8x8x4xbf16> to vector<64x4xbf16>
    %c0_16 = arith.constant 0 : index
    %c0_17 = arith.constant 0 : index
    %c1_18 = arith.constant 1 : index
    %c0_19 = arith.constant 0 : index
    %c0_20 = arith.constant 0 : index
    %14 = vector.load %arg4[%c0_16, %c0_17, %c1_18, %c0_19, %c0_20] : memref<1x3x3x4x8xbf16, #tpu.memory_space<vmem>>, vector<1x1x1x4x8xbf16>
    %15 = vector.shape_cast %14 : vector<1x1x1x4x8xbf16> to vector<4x8xbf16>
    %cst_21 = arith.constant dense<0.000000e+00> : vector<64x8xf32>
    %16 = tpu.matmul %13, %15, %cst_21 {dimension_numbers = #tpu.dot_dimension_numbers<[1], [0], [0], [1], [0, 0, 1, 1], [], []>} : vector<64x4xbf16>, vector<4x8xbf16>, vector<64x8xf32> -> vector<64x8xf32>
    %17 = arith.addf %10, %16 : vector<64x8xf32>
    %c0_22 = arith.constant 0 : index
    %c0_23 = arith.constant 0 : index
    %c0_24 = arith.constant 0 : index
    %c1_25 = arith.constant 1 : index
    %c0_26 = arith.constant 0 : index
    %18 = vector.load %arg3[%c0_22, %c0_23, %c0_24, %c1_25, %c0_26] : memref<1x4x9x9x4xbf16, #tpu.memory_space<vmem>>, vector<1x1x8x8x4xbf16>
    %19 = vector.shape_cast %18 : vector<1x1x8x8x4xbf16> to vector<8x8x4xbf16>
    %20 = vector.shape_cast %19 : vector<8x8x4xbf16> to vector<64x4xbf16>
    %c0_27 = arith.constant 0 : index
    %c0_28 = arith.constant 0 : index
    %c2 = arith.constant 2 : index
    %c0_29 = arith.constant 0 : index
    %c0_30 = arith.constant 0 : index
    %21 = vector.load %arg4[%c0_27, %c0_28, %c2, %c0_29, %c0_30] : memref<1x3x3x4x8xbf16, #tpu.memory_space<vmem>>, vector<1x1x1x4x8xbf16>
    %22 = vector.shape_cast %21 : vector<1x1x1x4x8xbf16> to vector<4x8xbf16>
    %cst_31 = arith.constant dense<0.000000e+00> : vector<64x8xf32>
    %23 = tpu.matmul %20, %22, %cst_31 {dimension_numbers = #tpu.dot_dimension_numbers<[1], [0], [0], [1], [0, 0, 1, 1], [], []>} : vector<64x4xbf16>, vector<4x8xbf16>, vector<64x8xf32> -> vector<64x8xf32>
    %24 = arith.addf %17, %23 : vector<64x8xf32>
    %c0_32 = arith.constant 0 : index
    %c2_33 = arith.constant 2 : index
    %c0_34 = arith.constant 0 : index
    %c0_35 = arith.constant 0 : index
    %c0_36 = arith.constant 0 : index
    %25 = vector.load %arg3[%c0_32, %c2_33, %c0_34, %c0_35, %c0_36] : memref<1x4x9x9x4xbf16, #tpu.memory_space<vmem>>, vector<1x1x8x8x4xbf16>
    %26 = vector.shape_cast %25 : vector<1x1x8x8x4xbf16> to vector<8x8x4xbf16>
    %27 = vector.shape_cast %26 : vector<8x8x4xbf16> to vector<64x4xbf16>
    %c0_37 = arith.constant 0 : index
    %c1_38 = arith.constant 1 : index
    %c0_39 = arith.constant 0 : index
    %c0_40 = arith.constant 0 : index
    %c0_41 = arith.constant 0 : index
    %28 = vector.load %arg4[%c0_37, %c1_38, %c0_39, %c0_40, %c0_41] : memref<1x3x3x4x8xbf16, #tpu.memory_space<vmem>>, vector<1x1x1x4x8xbf16>
    %29 = vector.shape_cast %28 : vector<1x1x1x4x8xbf16> to vector<4x8xbf16>
    %cst_42 = arith.constant dense<0.000000e+00> : vector<64x8xf32>
    %30 = tpu.matmul %27, %29, %cst_42 {dimension_numbers = #tpu.dot_dimension_numbers<[1], [0], [0], [1], [0, 0, 1, 1], [], []>} : vector<64x4xbf16>, vector<4x8xbf16>, vector<64x8xf32> -> vector<64x8xf32>
    %31 = arith.addf %24, %30 : vector<64x8xf32>
    %c0_43 = arith.constant 0 : index
    %c3 = arith.constant 3 : index
    %c0_44 = arith.constant 0 : index
    %c0_45 = arith.constant 0 : index
    %c0_46 = arith.constant 0 : index
    %32 = vector.load %arg3[%c0_43, %c3, %c0_44, %c0_45, %c0_46] : memref<1x4x9x9x4xbf16, #tpu.memory_space<vmem>>, vector<1x1x8x8x4xbf16>
    %33 = vector.shape_cast %32 : vector<1x1x8x8x4xbf16> to vector<8x8x4xbf16>
    %34 = vector.shape_cast %33 : vector<8x8x4xbf16> to vector<64x4xbf16>
    %c0_47 = arith.constant 0 : index
    %c1_48 = arith.constant 1 : index
    %c1_49 = arith.constant 1 : index
    %c0_50 = arith.constant 0 : index
    %c0_51 = arith.constant 0 : index
    %35 = vector.load %arg4[%c0_47, %c1_48, %c1_49, %c0_50, %c0_51] : memref<1x3x3x4x8xbf16, #tpu.memory_space<vmem>>, vector<1x1x1x4x8xbf16>
    %36 = vector.shape_cast %35 : vector<1x1x1x4x8xbf16> to vector<4x8xbf16>
    %cst_52 = arith.constant dense<0.000000e+00> : vector<64x8xf32>
    %37 = tpu.matmul %34, %36, %cst_52 {dimension_numbers = #tpu.dot_dimension_numbers<[1], [0], [0], [1], [0, 0, 1, 1], [], []>} : vector<64x4xbf16>, vector<4x8xbf16>, vector<64x8xf32> -> vector<64x8xf32>
    %38 = arith.addf %31, %37 : vector<64x8xf32>
    %c0_53 = arith.constant 0 : index
    %c2_54 = arith.constant 2 : index
    %c0_55 = arith.constant 0 : index
    %c1_56 = arith.constant 1 : index
    %c0_57 = arith.constant 0 : index
    %39 = vector.load %arg3[%c0_53, %c2_54, %c0_55, %c1_56, %c0_57] : memref<1x4x9x9x4xbf16, #tpu.memory_space<vmem>>, vector<1x1x8x8x4xbf16>
    %40 = vector.shape_cast %39 : vector<1x1x8x8x4xbf16> to vector<8x8x4xbf16>
    %41 = vector.shape_cast %40 : vector<8x8x4xbf16> to vector<64x4xbf16>
    %c0_58 = arith.constant 0 : index
    %c1_59 = arith.constant 1 : index
    %c2_60 = arith.constant 2 : index
    %c0_61 = arith.constant 0 : index
    %c0_62 = arith.constant 0 : index
    %42 = vector.load %arg4[%c0_58, %c1_59, %c2_60, %c0_61, %c0_62] : memref<1x3x3x4x8xbf16, #tpu.memory_space<vmem>>, vector<1x1x1x4x8xbf16>
    %43 = vector.shape_cast %42 : vector<1x1x1x4x8xbf16> to vector<4x8xbf16>
    %cst_63 = arith.constant dense<0.000000e+00> : vector<64x8xf32>
    %44 = tpu.matmul %41, %43, %cst_63 {dimension_numbers = #tpu.dot_dimension_numbers<[1], [0], [0], [1], [0, 0, 1, 1], [], []>} : vector<64x4xbf16>, vector<4x8xbf16>, vector<64x8xf32> -> vector<64x8xf32>
    %45 = arith.addf %38, %44 : vector<64x8xf32>
    %c0_64 = arith.constant 0 : index
    %c0_65 = arith.constant 0 : index
    %c1_66 = arith.constant 1 : index
    %c0_67 = arith.constant 0 : index
    %c0_68 = arith.constant 0 : index
    %46 = vector.load %arg3[%c0_64, %c0_65, %c1_66, %c0_67, %c0_68] : memref<1x4x9x9x4xbf16, #tpu.memory_space<vmem>>, vector<1x1x8x8x4xbf16>
    %47 = vector.shape_cast %46 : vector<1x1x8x8x4xbf16> to vector<8x8x4xbf16>
    %48 = vector.shape_cast %47 : vector<8x8x4xbf16> to vector<64x4xbf16>
    %c0_69 = arith.constant 0 : index
    %c2_70 = arith.constant 2 : index
    %c0_71 = arith.constant 0 : index
    %c0_72 = arith.constant 0 : index
    %c0_73 = arith.constant 0 : index
    %49 = vector.load %arg4[%c0_69, %c2_70, %c0_71, %c0_72, %c0_73] : memref<1x3x3x4x8xbf16, #tpu.memory_space<vmem>>, vector<1x1x1x4x8xbf16>
    %50 = vector.shape_cast %49 : vector<1x1x1x4x8xbf16> to vector<4x8xbf16>
    %cst_74 = arith.constant dense<0.000000e+00> : vector<64x8xf32>
    %51 = tpu.matmul %48, %50, %cst_74 {dimension_numbers = #tpu.dot_dimension_numbers<[1], [0], [0], [1], [0, 0, 1, 1], [], []>} : vector<64x4xbf16>, vector<4x8xbf16>, vector<64x8xf32> -> vector<64x8xf32>
    %52 = arith.addf %45, %51 : vector<64x8xf32>
    %c0_75 = arith.constant 0 : index
    %c1_76 = arith.constant 1 : index
    %c1_77 = arith.constant 1 : index
    %c0_78 = arith.constant 0 : index
    %c0_79 = arith.constant 0 : index
    %53 = vector.load %arg3[%c0_75, %c1_76, %c1_77, %c0_78, %c0_79] : memref<1x4x9x9x4xbf16, #tpu.memory_space<vmem>>, vector<1x1x8x8x4xbf16>
    %54 = vector.shape_cast %53 : vector<1x1x8x8x4xbf16> to vector<8x8x4xbf16>
    %55 = vector.shape_cast %54 : vector<8x8x4xbf16> to vector<64x4xbf16>
    %c0_80 = arith.constant 0 : index
    %c2_81 = arith.constant 2 : index
    %c1_82 = arith.constant 1 : index
    %c0_83 = arith.constant 0 : index
    %c0_84 = arith.constant 0 : index
    %56 = vector.load %arg4[%c0_80, %c2_81, %c1_82, %c0_83, %c0_84] : memref<1x3x3x4x8xbf16, #tpu.memory_space<vmem>>, vector<1x1x1x4x8xbf16>
    %57 = vector.shape_cast %56 : vector<1x1x1x4x8xbf16> to vector<4x8xbf16>
    %cst_85 = arith.constant dense<0.000000e+00> : vector<64x8xf32>
    %58 = tpu.matmul %55, %57, %cst_85 {dimension_numbers = #tpu.dot_dimension_numbers<[1], [0], [0], [1], [0, 0, 1, 1], [], []>} : vector<64x4xbf16>, vector<4x8xbf16>, vector<64x8xf32> -> vector<64x8xf32>
    %59 = arith.addf %52, %58 : vector<64x8xf32>
    %c0_86 = arith.constant 0 : index
    %c0_87 = arith.constant 0 : index
    %c1_88 = arith.constant 1 : index
    %c1_89 = arith.constant 1 : index
    %c0_90 = arith.constant 0 : index
    %60 = vector.load %arg3[%c0_86, %c0_87, %c1_88, %c1_89, %c0_90] : memref<1x4x9x9x4xbf16, #tpu.memory_space<vmem>>, vector<1x1x8x8x4xbf16>
    %61 = vector.shape_cast %60 : vector<1x1x8x8x4xbf16> to vector<8x8x4xbf16>
    %62 = vector.shape_cast %61 : vector<8x8x4xbf16> to vector<64x4xbf16>
    %c0_91 = arith.constant 0 : index
    %c2_92 = arith.constant 2 : index
    %c2_93 = arith.constant 2 : index
    %c0_94 = arith.constant 0 : index
    %c0_95 = arith.constant 0 : index
    %63 = vector.load %arg4[%c0_91, %c2_92, %c2_93, %c0_94, %c0_95] : memref<1x3x3x4x8xbf16, #tpu.memory_space<vmem>>, vector<1x1x1x4x8xbf16>
    %64 = vector.shape_cast %63 : vector<1x1x1x4x8xbf16> to vector<4x8xbf16>
    %cst_96 = arith.constant dense<0.000000e+00> : vector<64x8xf32>
    %65 = tpu.matmul %62, %64, %cst_96 {dimension_numbers = #tpu.dot_dimension_numbers<[1], [0], [0], [1], [0, 0, 1, 1], [], []>} : vector<64x4xbf16>, vector<4x8xbf16>, vector<64x8xf32> -> vector<64x8xf32>
    %66 = arith.addf %59, %65 : vector<64x8xf32>
    %c0_97 = arith.constant 0 : index
    %c0_98 = arith.constant 0 : index
    %67 = vector.load %arg7[%c0_97, %c0_98] : memref<64x8xf32, #tpu.memory_space<vmem>>, vector<64x8xf32>
    tpu.vector_store %arg7[%c0_97, %c0_98], %66 {strides = array<i32>} : memref<64x8xf32, #tpu.memory_space<vmem>>, vector<64x8xf32>,
    %c2_i32 = arith.constant 2 : i32
    %68 = arith.cmpi eq, %arg2, %c2_i32 : i32
    %69 = arith.extui %68 : i1 to i32
    %c0_i32_99 = arith.constant 0 : i32
    %70 = arith.cmpi ne, %69, %c0_i32_99 : i32
    scf.if %70 {
      %c0_100 = arith.constant 0 : index
      %c0_101 = arith.constant 0 : index
      %71 = vector.load %arg7[%c0_100, %c0_101] : memref<64x8xf32, #tpu.memory_space<vmem>>, vector<64x8xf32>
      %72 = arith.truncf %71 : vector<64x8xf32> to vector<64x8xbf16>
      %c0_102 = arith.constant 0 : index
      %c0_103 = arith.constant 0 : index
      %c0_104 = arith.constant 0 : index
      %73 = vector.load %arg6[%c0_102, %c0_103, %c0_104] : memref<1x64x8xbf16, #tpu.memory_space<vmem>>, vector<1x64x8xbf16>
      %74 = vector.shape_cast %73 : vector<1x64x8xbf16> to vector<64x8xbf16>
      %75 = vector.shape_cast %72 : vector<64x8xbf16> to vector<1x64x8xbf16>
      tpu.vector_store %arg6[%c0_102, %c0_103, %c0_104], %75 {strides = array<i32>} : memref<1x64x8xbf16, #tpu.memory_space<vmem>>, vector<1x64x8xbf16>,
    } else {
    }
    return
  }
  func.func @transform_0(%arg0: i32, %arg1: i32, %arg2: i32) -> (i32, i32, i32, i32, i32) {
    %c10_i32 = arith.constant 10 : i32
    %0 = arith.muli %arg0, %c10_i32 : i32
    %c2_i32 = arith.constant 2 : i32
    %1 = arith.muli %arg1, %c2_i32 : i32
    %2 = arith.addi %0, %1 : i32
    %3 = arith.addi %2, %arg2 : i32
    %c0_i32 = arith.constant 0 : i32
    %c0_i32_0 = arith.constant 0 : i32
    %c0_i32_1 = arith.constant 0 : i32
    %c0_i32_2 = arith.constant 0 : i32
    %c0_i32_3 = arith.constant 0 : i32
    return %3, %c0_i32, %c0_i32_0, %c0_i32_1, %c0_i32_2 : i32, i32, i32, i32, i32
  }
  func.func @transform_1(%arg0: i32, %arg1: i32, %arg2: i32) -> (i32, i32, i32, i32, i32) {
    %c0_i32 = arith.constant 0 : i32
    %c0_i32_0 = arith.constant 0 : i32
    %c0_i32_1 = arith.constant 0 : i32
    %c0_i32_2 = arith.constant 0 : i32
    %c0_i32_3 = arith.constant 0 : i32
    return %arg2, %c0_i32, %c0_i32_0, %c0_i32_1, %c0_i32_2 : i32, i32, i32, i32, i32
  }
  func.func @transform_2(%arg0: i32, %arg1: i32, %arg2: i32) -> (i32, i32) {
    %c0_i32 = arith.constant 0 : i32
    %c0_i32_0 = arith.constant 0 : i32
    %c0_i32_1 = arith.constant 0 : i32
    return %c0_i32, %c0_i32_0 : i32, i32
  }
  func.func @transform_3(%arg0: i32, %arg1: i32, %arg2: i32) -> (i32, i32, i32) {
    %c4_i32 = arith.constant 4 : i32
    %0 = arith.muli %arg0, %c4_i32 : i32
    %1 = arith.addi %0, %arg1 : i32
    %c0_i32 = arith.constant 0 : i32
    %c0_i32_0 = arith.constant 0 : i32
    %c0_i32_1 = arith.constant 0 : i32
    return %1, %c0_i32, %c0_i32_0 : i32, i32, i32
  }
}

module attributes {stable_mosaic.version = 11 : i64} {
  func.func @kernel(%arg0: i32, %arg1: i32, %arg2: i32, %arg3: memref<1x1x10x10x8xbf16, #tpu.memory_space<vmem>>, %arg4: memref<1x3x3x8x8xbf16, #tpu.memory_space<vmem>>, %arg5: memref<1x8xf32, #tpu.memory_space<vmem>>, %arg6: memref<1x64x8xbf16, #tpu.memory_space<vmem>>, %arg7: memref<1x64x8xbf16, #tpu.memory_space<vmem>>, %arg8: memref<64x8xf32, #tpu.memory_space<vmem>>) attributes {dimension_semantics = [#tpu.dimension_semantics<parallel>, #tpu.dimension_semantics<parallel>, #tpu.dimension_semantics<arbitrary>], iteration_bounds = array<i64: 2, 4, 3>, scalar_prefetch = 0 : i64, scratch_operands = 1 : i64, tpu.core_type = #tpu.core_type<tc>, window_params = [{transform_indices = @transform_0, window_bounds = array<i64: 1, 1, 10, 10, 8>}, {transform_indices = @transform_1, window_bounds = array<i64: 1, 3, 3, 8, 8>}, {pipeline_mode = #tpu.pipeline_mode<synchronous>, transform_indices = @transform_2, window_bounds = array<i64: 1, 8>}, {transform_indices = @transform_3, window_bounds = array<i64: 1, 64, 8>}, {transform_indices = @transform_4, window_bounds = array<i64: 1, 64, 8>}]} {
    %c0_i32 = arith.constant 0 : i32
    %0 = arith.cmpi eq, %arg2, %c0_i32 : i32
    %1 = arith.extui %0 : i1 to i32
    %c0_i32_0 = arith.constant 0 : i32
    %2 = arith.cmpi ne, %1, %c0_i32_0 : i32
    scf.if %2 {
      %c0_101 = arith.constant 0 : index
      %c0_102 = arith.constant 0 : index
      %71 = vector.load %arg5[%c0_101, %c0_102] : memref<1x8xf32, #tpu.memory_space<vmem>>, vector<1x8xf32>
      %72 = vector.shape_cast %71 : vector<1x8xf32> to vector<1x8xf32>
      %73 = vector.broadcast %72 : vector<1x8xf32> to vector<64x8xf32>
      %c0_103 = arith.constant 0 : index
      %c0_104 = arith.constant 0 : index
      %c0_105 = arith.constant 0 : index
      %74 = vector.load %arg6[%c0_103, %c0_104, %c0_105] : memref<1x64x8xbf16, #tpu.memory_space<vmem>>, vector<1x64x8xbf16>
      %75 = vector.shape_cast %74 : vector<1x64x8xbf16> to vector<64x8xbf16>
      %76 = arith.extf %75 : vector<64x8xbf16> to vector<64x8xf32>
      %77 = arith.addf %73, %76 : vector<64x8xf32>
      %c0_106 = arith.constant 0 : index
      %c0_107 = arith.constant 0 : index
      %78 = vector.load %arg8[%c0_106, %c0_107] : memref<64x8xf32, #tpu.memory_space<vmem>>, vector<64x8xf32>
      tpu.vector_store %arg8[%c0_106, %c0_107], %77 {strides = array<i32>} : memref<64x8xf32, #tpu.memory_space<vmem>>, vector<64x8xf32>,
    } else {
    }
    %c0 = arith.constant 0 : index
    %c0_1 = arith.constant 0 : index
    %3 = vector.load %arg8[%c0, %c0_1] : memref<64x8xf32, #tpu.memory_space<vmem>>, vector<64x8xf32>
    %c0_2 = arith.constant 0 : index
    %c0_3 = arith.constant 0 : index
    %c0_4 = arith.constant 0 : index
    %c0_5 = arith.constant 0 : index
    %c0_6 = arith.constant 0 : index
    %4 = vector.load %arg3[%c0_2, %c0_3, %c0_4, %c0_5, %c0_6] : memref<1x1x10x10x8xbf16, #tpu.memory_space<vmem>>, vector<1x1x8x8x8xbf16>
    %5 = vector.shape_cast %4 : vector<1x1x8x8x8xbf16> to vector<8x8x8xbf16>
    %6 = vector.shape_cast %5 : vector<8x8x8xbf16> to vector<64x8xbf16>
    %c0_7 = arith.constant 0 : index
    %c0_8 = arith.constant 0 : index
    %c0_9 = arith.constant 0 : index
    %c0_10 = arith.constant 0 : index
    %c0_11 = arith.constant 0 : index
    %7 = vector.load %arg4[%c0_7, %c0_8, %c0_9, %c0_10, %c0_11] : memref<1x3x3x8x8xbf16, #tpu.memory_space<vmem>>, vector<1x1x1x8x8xbf16>
    %8 = vector.shape_cast %7 : vector<1x1x1x8x8xbf16> to vector<8x8xbf16>
    %cst = arith.constant dense<0.000000e+00> : vector<64x8xf32>
    %9 = tpu.matmul %6, %8, %cst {dimension_numbers = #tpu.dot_dimension_numbers<[1], [0], [0], [1], [0, 0, 1, 1], [], []>} : vector<64x8xbf16>, vector<8x8xbf16>, vector<64x8xf32> -> vector<64x8xf32>
    %10 = arith.addf %3, %9 : vector<64x8xf32>
    %c0_12 = arith.constant 0 : index
    %c0_13 = arith.constant 0 : index
    %c0_14 = arith.constant 0 : index
    %c1 = arith.constant 1 : index
    %c0_15 = arith.constant 0 : index
    %11 = vector.load %arg3[%c0_12, %c0_13, %c0_14, %c1, %c0_15] : memref<1x1x10x10x8xbf16, #tpu.memory_space<vmem>>, vector<1x1x8x8x8xbf16>
    %12 = vector.shape_cast %11 : vector<1x1x8x8x8xbf16> to vector<8x8x8xbf16>
    %13 = vector.shape_cast %12 : vector<8x8x8xbf16> to vector<64x8xbf16>
    %c0_16 = arith.constant 0 : index
    %c0_17 = arith.constant 0 : index
    %c1_18 = arith.constant 1 : index
    %c0_19 = arith.constant 0 : index
    %c0_20 = arith.constant 0 : index
    %14 = vector.load %arg4[%c0_16, %c0_17, %c1_18, %c0_19, %c0_20] : memref<1x3x3x8x8xbf16, #tpu.memory_space<vmem>>, vector<1x1x1x8x8xbf16>
    %15 = vector.shape_cast %14 : vector<1x1x1x8x8xbf16> to vector<8x8xbf16>
    %cst_21 = arith.constant dense<0.000000e+00> : vector<64x8xf32>
    %16 = tpu.matmul %13, %15, %cst_21 {dimension_numbers = #tpu.dot_dimension_numbers<[1], [0], [0], [1], [0, 0, 1, 1], [], []>} : vector<64x8xbf16>, vector<8x8xbf16>, vector<64x8xf32> -> vector<64x8xf32>
    %17 = arith.addf %10, %16 : vector<64x8xf32>
    %c0_22 = arith.constant 0 : index
    %c0_23 = arith.constant 0 : index
    %c0_24 = arith.constant 0 : index
    %c2 = arith.constant 2 : index
    %c0_25 = arith.constant 0 : index
    %18 = vector.load %arg3[%c0_22, %c0_23, %c0_24, %c2, %c0_25] : memref<1x1x10x10x8xbf16, #tpu.memory_space<vmem>>, vector<1x1x8x8x8xbf16>
    %19 = vector.shape_cast %18 : vector<1x1x8x8x8xbf16> to vector<8x8x8xbf16>
    %20 = vector.shape_cast %19 : vector<8x8x8xbf16> to vector<64x8xbf16>
    %c0_26 = arith.constant 0 : index
    %c0_27 = arith.constant 0 : index
    %c2_28 = arith.constant 2 : index
    %c0_29 = arith.constant 0 : index
    %c0_30 = arith.constant 0 : index
    %21 = vector.load %arg4[%c0_26, %c0_27, %c2_28, %c0_29, %c0_30] : memref<1x3x3x8x8xbf16, #tpu.memory_space<vmem>>, vector<1x1x1x8x8xbf16>
    %22 = vector.shape_cast %21 : vector<1x1x1x8x8xbf16> to vector<8x8xbf16>
    %cst_31 = arith.constant dense<0.000000e+00> : vector<64x8xf32>
    %23 = tpu.matmul %20, %22, %cst_31 {dimension_numbers = #tpu.dot_dimension_numbers<[1], [0], [0], [1], [0, 0, 1, 1], [], []>} : vector<64x8xbf16>, vector<8x8xbf16>, vector<64x8xf32> -> vector<64x8xf32>
    %24 = arith.addf %17, %23 : vector<64x8xf32>
    %c0_32 = arith.constant 0 : index
    %c0_33 = arith.constant 0 : index
    %c1_34 = arith.constant 1 : index
    %c0_35 = arith.constant 0 : index
    %c0_36 = arith.constant 0 : index
    %25 = vector.load %arg3[%c0_32, %c0_33, %c1_34, %c0_35, %c0_36] : memref<1x1x10x10x8xbf16, #tpu.memory_space<vmem>>, vector<1x1x8x8x8xbf16>
    %26 = vector.shape_cast %25 : vector<1x1x8x8x8xbf16> to vector<8x8x8xbf16>
    %27 = vector.shape_cast %26 : vector<8x8x8xbf16> to vector<64x8xbf16>
    %c0_37 = arith.constant 0 : index
    %c1_38 = arith.constant 1 : index
    %c0_39 = arith.constant 0 : index
    %c0_40 = arith.constant 0 : index
    %c0_41 = arith.constant 0 : index
    %28 = vector.load %arg4[%c0_37, %c1_38, %c0_39, %c0_40, %c0_41] : memref<1x3x3x8x8xbf16, #tpu.memory_space<vmem>>, vector<1x1x1x8x8xbf16>
    %29 = vector.shape_cast %28 : vector<1x1x1x8x8xbf16> to vector<8x8xbf16>
    %cst_42 = arith.constant dense<0.000000e+00> : vector<64x8xf32>
    %30 = tpu.matmul %27, %29, %cst_42 {dimension_numbers = #tpu.dot_dimension_numbers<[1], [0], [0], [1], [0, 0, 1, 1], [], []>} : vector<64x8xbf16>, vector<8x8xbf16>, vector<64x8xf32> -> vector<64x8xf32>
    %31 = arith.addf %24, %30 : vector<64x8xf32>
    %c0_43 = arith.constant 0 : index
    %c0_44 = arith.constant 0 : index
    %c1_45 = arith.constant 1 : index
    %c1_46 = arith.constant 1 : index
    %c0_47 = arith.constant 0 : index
    %32 = vector.load %arg3[%c0_43, %c0_44, %c1_45, %c1_46, %c0_47] : memref<1x1x10x10x8xbf16, #tpu.memory_space<vmem>>, vector<1x1x8x8x8xbf16>
    %33 = vector.shape_cast %32 : vector<1x1x8x8x8xbf16> to vector<8x8x8xbf16>
    %34 = vector.shape_cast %33 : vector<8x8x8xbf16> to vector<64x8xbf16>
    %c0_48 = arith.constant 0 : index
    %c1_49 = arith.constant 1 : index
    %c1_50 = arith.constant 1 : index
    %c0_51 = arith.constant 0 : index
    %c0_52 = arith.constant 0 : index
    %35 = vector.load %arg4[%c0_48, %c1_49, %c1_50, %c0_51, %c0_52] : memref<1x3x3x8x8xbf16, #tpu.memory_space<vmem>>, vector<1x1x1x8x8xbf16>
    %36 = vector.shape_cast %35 : vector<1x1x1x8x8xbf16> to vector<8x8xbf16>
    %cst_53 = arith.constant dense<0.000000e+00> : vector<64x8xf32>
    %37 = tpu.matmul %34, %36, %cst_53 {dimension_numbers = #tpu.dot_dimension_numbers<[1], [0], [0], [1], [0, 0, 1, 1], [], []>} : vector<64x8xbf16>, vector<8x8xbf16>, vector<64x8xf32> -> vector<64x8xf32>
    %38 = arith.addf %31, %37 : vector<64x8xf32>
    %c0_54 = arith.constant 0 : index
    %c0_55 = arith.constant 0 : index
    %c1_56 = arith.constant 1 : index
    %c2_57 = arith.constant 2 : index
    %c0_58 = arith.constant 0 : index
    %39 = vector.load %arg3[%c0_54, %c0_55, %c1_56, %c2_57, %c0_58] : memref<1x1x10x10x8xbf16, #tpu.memory_space<vmem>>, vector<1x1x8x8x8xbf16>
    %40 = vector.shape_cast %39 : vector<1x1x8x8x8xbf16> to vector<8x8x8xbf16>
    %41 = vector.shape_cast %40 : vector<8x8x8xbf16> to vector<64x8xbf16>
    %c0_59 = arith.constant 0 : index
    %c1_60 = arith.constant 1 : index
    %c2_61 = arith.constant 2 : index
    %c0_62 = arith.constant 0 : index
    %c0_63 = arith.constant 0 : index
    %42 = vector.load %arg4[%c0_59, %c1_60, %c2_61, %c0_62, %c0_63] : memref<1x3x3x8x8xbf16, #tpu.memory_space<vmem>>, vector<1x1x1x8x8xbf16>
    %43 = vector.shape_cast %42 : vector<1x1x1x8x8xbf16> to vector<8x8xbf16>
    %cst_64 = arith.constant dense<0.000000e+00> : vector<64x8xf32>
    %44 = tpu.matmul %41, %43, %cst_64 {dimension_numbers = #tpu.dot_dimension_numbers<[1], [0], [0], [1], [0, 0, 1, 1], [], []>} : vector<64x8xbf16>, vector<8x8xbf16>, vector<64x8xf32> -> vector<64x8xf32>
    %45 = arith.addf %38, %44 : vector<64x8xf32>
    %c0_65 = arith.constant 0 : index
    %c0_66 = arith.constant 0 : index
    %c2_67 = arith.constant 2 : index
    %c0_68 = arith.constant 0 : index
    %c0_69 = arith.constant 0 : index
    %46 = vector.load %arg3[%c0_65, %c0_66, %c2_67, %c0_68, %c0_69] : memref<1x1x10x10x8xbf16, #tpu.memory_space<vmem>>, vector<1x1x8x8x8xbf16>
    %47 = vector.shape_cast %46 : vector<1x1x8x8x8xbf16> to vector<8x8x8xbf16>
    %48 = vector.shape_cast %47 : vector<8x8x8xbf16> to vector<64x8xbf16>
    %c0_70 = arith.constant 0 : index
    %c2_71 = arith.constant 2 : index
    %c0_72 = arith.constant 0 : index
    %c0_73 = arith.constant 0 : index
    %c0_74 = arith.constant 0 : index
    %49 = vector.load %arg4[%c0_70, %c2_71, %c0_72, %c0_73, %c0_74] : memref<1x3x3x8x8xbf16, #tpu.memory_space<vmem>>, vector<1x1x1x8x8xbf16>
    %50 = vector.shape_cast %49 : vector<1x1x1x8x8xbf16> to vector<8x8xbf16>
    %cst_75 = arith.constant dense<0.000000e+00> : vector<64x8xf32>
    %51 = tpu.matmul %48, %50, %cst_75 {dimension_numbers = #tpu.dot_dimension_numbers<[1], [0], [0], [1], [0, 0, 1, 1], [], []>} : vector<64x8xbf16>, vector<8x8xbf16>, vector<64x8xf32> -> vector<64x8xf32>
    %52 = arith.addf %45, %51 : vector<64x8xf32>
    %c0_76 = arith.constant 0 : index
    %c0_77 = arith.constant 0 : index
    %c2_78 = arith.constant 2 : index
    %c1_79 = arith.constant 1 : index
    %c0_80 = arith.constant 0 : index
    %53 = vector.load %arg3[%c0_76, %c0_77, %c2_78, %c1_79, %c0_80] : memref<1x1x10x10x8xbf16, #tpu.memory_space<vmem>>, vector<1x1x8x8x8xbf16>
    %54 = vector.shape_cast %53 : vector<1x1x8x8x8xbf16> to vector<8x8x8xbf16>
    %55 = vector.shape_cast %54 : vector<8x8x8xbf16> to vector<64x8xbf16>
    %c0_81 = arith.constant 0 : index
    %c2_82 = arith.constant 2 : index
    %c1_83 = arith.constant 1 : index
    %c0_84 = arith.constant 0 : index
    %c0_85 = arith.constant 0 : index
    %56 = vector.load %arg4[%c0_81, %c2_82, %c1_83, %c0_84, %c0_85] : memref<1x3x3x8x8xbf16, #tpu.memory_space<vmem>>, vector<1x1x1x8x8xbf16>
    %57 = vector.shape_cast %56 : vector<1x1x1x8x8xbf16> to vector<8x8xbf16>
    %cst_86 = arith.constant dense<0.000000e+00> : vector<64x8xf32>
    %58 = tpu.matmul %55, %57, %cst_86 {dimension_numbers = #tpu.dot_dimension_numbers<[1], [0], [0], [1], [0, 0, 1, 1], [], []>} : vector<64x8xbf16>, vector<8x8xbf16>, vector<64x8xf32> -> vector<64x8xf32>
    %59 = arith.addf %52, %58 : vector<64x8xf32>
    %c0_87 = arith.constant 0 : index
    %c0_88 = arith.constant 0 : index
    %c2_89 = arith.constant 2 : index
    %c2_90 = arith.constant 2 : index
    %c0_91 = arith.constant 0 : index
    %60 = vector.load %arg3[%c0_87, %c0_88, %c2_89, %c2_90, %c0_91] : memref<1x1x10x10x8xbf16, #tpu.memory_space<vmem>>, vector<1x1x8x8x8xbf16>
    %61 = vector.shape_cast %60 : vector<1x1x8x8x8xbf16> to vector<8x8x8xbf16>
    %62 = vector.shape_cast %61 : vector<8x8x8xbf16> to vector<64x8xbf16>
    %c0_92 = arith.constant 0 : index
    %c2_93 = arith.constant 2 : index
    %c2_94 = arith.constant 2 : index
    %c0_95 = arith.constant 0 : index
    %c0_96 = arith.constant 0 : index
    %63 = vector.load %arg4[%c0_92, %c2_93, %c2_94, %c0_95, %c0_96] : memref<1x3x3x8x8xbf16, #tpu.memory_space<vmem>>, vector<1x1x1x8x8xbf16>
    %64 = vector.shape_cast %63 : vector<1x1x1x8x8xbf16> to vector<8x8xbf16>
    %cst_97 = arith.constant dense<0.000000e+00> : vector<64x8xf32>
    %65 = tpu.matmul %62, %64, %cst_97 {dimension_numbers = #tpu.dot_dimension_numbers<[1], [0], [0], [1], [0, 0, 1, 1], [], []>} : vector<64x8xbf16>, vector<8x8xbf16>, vector<64x8xf32> -> vector<64x8xf32>
    %66 = arith.addf %59, %65 : vector<64x8xf32>
    %c0_98 = arith.constant 0 : index
    %c0_99 = arith.constant 0 : index
    %67 = vector.load %arg8[%c0_98, %c0_99] : memref<64x8xf32, #tpu.memory_space<vmem>>, vector<64x8xf32>
    tpu.vector_store %arg8[%c0_98, %c0_99], %66 {strides = array<i32>} : memref<64x8xf32, #tpu.memory_space<vmem>>, vector<64x8xf32>,
    %c2_i32 = arith.constant 2 : i32
    %68 = arith.cmpi eq, %arg2, %c2_i32 : i32
    %69 = arith.extui %68 : i1 to i32
    %c0_i32_100 = arith.constant 0 : i32
    %70 = arith.cmpi ne, %69, %c0_i32_100 : i32
    scf.if %70 {
      %c0_101 = arith.constant 0 : index
      %c0_102 = arith.constant 0 : index
      %71 = vector.load %arg8[%c0_101, %c0_102] : memref<64x8xf32, #tpu.memory_space<vmem>>, vector<64x8xf32>
      %72 = arith.truncf %71 : vector<64x8xf32> to vector<64x8xbf16>
      %c0_103 = arith.constant 0 : index
      %c0_104 = arith.constant 0 : index
      %c0_105 = arith.constant 0 : index
      %73 = vector.load %arg7[%c0_103, %c0_104, %c0_105] : memref<1x64x8xbf16, #tpu.memory_space<vmem>>, vector<1x64x8xbf16>
      %74 = vector.shape_cast %73 : vector<1x64x8xbf16> to vector<64x8xbf16>
      %75 = vector.shape_cast %72 : vector<64x8xbf16> to vector<1x64x8xbf16>
      tpu.vector_store %arg7[%c0_103, %c0_104, %c0_105], %75 {strides = array<i32>} : memref<1x64x8xbf16, #tpu.memory_space<vmem>>, vector<1x64x8xbf16>,
    } else {
    }
    return
  }
  func.func @transform_0(%arg0: i32, %arg1: i32, %arg2: i32) -> (i32, i32, i32, i32, i32) {
    %c6_i32 = arith.constant 6 : i32
    %0 = arith.muli %arg0, %c6_i32 : i32
    %c1_i32 = arith.constant 1 : i32
    %1 = arith.muli %arg1, %c1_i32 : i32
    %2 = arith.addi %0, %1 : i32
    %3 = arith.addi %2, %arg2 : i32
    %c0_i32 = arith.constant 0 : i32
    %c0_i32_0 = arith.constant 0 : i32
    %c0_i32_1 = arith.constant 0 : i32
    %c0_i32_2 = arith.constant 0 : i32
    %c0_i32_3 = arith.constant 0 : i32
    return %3, %c0_i32, %c0_i32_0, %c0_i32_1, %c0_i32_2 : i32, i32, i32, i32, i32
  }
  func.func @transform_1(%arg0: i32, %arg1: i32, %arg2: i32) -> (i32, i32, i32, i32, i32) {
    %c0_i32 = arith.constant 0 : i32
    %c0_i32_0 = arith.constant 0 : i32
    %c0_i32_1 = arith.constant 0 : i32
    %c0_i32_2 = arith.constant 0 : i32
    %c0_i32_3 = arith.constant 0 : i32
    return %arg2, %c0_i32, %c0_i32_0, %c0_i32_1, %c0_i32_2 : i32, i32, i32, i32, i32
  }
  func.func @transform_2(%arg0: i32, %arg1: i32, %arg2: i32) -> (i32, i32) {
    %c0_i32 = arith.constant 0 : i32
    %c0_i32_0 = arith.constant 0 : i32
    %c0_i32_1 = arith.constant 0 : i32
    return %c0_i32, %c0_i32_0 : i32, i32
  }
  func.func @transform_3(%arg0: i32, %arg1: i32, %arg2: i32) -> (i32, i32, i32) {
    %c4_i32 = arith.constant 4 : i32
    %0 = arith.muli %arg0, %c4_i32 : i32
    %1 = arith.addi %0, %arg1 : i32
    %c0_i32 = arith.constant 0 : i32
    %c0_i32_0 = arith.constant 0 : i32
    %c0_i32_1 = arith.constant 0 : i32
    return %1, %c0_i32, %c0_i32_0 : i32, i32, i32
  }
  func.func @transform_4(%arg0: i32, %arg1: i32, %arg2: i32) -> (i32, i32, i32) {
    %c4_i32 = arith.constant 4 : i32
    %0 = arith.muli %arg0, %c4_i32 : i32
    %1 = arith.addi %0, %arg1 : i32
    %c0_i32 = arith.constant 0 : i32
    %c0_i32_0 = arith.constant 0 : i32
    %c0_i32_1 = arith.constant 0 : i32
    return %1, %c0_i32, %c0_i32_0 : i32, i32, i32
  }
}

</mosaic_0001>

<llo_original>
// kernel: unet_down_blk_forward.2
$region0: #{unet_down_blk_forward.2}
  #allocation0 [shape = 'u32[]', space=smem, size = 0x4, offset = 0x4, fixed_abs, tag = 'smem constant byte address 0x4 - core index']
  #allocation1 [shape = 'u32[144,128]{1,0:T(1,128)}', space=vmem, size = 0x12000, scoped, tag = 'internal scratch']
  #allocation2 [shape = 'f32[64,8]{1,0:T(8,128)}', space=vmem, size = 0x8000, scoped, tag = 'scratch operand']
  %s0 = inlined_call_operand.vmem [shape: bf16[20,4,9,9,4], index: 0, kind: input, shape index: {}]
  %s1 = inlined_call_operand.vmem [shape: bf16[3,3,3,4,8], index: 1, kind: input, shape index: {}]
  %s2 = inlined_call_operand.vmem [shape: f32[1,8], index: 2, kind: input, shape index: {}]
  %s3 = inlined_call_operand.vmem [shape: bf16[8,64,8], index: 3, kind: output, shape index: {}]
  %s4 = sld [smem:[#allocation0]]
  $region53: #{unet_down_blk_forward.2} parent=0
    _
  %s6 = ssub.s32 1, %s4
  %s7 = scalar_select 0, %s6, %s4
  loop: start=0, step=1, limit=26
  $region2: #{unet_down_blk_forward.2} parent=0 // loop_pre_header
    _
  $region3: #{unet_down_blk_forward.2} parent=0 // loop_header
    %s9 = sphi 0, %s13
    %p10 = scmp.ge.s32.totalorder %s9, 26
    %s16 = sphi 0, %s35
    %s17 = sphi 0, %s31
    %s18 = sphi 0, %s27
    %s19 = sphi 0, %s16
    %s20 = sphi 0, %s17
    %s21 = sphi 0, %s18
    %s22 = sphi 0, %s19
    %s23 = sphi 0, %s20
    %s24 = sphi 0, %s21
    %s46 = sphi 0, %s48
    %s49 = sphi 0, %s46
    %s50 = sphi 0, %s49
    %s66 = sphi 0, %s50
    %s72 = sphi 0, %s74
    %s75 = sphi 0, %s72
    %s76 = sphi 0, %s75
    %s92 = sphi 0, %s76
    %s96 = sphi 0, %s96
    %s98 = sphi 0, %s96
    %s99 = sphi 0, %s98
    %s113 = sphi 0, %s99
    %s123 = sphi 0, %s125
    %s126 = sphi 0, %s123
    %s127 = sphi 0, %s126
    %s143 = sphi 0, %s127
  $region4: #{unet_down_blk_forward.2} parent=0 // loop_header_branch
    %12 = sbr.rel (%p10) target = $region8
  $region5: #{unet_down_blk_forward.2} parent=0 // loop_body
    %s14 = ssub.s32 %s9, 1
    %s15 = ssub.s32 %s9, 2
    %s25 = sadd.s32 1, %s18
    %p26 = scmp.ge.s32.totalorder %s25, 3
    %s27 = scalar_select %p26, 0, %s25
    %s28 = sadd.s32 1, %s17
    %s29 = scalar_select %p26, %s28, %s17
    %p30 = scmp.ge.s32.totalorder %s29, 4
    %s31 = scalar_select %p30, 0, %s29
    %s32 = sadd.s32 1, %s16
    %s33 = scalar_select %p30, %s32, %s16
    %p34 = scmp.ge.s32.totalorder %s33, 2
    %s35 = scalar_select %p34, 0, %s33
    %s36 = smul.u32 %s16, 10
    %s37 = smul.u32 %s17, 2
    %s38 = sadd.s32 %s36, %s37
    %s39 = sadd.s32 %s38, %s18
    %s40 = smul.u32 %s35, 10
    %s41 = smul.u32 %s31, 2
    %s42 = sadd.s32 %s40, %s41
    %s43 = sadd.s32 %s42, %s27
    %s44 = ssub.s32 %s39, %s43
    %p45 = scmp.eq.s32.totalorder %s44, 0
    %s47 = sadd.s32 %s46, 1
    %s48 = scalar_select %p45, %s46, %s47
    %p51 = pneg %p45
    %p52 = scmp.eq.s32.totalorder %s9, 23
    %p53 = por %p51, %p52
    %p54 = scmp.ne.s32.totalorder %s46, %s49
    %p55 = scmp.eq.s32.totalorder %s9, 0
    %p56 = por %p54, %p55
    %p57 = scmp.ne.s32.totalorder %s46, %s49
    %p58 = scmp.eq.s32.totalorder %s14, 23
    %p59 = por %p57, %p58
    %p60 = scmp.ne.s32.totalorder %s49, %s50
    %p61 = scmp.eq.s32.totalorder %s14, 0
    %p62 = por %p60, %p61
    %p63 = scmp.ne.s32.totalorder %s49, %s50
    %p64 = scmp.eq.s32.totalorder %s15, 23
    %p65 = por %p63, %p64
    %p67 = scmp.ne.s32.totalorder %s50, %s66
    %p68 = scmp.eq.s32.totalorder %s15, 0
    %p69 = por %p67, %p68
    %s70 = ssub.s32 %s18, %s27
    %p71 = scmp.eq.s32.totalorder %s70, 0
    %s73 = sadd.s32 %s72, 1
    %s74 = scalar_select %p71, %s72, %s73
    %p77 = pneg %p71
    %p78 = scmp.eq.s32.totalorder %s9, 23
    %p79 = por %p77, %p78
    %p80 = scmp.ne.s32.totalorder %s72, %s75
    %p81 = scmp.eq.s32.totalorder %s9, 0
    %p82 = por %p80, %p81
    %p83 = scmp.ne.s32.totalorder %s72, %s75
    %p84 = scmp.eq.s32.totalorder %s14, 23
    %p85 = por %p83, %p84
    %p86 = scmp.ne.s32.totalorder %s75, %s76
    %p87 = scmp.eq.s32.totalorder %s14, 0
    %p88 = por %p86, %p87
    %p89 = scmp.ne.s32.totalorder %s75, %s76
    %p90 = scmp.eq.s32.totalorder %s15, 23
    %p91 = por %p89, %p90
    %p93 = scmp.ne.s32.totalorder %s76, %s92
    %p94 = scmp.eq.s32.totalorder %s15, 0
    %p95 = por %p93, %p94
    %s97 = sadd.s32 %s96, 1
    %p100 = scmp.eq.s32.totalorder %s9, 23
    %p101 = scmp.ne.s32.totalorder %s96, %s98
    %p102 = scmp.eq.s32.totalorder %s9, 0
    %p103 = por %p101, %p102
    %p104 = scmp.ne.s32.totalorder %s96, %s98
    %p105 = scmp.eq.s32.totalorder %s14, 23
    %p106 = por %p104, %p105
    %p107 = scmp.ne.s32.totalorder %s98, %s99
    %p108 = scmp.eq.s32.totalorder %s14, 0
    %p109 = por %p107, %p108
    %p110 = scmp.ne.s32.totalorder %s98, %s99
    %p111 = scmp.eq.s32.totalorder %s15, 23
    %p112 = por %p110, %p111
    %p114 = scmp.ne.s32.totalorder %s99, %s113
    %p115 = scmp.eq.s32.totalorder %s15, 0
    %p116 = por %p114, %p115
    %s117 = smul.u32 %s16, 4
    %s118 = sadd.s32 %s117, %s17
    %s119 = smul.u32 %s35, 4
    %s120 = sadd.s32 %s119, %s31
    %s121 = ssub.s32 %s118, %s120
    %p122 = scmp.eq.s32.totalorder %s121, 0
    %s124 = sadd.s32 %s123, 1
    %s125 = scalar_select %p122, %s123, %s124
    %p128 = pneg %p122
    %p129 = scmp.eq.s32.totalorder %s9, 23
    %p130 = por %p128, %p129
    %p131 = scmp.ne.s32.totalorder %s123, %s126
    %p132 = scmp.eq.s32.totalorder %s9, 0
    %p133 = por %p131, %p132
    %p134 = scmp.ne.s32.totalorder %s123, %s126
    %p135 = scmp.eq.s32.totalorder %s14, 23
    %p136 = por %p134, %p135
    %p137 = scmp.ne.s32.totalorder %s126, %s127
    %p138 = scmp.eq.s32.totalorder %s14, 0
    %p139 = por %p137, %p138
    %p140 = scmp.ne.s32.totalorder %s126, %s127
    %p141 = scmp.eq.s32.totalorder %s15, 23
    %p142 = por %p140, %p141
    %p144 = scmp.ne.s32.totalorder %s127, %s143
    %p145 = scmp.eq.s32.totalorder %s15, 0
    %p146 = por %p144, %p145
    %p147 = scmp.le.s32.totalorder 1, %s9
    %p148 = scmp.lt.s32.totalorder %s9, 25
    %p149 = pnand %p147, %p148
    %p150 = pneg %p149
    // Predicated region
    $region9: #{unet_down_blk_forward.2} parent=5 // pred_check
      _
    $region10: #{unet_down_blk_forward.2} parent=5 // pred_check_branch
      %152 = sbr.rel (%p149) target = $region12
    $region11: #{unet_down_blk_forward.2} parent=5 // pred_region
      %s153 = ssub.s32 %s9, 1
      // Predicated region
      $region13: #{unet_down_blk_forward.2} parent=11 // pred_check
        %p154 = pneg %p109
      $region14: #{unet_down_blk_forward.2} parent=11 // pred_check_branch
        %156 = sbr.rel (%p154) target = $region16
      $region15: #{unet_down_blk_forward.2} parent=11 // pred_region
        _
      $region16: #{unet_down_blk_forward.2} parent=11 // pred_fallthru
        _
    $region12: #{unet_down_blk_forward.2} parent=5 // pred_fallthru
      _
    %p157 = scmp.lt.s32.totalorder %s9, 24
    // Predicated region
    $region17: #{unet_down_blk_forward.2} parent=5 // pred_check
      %p158 = pneg %p157
    $region18: #{unet_down_blk_forward.2} parent=5 // pred_check_branch
      %160 = sbr.rel (%p158) target = $region20
    $region19: #{unet_down_blk_forward.2} parent=5 // pred_region
      // Predicated region
      $region21: #{unet_down_blk_forward.2} parent=19 // pred_check
        %p161 = pneg %p56
      $region22: #{unet_down_blk_forward.2} parent=19 // pred_check_branch
        %163 = sbr.rel (%p161) target = $region24
      $region23: #{unet_down_blk_forward.2} parent=19 // pred_region
        %s164 = smul.u32 %s16, 10
        %s165 = smul.u32 %s17, 2
        %s166 = sadd.s32 %s164, %s165
        %s167 = sadd.s32 %s166, %s18
        %p168 = scmp.lt.s32.totalorder %s167, 19
        %s169 = scalar_select %p168, %s167, 19
        %s170 = smul.addr %s169, 72
        %s171 = smul.addr %s170, 4
        %s172 = scalar_lea.vmem %s0, %s171
        %s173 = smul.u32 %s16, 10
        %s174 = smul.u32 %s17, 2
        %s175 = sadd.s32 %s173, %s174
        %s176 = sadd.s32 %s175, %s18
      $region24: #{unet_down_blk_forward.2} parent=19 // pred_fallthru
        _
      // Predicated region
      $region25: #{unet_down_blk_forward.2} parent=19 // pred_check
        %p177 = pneg %p82
      $region26: #{unet_down_blk_forward.2} parent=19 // pred_check_branch
        %179 = sbr.rel (%p177) target = $region28
      $region27: #{unet_down_blk_forward.2} parent=19 // pred_region
        %p180 = scmp.lt.s32.totalorder %s18, 2
        %s181 = scalar_select %p180, %s18, 2
        %s182 = smul.addr %s181, 9
        %s183 = smul.addr %s182, 2
        %s184 = scalar_lea.vmem %s1, %s183
      $region28: #{unet_down_blk_forward.2} parent=19 // pred_fallthru
        _
    $region20: #{unet_down_blk_forward.2} parent=5 // pred_fallthru
      _
    %p185 = scmp.le.s32.totalorder 1, %s9
    %p186 = scmp.lt.s32.totalorder %s9, 25
    %p187 = pnand %p185, %p186
    %p188 = pneg %p187
    // Predicated region
    $region29: #{unet_down_blk_forward.2} parent=5 // pred_check
      _
    $region30: #{unet_down_blk_forward.2} parent=5 // pred_check_branch
      %190 = sbr.rel (%p187) target = $region32
    $region31: #{unet_down_blk_forward.2} parent=5 // pred_region
      %s191 = ssub.s32 %s9, 1
      %s192 = smul.u32 %s19, 10
      %s193 = smul.u32 %s20, 2
      %s194 = sadd.s32 %s192, %s193
      %s195 = sadd.s32 %s194, %s21
      %p196 = scmp.lt.s32.totalorder %s195, 19
      %s197 = scalar_select %p196, %s195, 19
      %s198 = smul.addr %s197, 72
      %s199 = smul.addr %s198, 4
      %s200 = scalar_lea.vmem %s0, %s199
      %p201 = pneg %p62
      %p202 = pneg %p59
      %p203 = scmp.lt.s32.totalorder %s21, 2
      %s204 = scalar_select %p203, %s21, 2
      %s205 = smul.addr %s204, 9
      %s206 = smul.addr %s205, 2
      %s207 = scalar_lea.vmem %s1, %s206
      %p208 = pneg %p88
      %p209 = pneg %p85
      %p210 = pneg %p109
      %p211 = pneg %p106
      %p212 = pneg %p139
      %p213 = pneg %p136
      %s214 = smul.u32 %s19, 4
      %s215 = sadd.s32 %s214, %s20
      %p216 = scmp.lt.s32.totalorder %s215, 7
      %s217 = scalar_select %p216, %s215, 7
      %s218 = smul.addr %s217, 8
      %s219 = smul.addr %s218, 4
      %s220 = scalar_lea.vmem %s3, %s219
      %s221 = smul.u32 %s19, 10
      %s222 = smul.u32 %s20, 2
      %s223 = sadd.s32 %s221, %s222
      %s224 = sadd.s32 %s223, %s21
      %p225 = scmp.lt.s32.totalorder %s224, 19
      %s226 = scalar_select %p225, %s224, 19
      %s227 = smul.addr %s226, 72
      %s228 = smul.addr %s227, 4
      %s229 = scalar_lea.vmem %s0, %s228
      %s230 = smul.u32 %s19, 10
      %s231 = smul.u32 %s20, 2
      %s232 = sadd.s32 %s230, %s231
      %s233 = sadd.s32 %s232, %s21
      %p234 = scmp.lt.s32.totalorder %s21, 2
      %s235 = scalar_select %p234, %s21, 2
      %s236 = smul.addr %s235, 9
      %s237 = smul.addr %s236, 2
      %s238 = scalar_lea.vmem %s1, %s237
      %s239 = smul.u32 %s19, 4
      %s240 = sadd.s32 %s239, %s20
      %p241 = scmp.lt.s32.totalorder %s240, 7
      %s242 = scalar_select %p241, %s240, 7
      %s243 = smul.addr %s242, 8
      %s244 = smul.addr %s243, 4
      %s245 = scalar_lea.vmem %s3, %s244
      %s246 = smul.u32 %s19, 4
      %s247 = sadd.s32 %s246, %s20
      %p249 = scmp.eq.s32.totalorder %s21, 0
      // Predicated region
      $region33: #{unet_down_blk_forward.2} parent=31 // pred_check
        %p250 = pneg %p249
      $region34: #{unet_down_blk_forward.2} parent=31 // pred_check_branch
        %252 = sbr.rel (%p250) target = $region36
      $region35: #{unet_down_blk_forward.2} parent=31 // pred_region
        %v253 = vld [vmem:[%s2] sm:$0x1]
        %v255 = vlaneseq
        %v256 = vshrl.u32 %v255, 7
        %v257 = vsub.s32 0, %v256
        %v258 = vrot.slane %v253, %v257
        %vm260 = vcmask 64512
        %261 = vst.msk [vmem:[#allocation2] sm:$0xff] %vm260, %v258
        %262 = vst.msk [vmem:[#allocation2 + $0x8] sm:$0xff] %vm260, %v258
        %263 = vst.msk [vmem:[#allocation2 + $0x10] sm:$0xff] %vm260, %v258
        %264 = vst.msk [vmem:[#allocation2 + $0x18] sm:$0xff] %vm260, %v258
        %265 = vst.msk [vmem:[#allocation2 + $0x20] sm:$0xff] %vm260, %v258
        %266 = vst.msk [vmem:[#allocation2 + $0x28] sm:$0xff] %vm260, %v258
        %267 = vst.msk [vmem:[#allocation2 + $0x30] sm:$0xff] %vm260, %v258
        %268 = vst.msk [vmem:[#allocation2 + $0x38] sm:$0xff] %vm260, %v258
      $region36: #{unet_down_blk_forward.2} parent=31 // pred_fallthru
        _
      %v269 = vld [vmem:[#allocation2] sm:$0xff]
      %v270 = vld [vmem:[#allocation2 + $0x8] sm:$0xff]
      %v271 = vld [vmem:[#allocation2 + $0x10] sm:$0xff]
      %v272 = vld [vmem:[#allocation2 + $0x18] sm:$0xff]
      %v273 = vld [vmem:[#allocation2 + $0x20] sm:$0xff]
      %v274 = vld [vmem:[#allocation2 + $0x28] sm:$0xff]
      %v275 = vld [vmem:[#allocation2 + $0x30] sm:$0xff]
      %v276 = vld [vmem:[#allocation2 + $0x38] sm:$0xff]
      %v277 = vld [vmem:[%s229] sm:$0xf]
      %v278 = vld [vmem:[%s229 + $0x8] sm:$0xf]
      %v279 = vld [vmem:[%s229 + $0x10] sm:$0xf]
      %v280 = vld [vmem:[%s229 + $0x18] sm:$0xf]
      %v281 = vld [vmem:[%s229 + $0x20] sm:$0xf]
      %v282 = vld [vmem:[%s229 + $0x28] sm:$0xf]
      %v283 = vld [vmem:[%s229 + $0x30] sm:$0xf]
      %v284 = vld [vmem:[%s229 + $0x38] sm:$0xf]
      %v285 = vld [vmem:[%s238] sm:$0x3]
      %v294 = vunpack.c.l.b16 %v277
      %v295 = vunpack.c.l.b16 %v278
      %v296 = vunpack.c.l.b16 %v279
      %v297 = vunpack.c.l.b16 %v280
      %v298 = vunpack.c.l.b16 %v281
      %v299 = vunpack.c.l.b16 %v282
      %v300 = vunpack.c.l.b16 %v283
      %v301 = vunpack.c.l.b16 %v284
      %v302 = vpack.c.b16 %v295, %v294
      %v303 = vpack.c.b16 %v297, %v296
      %v304 = vpack.c.b16 %v299, %v298
      %v305 = vpack.c.b16 %v301, %v300
      %vm306 = vcmask 31744
      %v308 = vsel %vm306, %v302, 0
      %v311 = vsel %vm306, %v303, 0
      %v314 = vsel %vm306, %v304, 0
      %v317 = vsel %vm306, %v305, 0
      %vm319 = vcmask 1041408
      %v321 = vsel %vm319, %v285, 0
      %323 = vmatprep.subr.bf16.mxu0 0
      %324 = vmatpush1.bf16.msra.mxu0 0
      %325 = vmatprep.subr.bf16.mxu0 0
      %326 = vmatpush1.bf16.msra.mxu0 0
      %327 = vmatprep.subr.bf16.mxu0 0
      %328 = vmatpush1.bf16.msra.mxu0 0
      %329 = vmatprep.subr.bf16.mxu0 0
      %330 = vmatpush1.bf16.msra.mxu0 0
      %331 = vmatprep.subr.bf16.mxu0 0
      %332 = vmatpush1.bf16.msra.mxu0 0
      %333 = vmatprep.subr.bf16.mxu0 0
      %334 = vmatpush1.bf16.msra.mxu0 0
      %335 = vmatprep.subr.bf16.mxu0 0
      %336 = vmatpush1.bf16.msra.mxu0 0
      %337 = vmatprep.subr.bf16.mxu0 0
      %338 = vmatpush1.bf16.msra.mxu0 %v321
      %339 = vmatprep.subr.bf16.mxu0 0
      %340 = vmatpush2.bf16.msra.mxu0 0
      %341 = vmatprep.subr.bf16.mxu0 0
      %342 = vmatpush2.bf16.msra.mxu0 0
      %343 = vmatprep.subr.bf16.mxu0 0
      %344 = vmatpush2.bf16.msra.mxu0 0
      %345 = vmatprep.subr.bf16.mxu0 0
      %346 = vmatpush2.bf16.msra.mxu0 0
      %347 = vmatprep.subr.bf16.mxu0 0
      %348 = vmatpush2.bf16.msra.mxu0 0
      %349 = vmatprep.subr.bf16.mxu0 0
      %350 = vmatpush2.bf16.msra.mxu0 0
      %351 = vmatprep.subr.bf16.mxu0 0
      %352 = vmatpush2.bf16.msra.mxu0 0
      %353 = vmatprep.subr.bf16.mxu0 0
      %354 = vmatpush2.bf16.msra.mxu0 0
      %355 = vmatprep.mubr.bf16.mxu0 0
      %356 = vmatmul.mubr.bf16.gmra.mxu0 %v308
      %v357 = vpop.f32.mrf.mxu0
      %v358 = vadd.f32 0.0, %v357
      %v359 = vpop.f32.mrf.mxu0
      %v360 = vpop.f32.mrf.mxu0
      %v361 = vadd.f32 0.0, %v360
      %v362 = vpop.f32.mrf.mxu0
      %363 = vmatprep.mubr.bf16.mxu0 0
      %364 = vmatmul.mubr.bf16.gmra.mxu0 %v311
      %v365 = vpop.f32.mrf.mxu0
      %v366 = vadd.f32 0.0, %v365
      %v367 = vpop.f32.mrf.mxu0
      %v368 = vpop.f32.mrf.mxu0
      %v369 = vadd.f32 0.0, %v368
      %v370 = vpop.f32.mrf.mxu0
      %371 = vmatprep.mubr.bf16.mxu0 0
      %372 = vmatmul.mubr.bf16.gmra.mxu0 %v314
      %v373 = vpop.f32.mrf.mxu0
      %v374 = vadd.f32 0.0, %v373
      %v375 = vpop.f32.mrf.mxu0
      %v376 = vpop.f32.mrf.mxu0
      %v377 = vadd.f32 0.0, %v376
      %v378 = vpop.f32.mrf.mxu0
      %379 = vmatprep.mubr.bf16.mxu0 0
      %380 = vmatmul.mubr.bf16.gmra.mxu0 %v317
      %v381 = vpop.f32.mrf.mxu0
      %v382 = vadd.f32 0.0, %v381
      %v383 = vpop.f32.mrf.mxu0
      %v384 = vpop.f32.mrf.mxu0
      %v385 = vadd.f32 0.0, %v384
      %v386 = vpop.f32.mrf.mxu0
      %387 = vdwg.mxu0
      %v388 = vadd.f32 %v269, %v358
      %v389 = vadd.f32 %v270, %v361
      %v390 = vadd.f32 %v271, %v366
      %v391 = vadd.f32 %v272, %v369
      %v392 = vadd.f32 %v273, %v374
      %v393 = vadd.f32 %v274, %v377
      %v394 = vadd.f32 %v275, %v382
      %v395 = vadd.f32 %v276, %v385
      %s396 = scalar_lea.vmem %s229, 72
      %v397 = vld [vmem:[%s396] sm:$0xf]
      %v398 = vld [vmem:[%s396 + $0x8] sm:$0xf]
      %v399 = vld [vmem:[%s396 + $0x10] sm:$0xf]
      %v400 = vld [vmem:[%s396 + $0x18] sm:$0xf]
      %v401 = vld [vmem:[%s396 + $0x20] sm:$0xf]
      %v402 = vld [vmem:[%s396 + $0x28] sm:$0xf]
      %v403 = vld [vmem:[%s396 + $0x30] sm:$0xf]
      %v404 = vld [vmem:[%s396 + $0x38] sm:$0xf]
      %s405 = scalar_lea.vmem %s238, 2
      %v406 = vld [vmem:[%s405] sm:$0x3]
      %v415 = vunpack.c.l.b16 %v397
      %v416 = vunpack.c.l.b16 %v398
      %v417 = vunpack.c.l.b16 %v399
      %v418 = vunpack.c.l.b16 %v400
      %v419 = vunpack.c.l.b16 %v401
      %v420 = vunpack.c.l.b16 %v402
      %v421 = vunpack.c.l.b16 %v403
      %v422 = vunpack.c.l.b16 %v404
      %v423 = vpack.c.b16 %v416, %v415
      %v424 = vpack.c.b16 %v418, %v417
      %v425 = vpack.c.b16 %v420, %v419
      %v426 = vpack.c.b16 %v422, %v421
      %v428 = vsel %vm306, %v423, 0
      %v431 = vsel %vm306, %v424, 0
      %v434 = vsel %vm306, %v425, 0
      %v437 = vsel %vm306, %v426, 0
      %v440 = vsel %vm319, %v406, 0
      %442 = vmatprep.subr.bf16.mxu0 0
      %443 = vmatpush1.bf16.msra.mxu0 0
      %444 = vmatprep.subr.bf16.mxu0 0
      %445 = vmatpush1.bf16.msra.mxu0 0
      %446 = vmatprep.subr.bf16.mxu0 0
      %447 = vmatpush1.bf16.msra.mxu0 0
      %448 = vmatprep.subr.bf16.mxu0 0
      %449 = vmatpush1.bf16.msra.mxu0 0
      %450 = vmatprep.subr.bf16.mxu0 0
      %451 = vmatpush1.bf16.msra.mxu0 0
      %452 = vmatprep.subr.bf16.mxu0 0
      %453 = vmatpush1.bf16.msra.mxu0 0
      %454 = vmatprep.subr.bf16.mxu0 0
      %455 = vmatpush1.bf16.msra.mxu0 0
      %456 = vmatprep.subr.bf16.mxu0 0
      %457 = vmatpush1.bf16.msra.mxu0 %v440
      %458 = vmatprep.subr.bf16.mxu0 0
      %459 = vmatpush2.bf16.msra.mxu0 0
      %460 = vmatprep.subr.bf16.mxu0 0
      %461 = vmatpush2.bf16.msra.mxu0 0
      %462 = vmatprep.subr.bf16.mxu0 0
      %463 = vmatpush2.bf16.msra.mxu0 0
      %464 = vmatprep.subr.bf16.mxu0 0
      %465 = vmatpush2.bf16.msra.mxu0 0
      %466 = vmatprep.subr.bf16.mxu0 0
      %467 = vmatpush2.bf16.msra.mxu0 0
      %468 = vmatprep.subr.bf16.mxu0 0
      %469 = vmatpush2.bf16.msra.mxu0 0
      %470 = vmatprep.subr.bf16.mxu0 0
      %471 = vmatpush2.bf16.msra.mxu0 0
      %472 = vmatprep.subr.bf16.mxu0 0
      %473 = vmatpush2.bf16.msra.mxu0 0
      %474 = vmatprep.mubr.bf16.mxu0 0
      %475 = vmatmul.mubr.bf16.gmra.mxu0 %v428
      %v476 = vpop.f32.mrf.mxu0
      %v477 = vadd.f32 0.0, %v476
      %v478 = vpop.f32.mrf.mxu0
      %v479 = vpop.f32.mrf.mxu0
      %v480 = vadd.f32 0.0, %v479
      %v481 = vpop.f32.mrf.mxu0
      %482 = vmatprep.mubr.bf16.mxu0 0
      %483 = vmatmul.mubr.bf16.gmra.mxu0 %v431
      %v484 = vpop.f32.mrf.mxu0
      %v485 = vadd.f32 0.0, %v484
      %v486 = vpop.f32.mrf.mxu0
      %v487 = vpop.f32.mrf.mxu0
      %v488 = vadd.f32 0.0, %v487
      %v489 = vpop.f32.mrf.mxu0
      %490 = vmatprep.mubr.bf16.mxu0 0
      %491 = vmatmul.mubr.bf16.gmra.mxu0 %v434
      %v492 = vpop.f32.mrf.mxu0
      %v493 = vadd.f32 0.0, %v492
      %v494 = vpop.f32.mrf.mxu0
      %v495 = vpop.f32.mrf.mxu0
      %v496 = vadd.f32 0.0, %v495
      %v497 = vpop.f32.mrf.mxu0
      %498 = vmatprep.mubr.bf16.mxu0 0
      %499 = vmatmul.mubr.bf16.gmra.mxu0 %v437
      %v500 = vpop.f32.mrf.mxu0
      %v501 = vadd.f32 0.0, %v500
      %v502 = vpop.f32.mrf.mxu0
      %v503 = vpop.f32.mrf.mxu0
      %v504 = vadd.f32 0.0, %v503
      %v505 = vpop.f32.mrf.mxu0
      %506 = vdwg.mxu0
      %v507 = vadd.f32 %v388, %v477
      %v508 = vadd.f32 %v389, %v480
      %v509 = vadd.f32 %v390, %v485
      %v510 = vadd.f32 %v391, %v488
      %v511 = vadd.f32 %v392, %v493
      %v512 = vadd.f32 %v393, %v496
      %v513 = vadd.f32 %v394, %v501
      %v514 = vadd.f32 %v395, %v504
      %v515 = vld [vmem:[%s229] sm:$0xf]
      %v516 = vld [vmem:[%s229 + $0x4] sm:$0x1]
      %v517 = vld [vmem:[%s229 + $0x8] sm:$0xf]
      %v518 = vld [vmem:[%s229 + $0xc] sm:$0x1]
      %v519 = vld [vmem:[%s229 + $0x10] sm:$0xf]
      %v520 = vld [vmem:[%s229 + $0x14] sm:$0x1]
      %v521 = vld [vmem:[%s229 + $0x18] sm:$0xf]
      %v522 = vld [vmem:[%s229 + $0x1c] sm:$0x1]
      %v523 = vld [vmem:[%s229 + $0x20] sm:$0xf]
      %v524 = vld [vmem:[%s229 + $0x24] sm:$0x1]
      %v525 = vld [vmem:[%s229 + $0x28] sm:$0xf]
      %v526 = vld [vmem:[%s229 + $0x2c] sm:$0x1]
      %v527 = vld [vmem:[%s229 + $0x30] sm:$0xf]
      %v528 = vld [vmem:[%s229 + $0x34] sm:$0x1]
      %v529 = vld [vmem:[%s229 + $0x38] sm:$0xf]
      %v530 = vld [vmem:[%s229 + $0x3c] sm:$0x1]
      %vm531 = vsmask.f32 3328
      %vm532 = vsmask.f32 7440
      %vm533 = vmor %vm531, %vm532
      %v535 = vshrl.u32 %v515, 16
      %v537 = vrot.slane %v535, 4
      %v538 = vshll.u32 %v515, 16
      %v540 = vrot.slane %v538, 5
      %v541 = vor.u32 %v537, %v540
      %v542 = vrot.slane %v541, 4
      %v544 = vshll.u32 %v516, 16
      %v546 = vrot.slane %v544, 5
      %v547 = vsel %vm533, %v542, %v546
      %v549 = vshrl.u32 %v517, 16
      %v551 = vrot.slane %v549, 4
      %v552 = vshll.u32 %v517, 16
      %v554 = vrot.slane %v552, 5
      %v555 = vor.u32 %v551, %v554
      %v556 = vrot.slane %v555, 4
      %v558 = vshll.u32 %v518, 16
      %v560 = vrot.slane %v558, 5
      %v561 = vsel %vm533, %v556, %v560
      %v563 = vshrl.u32 %v519, 16
      %v565 = vrot.slane %v563, 4
      %v566 = vshll.u32 %v519, 16
      %v568 = vrot.slane %v566, 5
      %v569 = vor.u32 %v565, %v568
      %v570 = vrot.slane %v569, 4
      %v572 = vshll.u32 %v520, 16
      %v574 = vrot.slane %v572, 5
      %v575 = vsel %vm533, %v570, %v574
      %v577 = vshrl.u32 %v521, 16
      %v579 = vrot.slane %v577, 4
      %v580 = vshll.u32 %v521, 16
      %v582 = vrot.slane %v580, 5
      %v583 = vor.u32 %v579, %v582
      %v584 = vrot.slane %v583, 4
      %v586 = vshll.u32 %v522, 16
      %v588 = vrot.slane %v586, 5
      %v589 = vsel %vm533, %v584, %v588
      %v591 = vshrl.u32 %v523, 16
      %v593 = vrot.slane %v591, 4
      %v594 = vshll.u32 %v523, 16
      %v596 = vrot.slane %v594, 5
      %v597 = vor.u32 %v593, %v596
      %v598 = vrot.slane %v597, 4
      %v600 = vshll.u32 %v524, 16
      %v602 = vrot.slane %v600, 5
      %v603 = vsel %vm533, %v598, %v602
      %v605 = vshrl.u32 %v525, 16
      %v607 = vrot.slane %v605, 4
      %v608 = vshll.u32 %v525, 16
      %v610 = vrot.slane %v608, 5
      %v611 = vor.u32 %v607, %v610
      %v612 = vrot.slane %v611, 4
      %v614 = vshll.u32 %v526, 16
      %v616 = vrot.slane %v614, 5
      %v617 = vsel %vm533, %v612, %v616
      %v619 = vshrl.u32 %v527, 16
      %v621 = vrot.slane %v619, 4
      %v622 = vshll.u32 %v527, 16
      %v624 = vrot.slane %v622, 5
      %v625 = vor.u32 %v621, %v624
      %v626 = vrot.slane %v625, 4
      %v628 = vshll.u32 %v528, 16
      %v630 = vrot.slane %v628, 5
      %v631 = vsel %vm533, %v626, %v630
      %v633 = vshrl.u32 %v529, 16
      %v635 = vrot.slane %v633, 4
      %v636 = vshll.u32 %v529, 16
      %v638 = vrot.slane %v636, 5
      %v639 = vor.u32 %v635, %v638
      %v640 = vrot.slane %v639, 4
      %v642 = vshll.u32 %v530, 16
      %v644 = vrot.slane %v642, 5
      %v645 = vsel %vm533, %v640, %v644
      %s646 = scalar_lea.vmem %s238, 4
      %v647 = vld [vmem:[%s646] sm:$0x3]
      %v648 = vunpack.c.l.b16 %v547
      %v649 = vunpack.c.l.b16 %v561
      %v650 = vunpack.c.l.b16 %v575
      %v651 = vunpack.c.l.b16 %v589
      %v652 = vunpack.c.l.b16 %v603
      %v653 = vunpack.c.l.b16 %v617
      %v654 = vunpack.c.l.b16 %v631
      %v655 = vunpack.c.l.b16 %v645
      %v656 = vpack.c.b16 %v649, %v648
      %v657 = vpack.c.b16 %v651, %v650
      %v658 = vpack.c.b16 %v653, %v652
      %v659 = vpack.c.b16 %v655, %v654
      %v661 = vsel %vm306, %v656, 0
      %v664 = vsel %vm306, %v657, 0
      %v667 = vsel %vm306, %v658, 0
      %v670 = vsel %vm306, %v659, 0
      %v673 = vsel %vm319, %v647, 0
      %675 = vmatprep.subr.bf16.mxu0 0
      %676 = vmatpush1.bf16.msra.mxu0 0
      %677 = vmatprep.subr.bf16.mxu0 0
      %678 = vmatpush1.bf16.msra.mxu0 0
      %679 = vmatprep.subr.bf16.mxu0 0
      %680 = vmatpush1.bf16.msra.mxu0 0
      %681 = vmatprep.subr.bf16.mxu0 0
      %682 = vmatpush1.bf16.msra.mxu0 0
      %683 = vmatprep.subr.bf16.mxu0 0
      %684 = vmatpush1.bf16.msra.mxu0 0
      %685 = vmatprep.subr.bf16.mxu0 0
      %686 = vmatpush1.bf16.msra.mxu0 0
      %687 = vmatprep.subr.bf16.mxu0 0
      %688 = vmatpush1.bf16.msra.mxu0 0
      %689 = vmatprep.subr.bf16.mxu0 0
      %690 = vmatpush1.bf16.msra.mxu0 %v673
      %691 = vmatprep.subr.bf16.mxu0 0
      %692 = vmatpush2.bf16.msra.mxu0 0
      %693 = vmatprep.subr.bf16.mxu0 0
      %694 = vmatpush2.bf16.msra.mxu0 0
      %695 = vmatprep.subr.bf16.mxu0 0
      %696 = vmatpush2.bf16.msra.mxu0 0
      %697 = vmatprep.subr.bf16.mxu0 0
      %698 = vmatpush2.bf16.msra.mxu0 0
      %699 = vmatprep.subr.bf16.mxu0 0
      %700 = vmatpush2.bf16.msra.mxu0 0
      %701 = vmatprep.subr.bf16.mxu0 0
      %702 = vmatpush2.bf16.msra.mxu0 0
      %703 = vmatprep.subr.bf16.mxu0 0
      %704 = vmatpush2.bf16.msra.mxu0 0
      %705 = vmatprep.subr.bf16.mxu0 0
      %706 = vmatpush2.bf16.msra.mxu0 0
      %707 = vmatprep.mubr.bf16.mxu0 0
      %708 = vmatmul.mubr.bf16.gmra.mxu0 %v661
      %v709 = vpop.f32.mrf.mxu0
      %v710 = vadd.f32 0.0, %v709
      %v711 = vpop.f32.mrf.mxu0
      %v712 = vpop.f32.mrf.mxu0
      %v713 = vadd.f32 0.0, %v712
      %v714 = vpop.f32.mrf.mxu0
      %715 = vmatprep.mubr.bf16.mxu0 0
      %716 = vmatmul.mubr.bf16.gmra.mxu0 %v664
      %v717 = vpop.f32.mrf.mxu0
      %v718 = vadd.f32 0.0, %v717
      %v719 = vpop.f32.mrf.mxu0
      %v720 = vpop.f32.mrf.mxu0
      %v721 = vadd.f32 0.0, %v720
      %v722 = vpop.f32.mrf.mxu0
      %723 = vmatprep.mubr.bf16.mxu0 0
      %724 = vmatmul.mubr.bf16.gmra.mxu0 %v667
      %v725 = vpop.f32.mrf.mxu0
      %v726 = vadd.f32 0.0, %v725
      %v727 = vpop.f32.mrf.mxu0
      %v728 = vpop.f32.mrf.mxu0
      %v729 = vadd.f32 0.0, %v728
      %v730 = vpop.f32.mrf.mxu0
      %731 = vmatprep.mubr.bf16.mxu0 0
      %732 = vmatmul.mubr.bf16.gmra.mxu0 %v670
      %v733 = vpop.f32.mrf.mxu0
      %v734 = vadd.f32 0.0, %v733
      %v735 = vpop.f32.mrf.mxu0
      %v736 = vpop.f32.mrf.mxu0
      %v737 = vadd.f32 0.0, %v736
      %v738 = vpop.f32.mrf.mxu0
      %739 = vdwg.mxu0
      %v740 = vadd.f32 %v507, %v710
      %v741 = vadd.f32 %v508, %v713
      %v742 = vadd.f32 %v509, %v718
      %v743 = vadd.f32 %v510, %v721
      %v744 = vadd.f32 %v511, %v726
      %v745 = vadd.f32 %v512, %v729
      %v746 = vadd.f32 %v513, %v734
      %v747 = vadd.f32 %v514, %v737
      %s748 = scalar_lea.vmem %s229, 144
      %v749 = vld [vmem:[%s748] sm:$0xf]
      %v750 = vld [vmem:[%s748 + $0x8] sm:$0xf]
      %v751 = vld [vmem:[%s748 + $0x10] sm:$0xf]
      %v752 = vld [vmem:[%s748 + $0x18] sm:$0xf]
      %v753 = vld [vmem:[%s748 + $0x20] sm:$0xf]
      %v754 = vld [vmem:[%s748 + $0x28] sm:$0xf]
      %v755 = vld [vmem:[%s748 + $0x30] sm:$0xf]
      %v756 = vld [vmem:[%s748 + $0x38] sm:$0xf]
      %s757 = scalar_lea.vmem %s238, 6
      %v758 = vld [vmem:[%s757] sm:$0x3]
      %v767 = vunpack.c.l.b16 %v749
      %v768 = vunpack.c.l.b16 %v750
      %v769 = vunpack.c.l.b16 %v751
      %v770 = vunpack.c.l.b16 %v752
      %v771 = vunpack.c.l.b16 %v753
      %v772 = vunpack.c.l.b16 %v754
      %v773 = vunpack.c.l.b16 %v755
      %v774 = vunpack.c.l.b16 %v756
      %v775 = vpack.c.b16 %v768, %v767
      %v776 = vpack.c.b16 %v770, %v769
      %v777 = vpack.c.b16 %v772, %v771
      %v778 = vpack.c.b16 %v774, %v773
      %v780 = vsel %vm306, %v775, 0
      %v783 = vsel %vm306, %v776, 0
      %v786 = vsel %vm306, %v777, 0
      %v789 = vsel %vm306, %v778, 0
      %v792 = vsel %vm319, %v758, 0
      %794 = vmatprep.subr.bf16.mxu0 0
      %795 = vmatpush1.bf16.msra.mxu0 0
      %796 = vmatprep.subr.bf16.mxu0 0
      %797 = vmatpush1.bf16.msra.mxu0 0
      %798 = vmatprep.subr.bf16.mxu0 0
      %799 = vmatpush1.bf16.msra.mxu0 0
      %800 = vmatprep.subr.bf16.mxu0 0
      %801 = vmatpush1.bf16.msra.mxu0 0
      %802 = vmatprep.subr.bf16.mxu0 0
      %803 = vmatpush1.bf16.msra.mxu0 0
      %804 = vmatprep.subr.bf16.mxu0 0
      %805 = vmatpush1.bf16.msra.mxu0 0
      %806 = vmatprep.subr.bf16.mxu0 0
      %807 = vmatpush1.bf16.msra.mxu0 0
      %808 = vmatprep.subr.bf16.mxu0 0
      %809 = vmatpush1.bf16.msra.mxu0 %v792
      %810 = vmatprep.subr.bf16.mxu0 0
      %811 = vmatpush2.bf16.msra.mxu0 0
      %812 = vmatprep.subr.bf16.mxu0 0
      %813 = vmatpush2.bf16.msra.mxu0 0
      %814 = vmatprep.subr.bf16.mxu0 0
      %815 = vmatpush2.bf16.msra.mxu0 0
      %816 = vmatprep.subr.bf16.mxu0 0
      %817 = vmatpush2.bf16.msra.mxu0 0
      %818 = vmatprep.subr.bf16.mxu0 0
      %819 = vmatpush2.bf16.msra.mxu0 0
      %820 = vmatprep.subr.bf16.mxu0 0
      %821 = vmatpush2.bf16.msra.mxu0 0
      %822 = vmatprep.subr.bf16.mxu0 0
      %823 = vmatpush2.bf16.msra.mxu0 0
      %824 = vmatprep.subr.bf16.mxu0 0
      %825 = vmatpush2.bf16.msra.mxu0 0
      %826 = vmatprep.mubr.bf16.mxu0 0
      %827 = vmatmul.mubr.bf16.gmra.mxu0 %v780
      %v828 = vpop.f32.mrf.mxu0
      %v829 = vadd.f32 0.0, %v828
      %v830 = vpop.f32.mrf.mxu0
      %v831 = vpop.f32.mrf.mxu0
      %v832 = vadd.f32 0.0, %v831
      %v833 = vpop.f32.mrf.mxu0
      %834 = vmatprep.mubr.bf16.mxu0 0
      %835 = vmatmul.mubr.bf16.gmra.mxu0 %v783
      %v836 = vpop.f32.mrf.mxu0
      %v837 = vadd.f32 0.0, %v836
      %v838 = vpop.f32.mrf.mxu0
      %v839 = vpop.f32.mrf.mxu0
      %v840 = vadd.f32 0.0, %v839
      %v841 = vpop.f32.mrf.mxu0
      %842 = vmatprep.mubr.bf16.mxu0 0
      %843 = vmatmul.mubr.bf16.gmra.mxu0 %v786
      %v844 = vpop.f32.mrf.mxu0
      %v845 = vadd.f32 0.0, %v844
      %v846 = vpop.f32.mrf.mxu0
      %v847 = vpop.f32.mrf.mxu0
      %v848 = vadd.f32 0.0, %v847
      %v849 = vpop.f32.mrf.mxu0
      %850 = vmatprep.mubr.bf16.mxu0 0
      %851 = vmatmul.mubr.bf16.gmra.mxu0 %v789
      %v852 = vpop.f32.mrf.mxu0
      %v853 = vadd.f32 0.0, %v852
      %v854 = vpop.f32.mrf.mxu0
      %v855 = vpop.f32.mrf.mxu0
      %v856 = vadd.f32 0.0, %v855
      %v857 = vpop.f32.mrf.mxu0
      %858 = vdwg.mxu0
      %v859 = vadd.f32 %v740, %v829
      %v860 = vadd.f32 %v741, %v832
      %v861 = vadd.f32 %v742, %v837
      %v862 = vadd.f32 %v743, %v840
      %v863 = vadd.f32 %v744, %v845
      %v864 = vadd.f32 %v745, %v848
      %v865 = vadd.f32 %v746, %v853
      %v866 = vadd.f32 %v747, %v856
      %s867 = scalar_lea.vmem %s229, 216
      %v868 = vld [vmem:[%s867] sm:$0xf]
      %v869 = vld [vmem:[%s867 + $0x8] sm:$0xf]
      %v870 = vld [vmem:[%s867 + $0x10] sm:$0xf]
      %v871 = vld [vmem:[%s867 + $0x18] sm:$0xf]
      %v872 = vld [vmem:[%s867 + $0x20] sm:$0xf]
      %v873 = vld [vmem:[%s867 + $0x28] sm:$0xf]
      %v874 = vld [vmem:[%s867 + $0x30] sm:$0xf]
      %v875 = vld [vmem:[%s867 + $0x38] sm:$0xf]
      %s876 = scalar_lea.vmem %s238, 8
      %v877 = vld [vmem:[%s876] sm:$0x3]
      %v886 = vunpack.c.l.b16 %v868
      %v887 = vunpack.c.l.b16 %v869
      %v888 = vunpack.c.l.b16 %v870
      %v889 = vunpack.c.l.b16 %v871
      %v890 = vunpack.c.l.b16 %v872
      %v891 = vunpack.c.l.b16 %v873
      %v892 = vunpack.c.l.b16 %v874
      %v893 = vunpack.c.l.b16 %v875
      %v894 = vpack.c.b16 %v887, %v886
      %v895 = vpack.c.b16 %v889, %v888
      %v896 = vpack.c.b16 %v891, %v890
      %v897 = vpack.c.b16 %v893, %v892
      %v899 = vsel %vm306, %v894, 0
      %v902 = vsel %vm306, %v895, 0
      %v905 = vsel %vm306, %v896, 0
      %v908 = vsel %vm306, %v897, 0
      %v911 = vsel %vm319, %v877, 0
      %913 = vmatprep.subr.bf16.mxu0 0
      %914 = vmatpush1.bf16.msra.mxu0 0
      %915 = vmatprep.subr.bf16.mxu0 0
      %916 = vmatpush1.bf16.msra.mxu0 0
      %917 = vmatprep.subr.bf16.mxu0 0
      %918 = vmatpush1.bf16.msra.mxu0 0
      %919 = vmatprep.subr.bf16.mxu0 0
      %920 = vmatpush1.bf16.msra.mxu0 0
      %921 = vmatprep.subr.bf16.mxu0 0
      %922 = vmatpush1.bf16.msra.mxu0 0
      %923 = vmatprep.subr.bf16.mxu0 0
      %924 = vmatpush1.bf16.msra.mxu0 0
      %925 = vmatprep.subr.bf16.mxu0 0
      %926 = vmatpush1.bf16.msra.mxu0 0
      %927 = vmatprep.subr.bf16.mxu0 0
      %928 = vmatpush1.bf16.msra.mxu0 %v911
      %929 = vmatprep.subr.bf16.mxu0 0
      %930 = vmatpush2.bf16.msra.mxu0 0
      %931 = vmatprep.subr.bf16.mxu0 0
      %932 = vmatpush2.bf16.msra.mxu0 0
      %933 = vmatprep.subr.bf16.mxu0 0
      %934 = vmatpush2.bf16.msra.mxu0 0
      %935 = vmatprep.subr.bf16.mxu0 0
      %936 = vmatpush2.bf16.msra.mxu0 0
      %937 = vmatprep.subr.bf16.mxu0 0
      %938 = vmatpush2.bf16.msra.mxu0 0
      %939 = vmatprep.subr.bf16.mxu0 0
      %940 = vmatpush2.bf16.msra.mxu0 0
      %941 = vmatprep.subr.bf16.mxu0 0
      %942 = vmatpush2.bf16.msra.mxu0 0
      %943 = vmatprep.subr.bf16.mxu0 0
      %944 = vmatpush2.bf16.msra.mxu0 0
      %945 = vmatprep.mubr.bf16.mxu0 0
      %946 = vmatmul.mubr.bf16.gmra.mxu0 %v899
      %v947 = vpop.f32.mrf.mxu0
      %v948 = vadd.f32 0.0, %v947
      %v949 = vpop.f32.mrf.mxu0
      %v950 = vpop.f32.mrf.mxu0
      %v951 = vadd.f32 0.0, %v950
      %v952 = vpop.f32.mrf.mxu0
      %953 = vmatprep.mubr.bf16.mxu0 0
      %954 = vmatmul.mubr.bf16.gmra.mxu0 %v902
      %v955 = vpop.f32.mrf.mxu0
      %v956 = vadd.f32 0.0, %v955
      %v957 = vpop.f32.mrf.mxu0
      %v958 = vpop.f32.mrf.mxu0
      %v959 = vadd.f32 0.0, %v958
      %v960 = vpop.f32.mrf.mxu0
      %961 = vmatprep.mubr.bf16.mxu0 0
      %962 = vmatmul.mubr.bf16.gmra.mxu0 %v905
      %v963 = vpop.f32.mrf.mxu0
      %v964 = vadd.f32 0.0, %v963
      %v965 = vpop.f32.mrf.mxu0
      %v966 = vpop.f32.mrf.mxu0
      %v967 = vadd.f32 0.0, %v966
      %v968 = vpop.f32.mrf.mxu0
      %969 = vmatprep.mubr.bf16.mxu0 0
      %970 = vmatmul.mubr.bf16.gmra.mxu0 %v908
      %v971 = vpop.f32.mrf.mxu0
      %v972 = vadd.f32 0.0, %v971
      %v973 = vpop.f32.mrf.mxu0
      %v974 = vpop.f32.mrf.mxu0
      %v975 = vadd.f32 0.0, %v974
      %v976 = vpop.f32.mrf.mxu0
      %977 = vdwg.mxu0
      %v978 = vadd.f32 %v859, %v948
      %v979 = vadd.f32 %v860, %v951
      %v980 = vadd.f32 %v861, %v956
      %v981 = vadd.f32 %v862, %v959
      %v982 = vadd.f32 %v863, %v964
      %v983 = vadd.f32 %v864, %v967
      %v984 = vadd.f32 %v865, %v972
      %v985 = vadd.f32 %v866, %v975
      %v986 = vld [vmem:[%s748] sm:$0xf]
      %v987 = vld [vmem:[%s748 + $0x4] sm:$0x1]
      %v988 = vld [vmem:[%s748 + $0x8] sm:$0xf]
      %v989 = vld [vmem:[%s748 + $0xc] sm:$0x1]
      %v990 = vld [vmem:[%s748 + $0x10] sm:$0xf]
      %v991 = vld [vmem:[%s748 + $0x14] sm:$0x1]
      %v992 = vld [vmem:[%s748 + $0x18] sm:$0xf]
      %v993 = vld [vmem:[%s748 + $0x1c] sm:$0x1]
      %v994 = vld [vmem:[%s748 + $0x20] sm:$0xf]
      %v995 = vld [vmem:[%s748 + $0x24] sm:$0x1]
      %v996 = vld [vmem:[%s748 + $0x28] sm:$0xf]
      %v997 = vld [vmem:[%s748 + $0x2c] sm:$0x1]
      %v998 = vld [vmem:[%s748 + $0x30] sm:$0xf]
      %v999 = vld [vmem:[%s748 + $0x34] sm:$0x1]
      %v1000 = vld [vmem:[%s748 + $0x38] sm:$0xf]
      %v1001 = vld [vmem:[%s748 + $0x3c] sm:$0x1]
      %v1003 = vshrl.u32 %v986, 16
      %v1005 = vrot.slane %v1003, 4
      %v1006 = vshll.u32 %v986, 16
      %v1008 = vrot.slane %v1006, 5
      %v1009 = vor.u32 %v1005, %v1008
      %v1010 = vrot.slane %v1009, 4
      %v1012 = vshll.u32 %v987, 16
      %v1014 = vrot.slane %v1012, 5
      %v1015 = vsel %vm533, %v1010, %v1014
      %v1017 = vshrl.u32 %v988, 16
      %v1019 = vrot.slane %v1017, 4
      %v1020 = vshll.u32 %v988, 16
      %v1022 = vrot.slane %v1020, 5
      %v1023 = vor.u32 %v1019, %v1022
      %v1024 = vrot.slane %v1023, 4
      %v1026 = vshll.u32 %v989, 16
      %v1028 = vrot.slane %v1026, 5
      %v1029 = vsel %vm533, %v1024, %v1028
      %v1031 = vshrl.u32 %v990, 16
      %v1033 = vrot.slane %v1031, 4
      %v1034 = vshll.u32 %v990, 16
      %v1036 = vrot.slane %v1034, 5
      %v1037 = vor.u32 %v1033, %v1036
      %v1038 = vrot.slane %v1037, 4
      %v1040 = vshll.u32 %v991, 16
      %v1042 = vrot.slane %v1040, 5
      %v1043 = vsel %vm533, %v1038, %v1042
      %v1045 = vshrl.u32 %v992, 16
      %v1047 = vrot.slane %v1045, 4
      %v1048 = vshll.u32 %v992, 16
      %v1050 = vrot.slane %v1048, 5
      %v1051 = vor.u32 %v1047, %v1050
      %v1052 = vrot.slane %v1051, 4
      %v1054 = vshll.u32 %v993, 16
      %v1056 = vrot.slane %v1054, 5
      %v1057 = vsel %vm533, %v1052, %v1056
      %v1059 = vshrl.u32 %v994, 16
      %v1061 = vrot.slane %v1059, 4
      %v1062 = vshll.u32 %v994, 16
      %v1064 = vrot.slane %v1062, 5
      %v1065 = vor.u32 %v1061, %v1064
      %v1066 = vrot.slane %v1065, 4
      %v1068 = vshll.u32 %v995, 16
      %v1070 = vrot.slane %v1068, 5
      %v1071 = vsel %vm533, %v1066, %v1070
      %v1073 = vshrl.u32 %v996, 16
      %v1075 = vrot.slane %v1073, 4
      %v1076 = vshll.u32 %v996, 16
      %v1078 = vrot.slane %v1076, 5
      %v1079 = vor.u32 %v1075, %v1078
      %v1080 = vrot.slane %v1079, 4
      %v1082 = vshll.u32 %v997, 16
      %v1084 = vrot.slane %v1082, 5
      %v1085 = vsel %vm533, %v1080, %v1084
      %v1087 = vshrl.u32 %v998, 16
      %v1089 = vrot.slane %v1087, 4
      %v1090 = vshll.u32 %v998, 16
      %v1092 = vrot.slane %v1090, 5
      %v1093 = vor.u32 %v1089, %v1092
      %v1094 = vrot.slane %v1093, 4
      %v1096 = vshll.u32 %v999, 16
      %v1098 = vrot.slane %v1096, 5
      %v1099 = vsel %vm533, %v1094, %v1098
      %v1101 = vshrl.u32 %v1000, 16
      %v1103 = vrot.slane %v1101, 4
      %v1104 = vshll.u32 %v1000, 16
      %v1106 = vrot.slane %v1104, 5
      %v1107 = vor.u32 %v1103, %v1106
      %v1108 = vrot.slane %v1107, 4
      %v1110 = vshll.u32 %v1001, 16
      %v1112 = vrot.slane %v1110, 5
      %v1113 = vsel %vm533, %v1108, %v1112
      %s1114 = scalar_lea.vmem %s238, 10
      %v1115 = vld [vmem:[%s1114] sm:$0x3]
      %v1116 = vunpack.c.l.b16 %v1015
      %v1117 = vunpack.c.l.b16 %v1029
      %v1118 = vunpack.c.l.b16 %v1043
      %v1119 = vunpack.c.l.b16 %v1057
      %v1120 = vunpack.c.l.b16 %v1071
      %v1121 = vunpack.c.l.b16 %v1085
      %v1122 = vunpack.c.l.b16 %v1099
      %v1123 = vunpack.c.l.b16 %v1113
      %v1124 = vpack.c.b16 %v1117, %v1116
      %v1125 = vpack.c.b16 %v1119, %v1118
      %v1126 = vpack.c.b16 %v1121, %v1120
      %v1127 = vpack.c.b16 %v1123, %v1122
      %v1129 = vsel %vm306, %v1124, 0
      %v1132 = vsel %vm306, %v1125, 0
      %v1135 = vsel %vm306, %v1126, 0
      %v1138 = vsel %vm306, %v1127, 0
      %v1141 = vsel %vm319, %v1115, 0
      %1143 = vmatprep.subr.bf16.mxu0 0
      %1144 = vmatpush1.bf16.msra.mxu0 0
      %1145 = vmatprep.subr.bf16.mxu0 0
      %1146 = vmatpush1.bf16.msra.mxu0 0
      %1147 = vmatprep.subr.bf16.mxu0 0
      %1148 = vmatpush1.bf16.msra.mxu0 0
      %1149 = vmatprep.subr.bf16.mxu0 0
      %1150 = vmatpush1.bf16.msra.mxu0 0
      %1151 = vmatprep.subr.bf16.mxu0 0
      %1152 = vmatpush1.bf16.msra.mxu0 0
      %1153 = vmatprep.subr.bf16.mxu0 0
      %1154 = vmatpush1.bf16.msra.mxu0 0
      %1155 = vmatprep.subr.bf16.mxu0 0
      %1156 = vmatpush1.bf16.msra.mxu0 0
      %1157 = vmatprep.subr.bf16.mxu0 0
      %1158 = vmatpush1.bf16.msra.mxu0 %v1141
      %1159 = vmatprep.subr.bf16.mxu0 0
      %1160 = vmatpush2.bf16.msra.mxu0 0
      %1161 = vmatprep.subr.bf16.mxu0 0
      %1162 = vmatpush2.bf16.msra.mxu0 0
      %1163 = vmatprep.subr.bf16.mxu0 0
      %1164 = vmatpush2.bf16.msra.mxu0 0
      %1165 = vmatprep.subr.bf16.mxu0 0
      %1166 = vmatpush2.bf16.msra.mxu0 0
      %1167 = vmatprep.subr.bf16.mxu0 0
      %1168 = vmatpush2.bf16.msra.mxu0 0
      %1169 = vmatprep.subr.bf16.mxu0 0
      %1170 = vmatpush2.bf16.msra.mxu0 0
      %1171 = vmatprep.subr.bf16.mxu0 0
      %1172 = vmatpush2.bf16.msra.mxu0 0
      %1173 = vmatprep.subr.bf16.mxu0 0
      %1174 = vmatpush2.bf16.msra.mxu0 0
      %1175 = vmatprep.mubr.bf16.mxu0 0
      %1176 = vmatmul.mubr.bf16.gmra.mxu0 %v1129
      %v1177 = vpop.f32.mrf.mxu0
      %v1178 = vadd.f32 0.0, %v1177
      %v1179 = vpop.f32.mrf.mxu0
      %v1180 = vpop.f32.mrf.mxu0
      %v1181 = vadd.f32 0.0, %v1180
      %v1182 = vpop.f32.mrf.mxu0
      %1183 = vmatprep.mubr.bf16.mxu0 0
      %1184 = vmatmul.mubr.bf16.gmra.mxu0 %v1132
      %v1185 = vpop.f32.mrf.mxu0
      %v1186 = vadd.f32 0.0, %v1185
      %v1187 = vpop.f32.mrf.mxu0
      %v1188 = vpop.f32.mrf.mxu0
      %v1189 = vadd.f32 0.0, %v1188
      %v1190 = vpop.f32.mrf.mxu0
      %1191 = vmatprep.mubr.bf16.mxu0 0
      %1192 = vmatmul.mubr.bf16.gmra.mxu0 %v1135
      %v1193 = vpop.f32.mrf.mxu0
      %v1194 = vadd.f32 0.0, %v1193
      %v1195 = vpop.f32.mrf.mxu0
      %v1196 = vpop.f32.mrf.mxu0
      %v1197 = vadd.f32 0.0, %v1196
      %v1198 = vpop.f32.mrf.mxu0
      %1199 = vmatprep.mubr.bf16.mxu0 0
      %1200 = vmatmul.mubr.bf16.gmra.mxu0 %v1138
      %v1201 = vpop.f32.mrf.mxu0
      %v1202 = vadd.f32 0.0, %v1201
      %v1203 = vpop.f32.mrf.mxu0
      %v1204 = vpop.f32.mrf.mxu0
      %v1205 = vadd.f32 0.0, %v1204
      %v1206 = vpop.f32.mrf.mxu0
      %1207 = vdwg.mxu0
      %v1208 = vadd.f32 %v978, %v1178
      %v1209 = vadd.f32 %v979, %v1181
      %v1210 = vadd.f32 %v980, %v1186
      %v1211 = vadd.f32 %v981, %v1189
      %v1212 = vadd.f32 %v982, %v1194
      %v1213 = vadd.f32 %v983, %v1197
      %v1214 = vadd.f32 %v984, %v1202
      %v1215 = vadd.f32 %v985, %v1205
      %s1216 = scalar_lea.vmem %s229, 8
      %v1217 = vld [vmem:[%s1216] sm:$0xf]
      %v1218 = vld [vmem:[%s1216 + $0x8] sm:$0xf]
      %v1219 = vld [vmem:[%s1216 + $0x10] sm:$0xf]
      %v1220 = vld [vmem:[%s1216 + $0x18] sm:$0xf]
      %v1221 = vld [vmem:[%s1216 + $0x20] sm:$0xf]
      %v1222 = vld [vmem:[%s1216 + $0x28] sm:$0xf]
      %v1223 = vld [vmem:[%s1216 + $0x30] sm:$0xf]
      %v1224 = vld [vmem:[%s1216 + $0x38] sm:$0xf]
      %s1225 = scalar_lea.vmem %s238, 12
      %v1226 = vld [vmem:[%s1225] sm:$0x3]
      %v1235 = vunpack.c.l.b16 %v1217
      %v1236 = vunpack.c.l.b16 %v1218
      %v1237 = vunpack.c.l.b16 %v1219
      %v1238 = vunpack.c.l.b16 %v1220
      %v1239 = vunpack.c.l.b16 %v1221
      %v1240 = vunpack.c.l.b16 %v1222
      %v1241 = vunpack.c.l.b16 %v1223
      %v1242 = vunpack.c.l.b16 %v1224
      %v1243 = vpack.c.b16 %v1236, %v1235
      %v1244 = vpack.c.b16 %v1238, %v1237
      %v1245 = vpack.c.b16 %v1240, %v1239
      %v1246 = vpack.c.b16 %v1242, %v1241
      %v1248 = vsel %vm306, %v1243, 0
      %v1251 = vsel %vm306, %v1244, 0
      %v1254 = vsel %vm306, %v1245, 0
      %v1257 = vsel %vm306, %v1246, 0
      %v1260 = vsel %vm319, %v1226, 0
      %1262 = vmatprep.subr.bf16.mxu0 0
      %1263 = vmatpush1.bf16.msra.mxu0 0
      %1264 = vmatprep.subr.bf16.mxu0 0
      %1265 = vmatpush1.bf16.msra.mxu0 0
      %1266 = vmatprep.subr.bf16.mxu0 0
      %1267 = vmatpush1.bf16.msra.mxu0 0
      %1268 = vmatprep.subr.bf16.mxu0 0
      %1269 = vmatpush1.bf16.msra.mxu0 0
      %1270 = vmatprep.subr.bf16.mxu0 0
      %1271 = vmatpush1.bf16.msra.mxu0 0
      %1272 = vmatprep.subr.bf16.mxu0 0
      %1273 = vmatpush1.bf16.msra.mxu0 0
      %1274 = vmatprep.subr.bf16.mxu0 0
      %1275 = vmatpush1.bf16.msra.mxu0 0
      %1276 = vmatprep.subr.bf16.mxu0 0
      %1277 = vmatpush1.bf16.msra.mxu0 %v1260
      %1278 = vmatprep.subr.bf16.mxu0 0
      %1279 = vmatpush2.bf16.msra.mxu0 0
      %1280 = vmatprep.subr.bf16.mxu0 0
      %1281 = vmatpush2.bf16.msra.mxu0 0
      %1282 = vmatprep.subr.bf16.mxu0 0
      %1283 = vmatpush2.bf16.msra.mxu0 0
      %1284 = vmatprep.subr.bf16.mxu0 0
      %1285 = vmatpush2.bf16.msra.mxu0 0
      %1286 = vmatprep.subr.bf16.mxu0 0
      %1287 = vmatpush2.bf16.msra.mxu0 0
      %1288 = vmatprep.subr.bf16.mxu0 0
      %1289 = vmatpush2.bf16.msra.mxu0 0
      %1290 = vmatprep.subr.bf16.mxu0 0
      %1291 = vmatpush2.bf16.msra.mxu0 0
      %1292 = vmatprep.subr.bf16.mxu0 0
      %1293 = vmatpush2.bf16.msra.mxu0 0
      %1294 = vmatprep.mubr.bf16.mxu0 0
      %1295 = vmatmul.mubr.bf16.gmra.mxu0 %v1248
      %v1296 = vpop.f32.mrf.mxu0
      %v1297 = vadd.f32 0.0, %v1296
      %v1298 = vpop.f32.mrf.mxu0
      %v1299 = vpop.f32.mrf.mxu0
      %v1300 = vadd.f32 0.0, %v1299
      %v1301 = vpop.f32.mrf.mxu0
      %1302 = vmatprep.mubr.bf16.mxu0 0
      %1303 = vmatmul.mubr.bf16.gmra.mxu0 %v1251
      %v1304 = vpop.f32.mrf.mxu0
      %v1305 = vadd.f32 0.0, %v1304
      %v1306 = vpop.f32.mrf.mxu0
      %v1307 = vpop.f32.mrf.mxu0
      %v1308 = vadd.f32 0.0, %v1307
      %v1309 = vpop.f32.mrf.mxu0
      %1310 = vmatprep.mubr.bf16.mxu0 0
      %1311 = vmatmul.mubr.bf16.gmra.mxu0 %v1254
      %v1312 = vpop.f32.mrf.mxu0
      %v1313 = vadd.f32 0.0, %v1312
      %v1314 = vpop.f32.mrf.mxu0
      %v1315 = vpop.f32.mrf.mxu0
      %v1316 = vadd.f32 0.0, %v1315
      %v1317 = vpop.f32.mrf.mxu0
      %1318 = vmatprep.mubr.bf16.mxu0 0
      %1319 = vmatmul.mubr.bf16.gmra.mxu0 %v1257
      %v1320 = vpop.f32.mrf.mxu0
      %v1321 = vadd.f32 0.0, %v1320
      %v1322 = vpop.f32.mrf.mxu0
      %v1323 = vpop.f32.mrf.mxu0
      %v1324 = vadd.f32 0.0, %v1323
      %v1325 = vpop.f32.mrf.mxu0
      %1326 = vdwg.mxu0
      %v1327 = vadd.f32 %v1208, %v1297
      %v1328 = vadd.f32 %v1209, %v1300
      %v1329 = vadd.f32 %v1210, %v1305
      %v1330 = vadd.f32 %v1211, %v1308
      %v1331 = vadd.f32 %v1212, %v1313
      %v1332 = vadd.f32 %v1213, %v1316
      %v1333 = vadd.f32 %v1214, %v1321
      %v1334 = vadd.f32 %v1215, %v1324
      %s1335 = scalar_lea.vmem %s229, 80
      %v1336 = vld [vmem:[%s1335] sm:$0xf]
      %v1337 = vld [vmem:[%s1335 + $0x8] sm:$0xf]
      %v1338 = vld [vmem:[%s1335 + $0x10] sm:$0xf]
      %v1339 = vld [vmem:[%s1335 + $0x18] sm:$0xf]
      %v1340 = vld [vmem:[%s1335 + $0x20] sm:$0xf]
      %v1341 = vld [vmem:[%s1335 + $0x28] sm:$0xf]
      %v1342 = vld [vmem:[%s1335 + $0x30] sm:$0xf]
      %v1343 = vld [vmem:[%s1335 + $0x38] sm:$0xf]
      %s1344 = scalar_lea.vmem %s238, 14
      %v1345 = vld [vmem:[%s1344] sm:$0x3]
      %v1354 = vunpack.c.l.b16 %v1336
      %v1355 = vunpack.c.l.b16 %v1337
      %v1356 = vunpack.c.l.b16 %v1338
      %v1357 = vunpack.c.l.b16 %v1339
      %v1358 = vunpack.c.l.b16 %v1340
      %v1359 = vunpack.c.l.b16 %v1341
      %v1360 = vunpack.c.l.b16 %v1342
      %v1361 = vunpack.c.l.b16 %v1343
      %v1362 = vpack.c.b16 %v1355, %v1354
      %v1363 = vpack.c.b16 %v1357, %v1356
      %v1364 = vpack.c.b16 %v1359, %v1358
      %v1365 = vpack.c.b16 %v1361, %v1360
      %v1367 = vsel %vm306, %v1362, 0
      %v1370 = vsel %vm306, %v1363, 0
      %v1373 = vsel %vm306, %v1364, 0
      %v1376 = vsel %vm306, %v1365, 0
      %v1379 = vsel %vm319, %v1345, 0
      %1381 = vmatprep.subr.bf16.mxu0 0
      %1382 = vmatpush1.bf16.msra.mxu0 0
      %1383 = vmatprep.subr.bf16.mxu0 0
      %1384 = vmatpush1.bf16.msra.mxu0 0
      %1385 = vmatprep.subr.bf16.mxu0 0
      %1386 = vmatpush1.bf16.msra.mxu0 0
      %1387 = vmatprep.subr.bf16.mxu0 0
      %1388 = vmatpush1.bf16.msra.mxu0 0
      %1389 = vmatprep.subr.bf16.mxu0 0
      %1390 = vmatpush1.bf16.msra.mxu0 0
      %1391 = vmatprep.subr.bf16.mxu0 0
      %1392 = vmatpush1.bf16.msra.mxu0 0
      %1393 = vmatprep.subr.bf16.mxu0 0
      %1394 = vmatpush1.bf16.msra.mxu0 0
      %1395 = vmatprep.subr.bf16.mxu0 0
      %1396 = vmatpush1.bf16.msra.mxu0 %v1379
      %1397 = vmatprep.subr.bf16.mxu0 0
      %1398 = vmatpush2.bf16.msra.mxu0 0
      %1399 = vmatprep.subr.bf16.mxu0 0
      %1400 = vmatpush2.bf16.msra.mxu0 0
      %1401 = vmatprep.subr.bf16.mxu0 0
      %1402 = vmatpush2.bf16.msra.mxu0 0
      %1403 = vmatprep.subr.bf16.mxu0 0
      %1404 = vmatpush2.bf16.msra.mxu0 0
      %1405 = vmatprep.subr.bf16.mxu0 0
      %1406 = vmatpush2.bf16.msra.mxu0 0
      %1407 = vmatprep.subr.bf16.mxu0 0
      %1408 = vmatpush2.bf16.msra.mxu0 0
      %1409 = vmatprep.subr.bf16.mxu0 0
      %1410 = vmatpush2.bf16.msra.mxu0 0
      %1411 = vmatprep.subr.bf16.mxu0 0
      %1412 = vmatpush2.bf16.msra.mxu0 0
      %1413 = vmatprep.mubr.bf16.mxu0 0
      %1414 = vmatmul.mubr.bf16.gmra.mxu0 %v1367
      %v1415 = vpop.f32.mrf.mxu0
      %v1416 = vadd.f32 0.0, %v1415
      %v1417 = vpop.f32.mrf.mxu0
      %v1418 = vpop.f32.mrf.mxu0
      %v1419 = vadd.f32 0.0, %v1418
      %v1420 = vpop.f32.mrf.mxu0
      %1421 = vmatprep.mubr.bf16.mxu0 0
      %1422 = vmatmul.mubr.bf16.gmra.mxu0 %v1370
      %v1423 = vpop.f32.mrf.mxu0
      %v1424 = vadd.f32 0.0, %v1423
      %v1425 = vpop.f32.mrf.mxu0
      %v1426 = vpop.f32.mrf.mxu0
      %v1427 = vadd.f32 0.0, %v1426
      %v1428 = vpop.f32.mrf.mxu0
      %1429 = vmatprep.mubr.bf16.mxu0 0
      %1430 = vmatmul.mubr.bf16.gmra.mxu0 %v1373
      %v1431 = vpop.f32.mrf.mxu0
      %v1432 = vadd.f32 0.0, %v1431
      %v1433 = vpop.f32.mrf.mxu0
      %v1434 = vpop.f32.mrf.mxu0
      %v1435 = vadd.f32 0.0, %v1434
      %v1436 = vpop.f32.mrf.mxu0
      %1437 = vmatprep.mubr.bf16.mxu0 0
      %1438 = vmatmul.mubr.bf16.gmra.mxu0 %v1376
      %v1439 = vpop.f32.mrf.mxu0
      %v1440 = vadd.f32 0.0, %v1439
      %v1441 = vpop.f32.mrf.mxu0
      %v1442 = vpop.f32.mrf.mxu0
      %v1443 = vadd.f32 0.0, %v1442
      %v1444 = vpop.f32.mrf.mxu0
      %1445 = vdwg.mxu0
      %v1446 = vadd.f32 %v1327, %v1416
      %v1447 = vadd.f32 %v1328, %v1419
      %v1448 = vadd.f32 %v1329, %v1424
      %v1449 = vadd.f32 %v1330, %v1427
      %v1450 = vadd.f32 %v1331, %v1432
      %v1451 = vadd.f32 %v1332, %v1435
      %v1452 = vadd.f32 %v1333, %v1440
      %v1453 = vadd.f32 %v1334, %v1443
      %v1454 = vld [vmem:[%s1216] sm:$0xf]
      %v1455 = vld [vmem:[%s1216 + $0x4] sm:$0x1]
      %v1456 = vld [vmem:[%s1216 + $0x8] sm:$0xf]
      %v1457 = vld [vmem:[%s1216 + $0xc] sm:$0x1]
      %v1458 = vld [vmem:[%s1216 + $0x10] sm:$0xf]
      %v1459 = vld [vmem:[%s1216 + $0x14] sm:$0x1]
      %v1460 = vld [vmem:[%s1216 + $0x18] sm:$0xf]
      %v1461 = vld [vmem:[%s1216 + $0x1c] sm:$0x1]
      %v1462 = vld [vmem:[%s1216 + $0x20] sm:$0xf]
      %v1463 = vld [vmem:[%s1216 + $0x24] sm:$0x1]
      %v1464 = vld [vmem:[%s1216 + $0x28] sm:$0xf]
      %v1465 = vld [vmem:[%s1216 + $0x2c] sm:$0x1]
      %v1466 = vld [vmem:[%s1216 + $0x30] sm:$0xf]
      %v1467 = vld [vmem:[%s1216 + $0x34] sm:$0x1]
      %v1468 = vld [vmem:[%s1216 + $0x38] sm:$0xf]
      %v1469 = vld [vmem:[%s1216 + $0x3c] sm:$0x1]
      %v1471 = vshrl.u32 %v1454, 16
      %v1473 = vrot.slane %v1471, 4
      %v1474 = vshll.u32 %v1454, 16
      %v1476 = vrot.slane %v1474, 5
      %v1477 = vor.u32 %v1473, %v1476
      %v1478 = vrot.slane %v1477, 4
      %v1480 = vshll.u32 %v1455, 16
      %v1482 = vrot.slane %v1480, 5
      %v1483 = vsel %vm533, %v1478, %v1482
      %v1485 = vshrl.u32 %v1456, 16
      %v1487 = vrot.slane %v1485, 4
      %v1488 = vshll.u32 %v1456, 16
      %v1490 = vrot.slane %v1488, 5
      %v1491 = vor.u32 %v1487, %v1490
      %v1492 = vrot.slane %v1491, 4
      %v1494 = vshll.u32 %v1457, 16
      %v1496 = vrot.slane %v1494, 5
      %v1497 = vsel %vm533, %v1492, %v1496
      %v1499 = vshrl.u32 %v1458, 16
      %v1501 = vrot.slane %v1499, 4
      %v1502 = vshll.u32 %v1458, 16
      %v1504 = vrot.slane %v1502, 5
      %v1505 = vor.u32 %v1501, %v1504
      %v1506 = vrot.slane %v1505, 4
      %v1508 = vshll.u32 %v1459, 16
      %v1510 = vrot.slane %v1508, 5
      %v1511 = vsel %vm533, %v1506, %v1510
      %v1513 = vshrl.u32 %v1460, 16
      %v1515 = vrot.slane %v1513, 4
      %v1516 = vshll.u32 %v1460, 16
      %v1518 = vrot.slane %v1516, 5
      %v1519 = vor.u32 %v1515, %v1518
      %v1520 = vrot.slane %v1519, 4
      %v1522 = vshll.u32 %v1461, 16
      %v1524 = vrot.slane %v1522, 5
      %v1525 = vsel %vm533, %v1520, %v1524
      %v1527 = vshrl.u32 %v1462, 16
      %v1529 = vrot.slane %v1527, 4
      %v1530 = vshll.u32 %v1462, 16
      %v1532 = vrot.slane %v1530, 5
      %v1533 = vor.u32 %v1529, %v1532
      %v1534 = vrot.slane %v1533, 4
      %v1536 = vshll.u32 %v1463, 16
      %v1538 = vrot.slane %v1536, 5
      %v1539 = vsel %vm533, %v1534, %v1538
      %v1541 = vshrl.u32 %v1464, 16
      %v1543 = vrot.slane %v1541, 4
      %v1544 = vshll.u32 %v1464, 16
      %v1546 = vrot.slane %v1544, 5
      %v1547 = vor.u32 %v1543, %v1546
      %v1548 = vrot.slane %v1547, 4
      %v1550 = vshll.u32 %v1465, 16
      %v1552 = vrot.slane %v1550, 5
      %v1553 = vsel %vm533, %v1548, %v1552
      %v1555 = vshrl.u32 %v1466, 16
      %v1557 = vrot.slane %v1555, 4
      %v1558 = vshll.u32 %v1466, 16
      %v1560 = vrot.slane %v1558, 5
      %v1561 = vor.u32 %v1557, %v1560
      %v1562 = vrot.slane %v1561, 4
      %v1564 = vshll.u32 %v1467, 16
      %v1566 = vrot.slane %v1564, 5
      %v1567 = vsel %vm533, %v1562, %v1566
      %v1569 = vshrl.u32 %v1468, 16
      %v1571 = vrot.slane %v1569, 4
      %v1572 = vshll.u32 %v1468, 16
      %v1574 = vrot.slane %v1572, 5
      %v1575 = vor.u32 %v1571, %v1574
      %v1576 = vrot.slane %v1575, 4
      %v1578 = vshll.u32 %v1469, 16
      %v1580 = vrot.slane %v1578, 5
      %v1581 = vsel %vm533, %v1576, %v1580
      %s1582 = scalar_lea.vmem %s238, 16
      %v1583 = vld [vmem:[%s1582] sm:$0x3]
      %v1584 = vunpack.c.l.b16 %v1483
      %v1585 = vunpack.c.l.b16 %v1497
      %v1586 = vunpack.c.l.b16 %v1511
      %v1587 = vunpack.c.l.b16 %v1525
      %v1588 = vunpack.c.l.b16 %v1539
      %v1589 = vunpack.c.l.b16 %v1553
      %v1590 = vunpack.c.l.b16 %v1567
      %v1591 = vunpack.c.l.b16 %v1581
      %v1592 = vpack.c.b16 %v1585, %v1584
      %v1593 = vpack.c.b16 %v1587, %v1586
      %v1594 = vpack.c.b16 %v1589, %v1588
      %v1595 = vpack.c.b16 %v1591, %v1590
      %v1597 = vsel %vm306, %v1592, 0
      %v1600 = vsel %vm306, %v1593, 0
      %v1603 = vsel %vm306, %v1594, 0
      %v1606 = vsel %vm306, %v1595, 0
      %v1609 = vsel %vm319, %v1583, 0
      %1611 = vmatprep.subr.bf16.mxu0 0
      %1612 = vmatpush1.bf16.msra.mxu0 0
      %1613 = vmatprep.subr.bf16.mxu0 0
      %1614 = vmatpush1.bf16.msra.mxu0 0
      %1615 = vmatprep.subr.bf16.mxu0 0
      %1616 = vmatpush1.bf16.msra.mxu0 0
      %1617 = vmatprep.subr.bf16.mxu0 0
      %1618 = vmatpush1.bf16.msra.mxu0 0
      %1619 = vmatprep.subr.bf16.mxu0 0
      %1620 = vmatpush1.bf16.msra.mxu0 0
      %1621 = vmatprep.subr.bf16.mxu0 0
      %1622 = vmatpush1.bf16.msra.mxu0 0
      %1623 = vmatprep.subr.bf16.mxu0 0
      %1624 = vmatpush1.bf16.msra.mxu0 0
      %1625 = vmatprep.subr.bf16.mxu0 0
      %1626 = vmatpush1.bf16.msra.mxu0 %v1609
      %1627 = vmatprep.subr.bf16.mxu0 0
      %1628 = vmatpush2.bf16.msra.mxu0 0
      %1629 = vmatprep.subr.bf16.mxu0 0
      %1630 = vmatpush2.bf16.msra.mxu0 0
      %1631 = vmatprep.subr.bf16.mxu0 0
      %1632 = vmatpush2.bf16.msra.mxu0 0
      %1633 = vmatprep.subr.bf16.mxu0 0
      %1634 = vmatpush2.bf16.msra.mxu0 0
      %1635 = vmatprep.subr.bf16.mxu0 0
      %1636 = vmatpush2.bf16.msra.mxu0 0
      %1637 = vmatprep.subr.bf16.mxu0 0
      %1638 = vmatpush2.bf16.msra.mxu0 0
      %1639 = vmatprep.subr.bf16.mxu0 0
      %1640 = vmatpush2.bf16.msra.mxu0 0
      %1641 = vmatprep.subr.bf16.mxu0 0
      %1642 = vmatpush2.bf16.msra.mxu0 0
      %1643 = vmatprep.mubr.bf16.mxu0 0
      %1644 = vmatmul.mubr.bf16.gmra.mxu0 %v1597
      %v1645 = vpop.f32.mrf.mxu0
      %v1646 = vadd.f32 0.0, %v1645
      %v1647 = vpop.f32.mrf.mxu0
      %v1648 = vpop.f32.mrf.mxu0
      %v1649 = vadd.f32 0.0, %v1648
      %v1650 = vpop.f32.mrf.mxu0
      %1651 = vmatprep.mubr.bf16.mxu0 0
      %1652 = vmatmul.mubr.bf16.gmra.mxu0 %v1600
      %v1653 = vpop.f32.mrf.mxu0
      %v1654 = vadd.f32 0.0, %v1653
      %v1655 = vpop.f32.mrf.mxu0
      %v1656 = vpop.f32.mrf.mxu0
      %v1657 = vadd.f32 0.0, %v1656
      %v1658 = vpop.f32.mrf.mxu0
      %1659 = vmatprep.mubr.bf16.mxu0 0
      %1660 = vmatmul.mubr.bf16.gmra.mxu0 %v1603
      %v1661 = vpop.f32.mrf.mxu0
      %v1662 = vadd.f32 0.0, %v1661
      %v1663 = vpop.f32.mrf.mxu0
      %v1664 = vpop.f32.mrf.mxu0
      %v1665 = vadd.f32 0.0, %v1664
      %v1666 = vpop.f32.mrf.mxu0
      %1667 = vmatprep.mubr.bf16.mxu0 0
      %1668 = vmatmul.mubr.bf16.gmra.mxu0 %v1606
      %v1669 = vpop.f32.mrf.mxu0
      %v1670 = vadd.f32 0.0, %v1669
      %v1671 = vpop.f32.mrf.mxu0
      %v1672 = vpop.f32.mrf.mxu0
      %v1673 = vadd.f32 0.0, %v1672
      %v1674 = vpop.f32.mrf.mxu0
      %1675 = vdwg.mxu0
      %v1676 = vadd.f32 %v1446, %v1646
      %v1677 = vadd.f32 %v1447, %v1649
      %v1678 = vadd.f32 %v1448, %v1654
      %v1679 = vadd.f32 %v1449, %v1657
      %v1680 = vadd.f32 %v1450, %v1662
      %v1681 = vadd.f32 %v1451, %v1665
      %v1682 = vadd.f32 %v1452, %v1670
      %v1683 = vadd.f32 %v1453, %v1673
      %vm1684 = vcmask 64512
      %1685 = vst.msk [vmem:[#allocation2] sm:$0xff] %vm1684, %v1676
      %1686 = vst.msk [vmem:[#allocation2 + $0x8] sm:$0xff] %vm1684, %v1677
      %1687 = vst.msk [vmem:[#allocation2 + $0x10] sm:$0xff] %vm1684, %v1678
      %1688 = vst.msk [vmem:[#allocation2 + $0x18] sm:$0xff] %vm1684, %v1679
      %1689 = vst.msk [vmem:[#allocation2 + $0x20] sm:$0xff] %vm1684, %v1680
      %1690 = vst.msk [vmem:[#allocation2 + $0x28] sm:$0xff] %vm1684, %v1681
      %1691 = vst.msk [vmem:[#allocation2 + $0x30] sm:$0xff] %vm1684, %v1682
      %1692 = vst.msk [vmem:[#allocation2 + $0x38] sm:$0xff] %vm1684, %v1683
      %p1693 = scmp.eq.s32.totalorder %s21, 2
      // Predicated region
      $region37: #{unet_down_blk_forward.2} parent=31 // pred_check
        %p1694 = pneg %p1693
      $region38: #{unet_down_blk_forward.2} parent=31 // pred_check_branch
        %1696 = sbr.rel (%p1694) target = $region40
      $region39: #{unet_down_blk_forward.2} parent=31 // pred_region
        %v1697 = vld [vmem:[#allocation2] sm:$0xff]
        %v1698 = vld [vmem:[#allocation2 + $0x8] sm:$0xff]
        %v1699 = vld [vmem:[#allocation2 + $0x10] sm:$0xff]
        %v1700 = vld [vmem:[#allocation2 + $0x18] sm:$0xff]
        %v1701 = vld [vmem:[#allocation2 + $0x20] sm:$0xff]
        %v1702 = vld [vmem:[#allocation2 + $0x28] sm:$0xff]
        %v1703 = vld [vmem:[#allocation2 + $0x30] sm:$0xff]
        %v1704 = vld [vmem:[#allocation2 + $0x38] sm:$0xff]
        %v1705 = vpack.c.bf16 %v1698, %v1697
        %v1706 = vpack.c.bf16 %v1700, %v1699
        %v1707 = vpack.c.bf16 %v1702, %v1701
        %v1708 = vpack.c.bf16 %v1704, %v1703
        %v1713 = vunpack.c.l.b16 %v1705
        %v1714 = vunpack.c.h.b16 %v1705
        %v1715 = vunpack.c.l.b16 %v1706
        %v1716 = vunpack.c.h.b16 %v1706
        %v1717 = vunpack.c.l.b16 %v1707
        %v1718 = vunpack.c.h.b16 %v1707
        %v1719 = vunpack.c.l.b16 %v1708
        %v1720 = vunpack.c.h.b16 %v1708
        %v1721 = vpack.c.b16 %v1713, %v1713
        %v1722 = vpack.c.b16 %v1714, %v1714
        %v1723 = vpack.c.b16 %v1715, %v1715
        %v1724 = vpack.c.b16 %v1716, %v1716
        %v1725 = vpack.c.b16 %v1717, %v1717
        %v1726 = vpack.c.b16 %v1718, %v1718
        %v1727 = vpack.c.b16 %v1719, %v1719
        %v1728 = vpack.c.b16 %v1720, %v1720
        %vm1737 = vcmask 60416
        %1738 = vst.msk [vmem:[%s245] sm:$0xf] %vm1737, %v1721
        %1739 = vst.msk [vmem:[%s245 + $0x4] sm:$0xf] %vm1737, %v1722
        %1740 = vst.msk [vmem:[%s245 + $0x8] sm:$0xf] %vm1737, %v1723
        %1741 = vst.msk [vmem:[%s245 + $0xc] sm:$0xf] %vm1737, %v1724
        %1742 = vst.msk [vmem:[%s245 + $0x10] sm:$0xf] %vm1737, %v1725
        %1743 = vst.msk [vmem:[%s245 + $0x14] sm:$0xf] %vm1737, %v1726
        %1744 = vst.msk [vmem:[%s245 + $0x18] sm:$0xf] %vm1737, %v1727
        %1745 = vst.msk [vmem:[%s245 + $0x1c] sm:$0xf] %vm1737, %v1728
      $region40: #{unet_down_blk_forward.2} parent=31 // pred_fallthru
        _
      %s1746 = smul.u32 %s19, 4
      %s1747 = sadd.s32 %s1746, %s20
      %p1748 = scmp.lt.s32.totalorder %s1747, 7
      %s1749 = scalar_select %p1748, %s1747, 7
      %s1750 = smul.addr %s1749, 8
      %s1751 = smul.addr %s1750, 4
      %s1752 = scalar_lea.vmem %s3, %s1751
      // Predicated region
      $region41: #{unet_down_blk_forward.2} parent=31 // pred_check
        %p1753 = pneg %p136
      $region42: #{unet_down_blk_forward.2} parent=31 // pred_check_branch
        %1755 = sbr.rel (%p1753) target = $region44
      $region43: #{unet_down_blk_forward.2} parent=31 // pred_region
        %s1756 = smul.u32 %s19, 4
        %s1757 = sadd.s32 %s1756, %s20
      $region44: #{unet_down_blk_forward.2} parent=31 // pred_fallthru
        _
    $region32: #{unet_down_blk_forward.2} parent=5 // pred_fallthru
      _
    %p1758 = scmp.le.s32.totalorder 2, %s9
    // Predicated region
    $region45: #{unet_down_blk_forward.2} parent=5 // pred_check
      %p1759 = pneg %p1758
    $region46: #{unet_down_blk_forward.2} parent=5 // pred_check_branch
      %1761 = sbr.rel (%p1759) target = $region48
    $region47: #{unet_down_blk_forward.2} parent=5 // pred_region
      %s1762 = ssub.s32 %s9, 2
      // Predicated region
      $region49: #{unet_down_blk_forward.2} parent=47 // pred_check
        %p1763 = pneg %p142
      $region50: #{unet_down_blk_forward.2} parent=47 // pred_check_branch
        %1765 = sbr.rel (%p1763) target = $region52
      $region51: #{unet_down_blk_forward.2} parent=47 // pred_region
        %s1766 = smul.u32 %s22, 4
        %s1767 = sadd.s32 %s1766, %s23
        %p1768 = scmp.lt.s32.totalorder %s1767, 7
        %s1769 = scalar_select %p1768, %s1767, 7
        %s1770 = smul.addr %s1769, 8
        %s1771 = smul.addr %s1770, 4
        %s1772 = scalar_lea.vmem %s3, %s1771
      $region52: #{unet_down_blk_forward.2} parent=47 // pred_fallthru
        _
    $region48: #{unet_down_blk_forward.2} parent=5 // pred_fallthru
      _
  $region6: #{unet_down_blk_forward.2} parent=0 // loop_footer
    %s13 = sadd.s32 1, %s9
  $region7: #{unet_down_blk_forward.2} parent=0 // loop_footer_branch
    %8 = sbr.rel target = $region3
  $region8: #{unet_down_blk_forward.2} parent=0 // loop_exit
    _

// kernel: unet_down_blk_forward.3
$region0: #{unet_down_blk_forward.3}
  #allocation0 [shape = 'u32[]', space=smem, size = 0x4, offset = 0x4, fixed_abs, tag = 'smem constant byte address 0x4 - core index']
  #allocation1 [shape = 'u32[144,128]{1,0:T(1,128)}', space=vmem, size = 0x12000, scoped, tag = 'internal scratch']
  #allocation2 [shape = 'f32[64,8]{1,0:T(8,128)}', space=vmem, size = 0x8000, scoped, tag = 'scratch operand']
  %s0 = inlined_call_operand.vmem [shape: bf16[12,1,10,10,8], index: 0, kind: input, shape index: {}]
  %s1 = inlined_call_operand.vmem [shape: bf16[3,3,3,8,8], index: 1, kind: input, shape index: {}]
  %s2 = inlined_call_operand.vmem [shape: f32[1,8], index: 2, kind: input, shape index: {}]
  %s3 = inlined_call_operand.vmem [shape: bf16[8,64,8], index: 3, kind: input, shape index: {}]
  %s4 = inlined_call_operand.vmem [shape: bf16[8,64,8], index: 4, kind: output, shape index: {}]
  %s5 = sld [smem:[#allocation0]]
  $region57: #{unet_down_blk_forward.3} parent=0
    _
  %s7 = ssub.s32 1, %s5
  %s8 = scalar_select 0, %s7, %s5
  loop: start=0, step=1, limit=26
  $region2: #{unet_down_blk_forward.3} parent=0 // loop_pre_header
    _
  $region3: #{unet_down_blk_forward.3} parent=0 // loop_header
    %s10 = sphi 0, %s14
    %p11 = scmp.ge.s32.totalorder %s10, 26
    %s17 = sphi 0, %s36
    %s18 = sphi 0, %s32
    %s19 = sphi 0, %s28
    %s20 = sphi 0, %s17
    %s21 = sphi 0, %s18
    %s22 = sphi 0, %s19
    %s23 = sphi 0, %s20
    %s24 = sphi 0, %s21
    %s25 = sphi 0, %s22
    %s45 = sphi 0, %s47
    %s48 = sphi 0, %s45
    %s49 = sphi 0, %s48
    %s65 = sphi 0, %s49
    %s71 = sphi 0, %s73
    %s74 = sphi 0, %s71
    %s75 = sphi 0, %s74
    %s91 = sphi 0, %s75
    %s95 = sphi 0, %s95
    %s97 = sphi 0, %s95
    %s98 = sphi 0, %s97
    %s112 = sphi 0, %s98
    %s122 = sphi 0, %s124
    %s125 = sphi 0, %s122
    %s126 = sphi 0, %s125
    %s142 = sphi 0, %s126
    %s152 = sphi 0, %s154
    %s155 = sphi 0, %s152
    %s156 = sphi 0, %s155
    %s172 = sphi 0, %s156
  $region4: #{unet_down_blk_forward.3} parent=0 // loop_header_branch
    %13 = sbr.rel (%p11) target = $region8
  $region5: #{unet_down_blk_forward.3} parent=0 // loop_body
    %s15 = ssub.s32 %s10, 1
    %s16 = ssub.s32 %s10, 2
    %s26 = sadd.s32 1, %s19
    %p27 = scmp.ge.s32.totalorder %s26, 3
    %s28 = scalar_select %p27, 0, %s26
    %s29 = sadd.s32 1, %s18
    %s30 = scalar_select %p27, %s29, %s18
    %p31 = scmp.ge.s32.totalorder %s30, 4
    %s32 = scalar_select %p31, 0, %s30
    %s33 = sadd.s32 1, %s17
    %s34 = scalar_select %p31, %s33, %s17
    %p35 = scmp.ge.s32.totalorder %s34, 2
    %s36 = scalar_select %p35, 0, %s34
    %s37 = smul.u32 %s17, 6
    %s38 = sadd.s32 %s37, %s18
    %s39 = sadd.s32 %s38, %s19
    %s40 = smul.u32 %s36, 6
    %s41 = sadd.s32 %s40, %s32
    %s42 = sadd.s32 %s41, %s28
    %s43 = ssub.s32 %s39, %s42
    %p44 = scmp.eq.s32.totalorder %s43, 0
    %s46 = sadd.s32 %s45, 1
    %s47 = scalar_select %p44, %s45, %s46
    %p50 = pneg %p44
    %p51 = scmp.eq.s32.totalorder %s10, 23
    %p52 = por %p50, %p51
    %p53 = scmp.ne.s32.totalorder %s45, %s48
    %p54 = scmp.eq.s32.totalorder %s10, 0
    %p55 = por %p53, %p54
    %p56 = scmp.ne.s32.totalorder %s45, %s48
    %p57 = scmp.eq.s32.totalorder %s15, 23
    %p58 = por %p56, %p57
    %p59 = scmp.ne.s32.totalorder %s48, %s49
    %p60 = scmp.eq.s32.totalorder %s15, 0
    %p61 = por %p59, %p60
    %p62 = scmp.ne.s32.totalorder %s48, %s49
    %p63 = scmp.eq.s32.totalorder %s16, 23
    %p64 = por %p62, %p63
    %p66 = scmp.ne.s32.totalorder %s49, %s65
    %p67 = scmp.eq.s32.totalorder %s16, 0
    %p68 = por %p66, %p67
    %s69 = ssub.s32 %s19, %s28
    %p70 = scmp.eq.s32.totalorder %s69, 0
    %s72 = sadd.s32 %s71, 1
    %s73 = scalar_select %p70, %s71, %s72
    %p76 = pneg %p70
    %p77 = scmp.eq.s32.totalorder %s10, 23
    %p78 = por %p76, %p77
    %p79 = scmp.ne.s32.totalorder %s71, %s74
    %p80 = scmp.eq.s32.totalorder %s10, 0
    %p81 = por %p79, %p80
    %p82 = scmp.ne.s32.totalorder %s71, %s74
    %p83 = scmp.eq.s32.totalorder %s15, 23
    %p84 = por %p82, %p83
    %p85 = scmp.ne.s32.totalorder %s74, %s75
    %p86 = scmp.eq.s32.totalorder %s15, 0
    %p87 = por %p85, %p86
    %p88 = scmp.ne.s32.totalorder %s74, %s75
    %p89 = scmp.eq.s32.totalorder %s16, 23
    %p90 = por %p88, %p89
    %p92 = scmp.ne.s32.totalorder %s75, %s91
    %p93 = scmp.eq.s32.totalorder %s16, 0
    %p94 = por %p92, %p93
    %s96 = sadd.s32 %s95, 1
    %p99 = scmp.eq.s32.totalorder %s10, 23
    %p100 = scmp.ne.s32.totalorder %s95, %s97
    %p101 = scmp.eq.s32.totalorder %s10, 0
    %p102 = por %p100, %p101
    %p103 = scmp.ne.s32.totalorder %s95, %s97
    %p104 = scmp.eq.s32.totalorder %s15, 23
    %p105 = por %p103, %p104
    %p106 = scmp.ne.s32.totalorder %s97, %s98
    %p107 = scmp.eq.s32.totalorder %s15, 0
    %p108 = por %p106, %p107
    %p109 = scmp.ne.s32.totalorder %s97, %s98
    %p110 = scmp.eq.s32.totalorder %s16, 23
    %p111 = por %p109, %p110
    %p113 = scmp.ne.s32.totalorder %s98, %s112
    %p114 = scmp.eq.s32.totalorder %s16, 0
    %p115 = por %p113, %p114
    %s116 = smul.u32 %s17, 4
    %s117 = sadd.s32 %s116, %s18
    %s118 = smul.u32 %s36, 4
    %s119 = sadd.s32 %s118, %s32
    %s120 = ssub.s32 %s117, %s119
    %p121 = scmp.eq.s32.totalorder %s120, 0
    %s123 = sadd.s32 %s122, 1
    %s124 = scalar_select %p121, %s122, %s123
    %p127 = pneg %p121
    %p128 = scmp.eq.s32.totalorder %s10, 23
    %p129 = por %p127, %p128
    %p130 = scmp.ne.s32.totalorder %s122, %s125
    %p131 = scmp.eq.s32.totalorder %s10, 0
    %p132 = por %p130, %p131
    %p133 = scmp.ne.s32.totalorder %s122, %s125
    %p134 = scmp.eq.s32.totalorder %s15, 23
    %p135 = por %p133, %p134
    %p136 = scmp.ne.s32.totalorder %s125, %s126
    %p137 = scmp.eq.s32.totalorder %s15, 0
    %p138 = por %p136, %p137
    %p139 = scmp.ne.s32.totalorder %s125, %s126
    %p140 = scmp.eq.s32.totalorder %s16, 23
    %p141 = por %p139, %p140
    %p143 = scmp.ne.s32.totalorder %s126, %s142
    %p144 = scmp.eq.s32.totalorder %s16, 0
    %p145 = por %p143, %p144
    %s146 = smul.u32 %s17, 4
    %s147 = sadd.s32 %s146, %s18
    %s148 = smul.u32 %s36, 4
    %s149 = sadd.s32 %s148, %s32
    %s150 = ssub.s32 %s147, %s149
    %p151 = scmp.eq.s32.totalorder %s150, 0
    %s153 = sadd.s32 %s152, 1
    %s154 = scalar_select %p151, %s152, %s153
    %p157 = pneg %p151
    %p158 = scmp.eq.s32.totalorder %s10, 23
    %p159 = por %p157, %p158
    %p160 = scmp.ne.s32.totalorder %s152, %s155
    %p161 = scmp.eq.s32.totalorder %s10, 0
    %p162 = por %p160, %p161
    %p163 = scmp.ne.s32.totalorder %s152, %s155
    %p164 = scmp.eq.s32.totalorder %s15, 23
    %p165 = por %p163, %p164
    %p166 = scmp.ne.s32.totalorder %s155, %s156
    %p167 = scmp.eq.s32.totalorder %s15, 0
    %p168 = por %p166, %p167
    %p169 = scmp.ne.s32.totalorder %s155, %s156
    %p170 = scmp.eq.s32.totalorder %s16, 23
    %p171 = por %p169, %p170
    %p173 = scmp.ne.s32.totalorder %s156, %s172
    %p174 = scmp.eq.s32.totalorder %s16, 0
    %p175 = por %p173, %p174
    %p176 = scmp.le.s32.totalorder 1, %s10
    %p177 = scmp.lt.s32.totalorder %s10, 25
    %p178 = pnand %p176, %p177
    %p179 = pneg %p178
    // Predicated region
    $region9: #{unet_down_blk_forward.3} parent=5 // pred_check
      _
    $region10: #{unet_down_blk_forward.3} parent=5 // pred_check_branch
      %181 = sbr.rel (%p178) target = $region12
    $region11: #{unet_down_blk_forward.3} parent=5 // pred_region
      %s182 = ssub.s32 %s10, 1
      // Predicated region
      $region13: #{unet_down_blk_forward.3} parent=11 // pred_check
        %p183 = pneg %p108
      $region14: #{unet_down_blk_forward.3} parent=11 // pred_check_branch
        %185 = sbr.rel (%p183) target = $region16
      $region15: #{unet_down_blk_forward.3} parent=11 // pred_region
        _
      $region16: #{unet_down_blk_forward.3} parent=11 // pred_fallthru
        _
    $region12: #{unet_down_blk_forward.3} parent=5 // pred_fallthru
      _
    %p186 = scmp.lt.s32.totalorder %s10, 24
    // Predicated region
    $region17: #{unet_down_blk_forward.3} parent=5 // pred_check
      %p187 = pneg %p186
    $region18: #{unet_down_blk_forward.3} parent=5 // pred_check_branch
      %189 = sbr.rel (%p187) target = $region20
    $region19: #{unet_down_blk_forward.3} parent=5 // pred_region
      // Predicated region
      $region21: #{unet_down_blk_forward.3} parent=19 // pred_check
        %p190 = pneg %p55
      $region22: #{unet_down_blk_forward.3} parent=19 // pred_check_branch
        %192 = sbr.rel (%p190) target = $region24
      $region23: #{unet_down_blk_forward.3} parent=19 // pred_region
        %s193 = smul.u32 %s17, 6
        %s194 = sadd.s32 %s193, %s18
        %s195 = sadd.s32 %s194, %s19
        %p196 = scmp.lt.s32.totalorder %s195, 11
        %s197 = scalar_select %p196, %s195, 11
        %s198 = smul.addr %s197, 20
        %s199 = smul.addr %s198, 4
        %s200 = scalar_lea.vmem %s0, %s199
        %s201 = smul.u32 %s17, 6
        %s202 = sadd.s32 %s201, %s18
        %s203 = sadd.s32 %s202, %s19
      $region24: #{unet_down_blk_forward.3} parent=19 // pred_fallthru
        _
      // Predicated region
      $region25: #{unet_down_blk_forward.3} parent=19 // pred_check
        %p204 = pneg %p81
      $region26: #{unet_down_blk_forward.3} parent=19 // pred_check_branch
        %206 = sbr.rel (%p204) target = $region28
      $region27: #{unet_down_blk_forward.3} parent=19 // pred_region
        %p207 = scmp.lt.s32.totalorder %s19, 2
        %s208 = scalar_select %p207, %s19, 2
        %s209 = smul.addr %s208, 9
        %s210 = smul.addr %s209, 4
        %s211 = scalar_lea.vmem %s1, %s210
      $region28: #{unet_down_blk_forward.3} parent=19 // pred_fallthru
        _
      // Predicated region
      $region29: #{unet_down_blk_forward.3} parent=19 // pred_check
        %p212 = pneg %p132
      $region30: #{unet_down_blk_forward.3} parent=19 // pred_check_branch
        %214 = sbr.rel (%p212) target = $region32
      $region31: #{unet_down_blk_forward.3} parent=19 // pred_region
        %s215 = smul.u32 %s17, 4
        %s216 = sadd.s32 %s215, %s18
        %p217 = scmp.lt.s32.totalorder %s216, 7
        %s218 = scalar_select %p217, %s216, 7
        %s219 = smul.addr %s218, 8
        %s220 = smul.addr %s219, 4
        %s221 = scalar_lea.vmem %s3, %s220
        %s222 = smul.u32 %s17, 4
        %s223 = sadd.s32 %s222, %s18
      $region32: #{unet_down_blk_forward.3} parent=19 // pred_fallthru
        _
    $region20: #{unet_down_blk_forward.3} parent=5 // pred_fallthru
      _
    %p224 = scmp.le.s32.totalorder 1, %s10
    %p225 = scmp.lt.s32.totalorder %s10, 25
    %p226 = pnand %p224, %p225
    %p227 = pneg %p226
    // Predicated region
    $region33: #{unet_down_blk_forward.3} parent=5 // pred_check
      _
    $region34: #{unet_down_blk_forward.3} parent=5 // pred_check_branch
      %229 = sbr.rel (%p226) target = $region36
    $region35: #{unet_down_blk_forward.3} parent=5 // pred_region
      %s230 = ssub.s32 %s10, 1
      %s231 = smul.u32 %s20, 6
      %s232 = sadd.s32 %s231, %s21
      %s233 = sadd.s32 %s232, %s22
      %p234 = scmp.lt.s32.totalorder %s233, 11
      %s235 = scalar_select %p234, %s233, 11
      %s236 = smul.addr %s235, 20
      %s237 = smul.addr %s236, 4
      %s238 = scalar_lea.vmem %s0, %s237
      %p239 = pneg %p61
      %p240 = pneg %p58
      %p241 = scmp.lt.s32.totalorder %s22, 2
      %s242 = scalar_select %p241, %s22, 2
      %s243 = smul.addr %s242, 9
      %s244 = smul.addr %s243, 4
      %s245 = scalar_lea.vmem %s1, %s244
      %p246 = pneg %p87
      %p247 = pneg %p84
      %p248 = pneg %p108
      %p249 = pneg %p105
      %s250 = smul.u32 %s20, 4
      %s251 = sadd.s32 %s250, %s21
      %p252 = scmp.lt.s32.totalorder %s251, 7
      %s253 = scalar_select %p252, %s251, 7
      %s254 = smul.addr %s253, 8
      %s255 = smul.addr %s254, 4
      %s256 = scalar_lea.vmem %s3, %s255
      %p257 = pneg %p138
      %p258 = pneg %p135
      %p259 = pneg %p168
      %p260 = pneg %p165
      %s261 = smul.u32 %s20, 4
      %s262 = sadd.s32 %s261, %s21
      %p263 = scmp.lt.s32.totalorder %s262, 7
      %s264 = scalar_select %p263, %s262, 7
      %s265 = smul.addr %s264, 8
      %s266 = smul.addr %s265, 4
      %s267 = scalar_lea.vmem %s4, %s266
      %s268 = smul.u32 %s20, 6
      %s269 = sadd.s32 %s268, %s21
      %s270 = sadd.s32 %s269, %s22
      %p271 = scmp.lt.s32.totalorder %s270, 11
      %s272 = scalar_select %p271, %s270, 11
      %s273 = smul.addr %s272, 20
      %s274 = smul.addr %s273, 4
      %s275 = scalar_lea.vmem %s0, %s274
      %s276 = smul.u32 %s20, 6
      %s277 = sadd.s32 %s276, %s21
      %s278 = sadd.s32 %s277, %s22
      %p279 = scmp.lt.s32.totalorder %s22, 2
      %s280 = scalar_select %p279, %s22, 2
      %s281 = smul.addr %s280, 9
      %s282 = smul.addr %s281, 4
      %s283 = scalar_lea.vmem %s1, %s282
      %s284 = smul.u32 %s20, 4
      %s285 = sadd.s32 %s284, %s21
      %p286 = scmp.lt.s32.totalorder %s285, 7
      %s287 = scalar_select %p286, %s285, 7
      %s288 = smul.addr %s287, 8
      %s289 = smul.addr %s288, 4
      %s290 = scalar_lea.vmem %s3, %s289
      %s291 = smul.u32 %s20, 4
      %s292 = sadd.s32 %s291, %s21
      %s293 = smul.u32 %s20, 4
      %s294 = sadd.s32 %s293, %s21
      %p295 = scmp.lt.s32.totalorder %s294, 7
      %s296 = scalar_select %p295, %s294, 7
      %s297 = smul.addr %s296, 8
      %s298 = smul.addr %s297, 4
      %s299 = scalar_lea.vmem %s4, %s298
      %s300 = smul.u32 %s20, 4
      %s301 = sadd.s32 %s300, %s21
      %p303 = scmp.eq.s32.totalorder %s22, 0
      // Predicated region
      $region37: #{unet_down_blk_forward.3} parent=35 // pred_check
        %p304 = pneg %p303
      $region38: #{unet_down_blk_forward.3} parent=35 // pred_check_branch
        %306 = sbr.rel (%p304) target = $region40
      $region39: #{unet_down_blk_forward.3} parent=35 // pred_region
        %v307 = vld [vmem:[%s2] sm:$0x1]
        %v309 = vlaneseq
        %v310 = vshrl.u32 %v309, 7
        %v311 = vsub.s32 0, %v310
        %v312 = vrot.slane %v307, %v311
        %v314 = vld [vmem:[%s290] sm:$0xf]
        %v315 = vld [vmem:[%s290 + $0x4] sm:$0xf]
        %v316 = vld [vmem:[%s290 + $0x8] sm:$0xf]
        %v317 = vld [vmem:[%s290 + $0xc] sm:$0xf]
        %v318 = vld [vmem:[%s290 + $0x10] sm:$0xf]
        %v319 = vld [vmem:[%s290 + $0x14] sm:$0xf]
        %v320 = vld [vmem:[%s290 + $0x18] sm:$0xf]
        %v321 = vld [vmem:[%s290 + $0x1c] sm:$0xf]
        %v322 = vunpack.c.l.bf16 %v314
        %v323 = vunpack.c.l.bf16 %v315
        %v324 = vunpack.c.l.bf16 %v316
        %v325 = vunpack.c.l.bf16 %v317
        %v326 = vunpack.c.l.bf16 %v318
        %v327 = vunpack.c.l.bf16 %v319
        %v328 = vunpack.c.l.bf16 %v320
        %v329 = vunpack.c.l.bf16 %v321
        %v330 = vadd.f32 %v312, %v322
        %v331 = vadd.f32 %v312, %v323
        %v332 = vadd.f32 %v312, %v324
        %v333 = vadd.f32 %v312, %v325
        %v334 = vadd.f32 %v312, %v326
        %v335 = vadd.f32 %v312, %v327
        %v336 = vadd.f32 %v312, %v328
        %v337 = vadd.f32 %v312, %v329
        %vm338 = vcmask 64512
        %339 = vst.msk [vmem:[#allocation2] sm:$0xff] %vm338, %v330
        %340 = vst.msk [vmem:[#allocation2 + $0x8] sm:$0xff] %vm338, %v331
        %341 = vst.msk [vmem:[#allocation2 + $0x10] sm:$0xff] %vm338, %v332
        %342 = vst.msk [vmem:[#allocation2 + $0x18] sm:$0xff] %vm338, %v333
        %343 = vst.msk [vmem:[#allocation2 + $0x20] sm:$0xff] %vm338, %v334
        %344 = vst.msk [vmem:[#allocation2 + $0x28] sm:$0xff] %vm338, %v335
        %345 = vst.msk [vmem:[#allocation2 + $0x30] sm:$0xff] %vm338, %v336
        %346 = vst.msk [vmem:[#allocation2 + $0x38] sm:$0xff] %vm338, %v337
      $region40: #{unet_down_blk_forward.3} parent=35 // pred_fallthru
        _
      %v347 = vld [vmem:[#allocation2] sm:$0xff]
      %v348 = vld [vmem:[#allocation2 + $0x8] sm:$0xff]
      %v349 = vld [vmem:[#allocation2 + $0x10] sm:$0xff]
      %v350 = vld [vmem:[#allocation2 + $0x18] sm:$0xff]
      %v351 = vld [vmem:[#allocation2 + $0x20] sm:$0xff]
      %v352 = vld [vmem:[#allocation2 + $0x28] sm:$0xff]
      %v353 = vld [vmem:[#allocation2 + $0x30] sm:$0xff]
      %v354 = vld [vmem:[#allocation2 + $0x38] sm:$0xff]
      %v355 = vld [vmem:[%s275] sm:$0xf]
      %v356 = vld [vmem:[%s275 + $0x8] sm:$0xf]
      %v357 = vld [vmem:[%s275 + $0x10] sm:$0xf]
      %v358 = vld [vmem:[%s275 + $0x18] sm:$0xf]
      %v359 = vld [vmem:[%s275 + $0x20] sm:$0xf]
      %v360 = vld [vmem:[%s275 + $0x28] sm:$0xf]
      %v361 = vld [vmem:[%s275 + $0x30] sm:$0xf]
      %v362 = vld [vmem:[%s275 + $0x38] sm:$0xf]
      %v363 = vld [vmem:[%s283] sm:$0xf]
      %v372 = vunpack.c.l.b16 %v355
      %v373 = vunpack.c.l.b16 %v356
      %v374 = vunpack.c.l.b16 %v357
      %v375 = vunpack.c.l.b16 %v358
      %v376 = vunpack.c.l.b16 %v359
      %v377 = vunpack.c.l.b16 %v360
      %v378 = vunpack.c.l.b16 %v361
      %v379 = vunpack.c.l.b16 %v362
      %v380 = vpack.c.b16 %v373, %v372
      %v381 = vpack.c.b16 %v375, %v374
      %v382 = vpack.c.b16 %v377, %v376
      %v383 = vpack.c.b16 %v379, %v378
      %vm384 = vcmask 64512
      %v386 = vsel %vm384, %v380, 0
      %v389 = vsel %vm384, %v381, 0
      %v392 = vsel %vm384, %v382, 0
      %v395 = vsel %vm384, %v383, 0
      %vm397 = vcmask 1043456
      %v399 = vsel %vm397, %v363, 0
      %401 = vmatprep.subr.bf16.mxu0 0
      %402 = vmatpush1.bf16.msra.mxu0 0
      %403 = vmatprep.subr.bf16.mxu0 0
      %404 = vmatpush1.bf16.msra.mxu0 0
      %405 = vmatprep.subr.bf16.mxu0 0
      %406 = vmatpush1.bf16.msra.mxu0 0
      %407 = vmatprep.subr.bf16.mxu0 0
      %408 = vmatpush1.bf16.msra.mxu0 0
      %409 = vmatprep.subr.bf16.mxu0 0
      %410 = vmatpush1.bf16.msra.mxu0 0
      %411 = vmatprep.subr.bf16.mxu0 0
      %412 = vmatpush1.bf16.msra.mxu0 0
      %413 = vmatprep.subr.bf16.mxu0 0
      %414 = vmatpush1.bf16.msra.mxu0 0
      %415 = vmatprep.subr.bf16.mxu0 0
      %416 = vmatpush1.bf16.msra.mxu0 %v399
      %417 = vmatprep.subr.bf16.mxu0 0
      %418 = vmatpush2.bf16.msra.mxu0 0
      %419 = vmatprep.subr.bf16.mxu0 0
      %420 = vmatpush2.bf16.msra.mxu0 0
      %421 = vmatprep.subr.bf16.mxu0 0
      %422 = vmatpush2.bf16.msra.mxu0 0
      %423 = vmatprep.subr.bf16.mxu0 0
      %424 = vmatpush2.bf16.msra.mxu0 0
      %425 = vmatprep.subr.bf16.mxu0 0
      %426 = vmatpush2.bf16.msra.mxu0 0
      %427 = vmatprep.subr.bf16.mxu0 0
      %428 = vmatpush2.bf16.msra.mxu0 0
      %429 = vmatprep.subr.bf16.mxu0 0
      %430 = vmatpush2.bf16.msra.mxu0 0
      %431 = vmatprep.subr.bf16.mxu0 0
      %432 = vmatpush2.bf16.msra.mxu0 0
      %433 = vmatprep.mubr.bf16.mxu0 0
      %434 = vmatmul.mubr.bf16.gmra.mxu0 %v386
      %v435 = vpop.f32.mrf.mxu0
      %v436 = vadd.f32 0.0, %v435
      %v437 = vpop.f32.mrf.mxu0
      %v438 = vpop.f32.mrf.mxu0
      %v439 = vadd.f32 0.0, %v438
      %v440 = vpop.f32.mrf.mxu0
      %441 = vmatprep.mubr.bf16.mxu0 0
      %442 = vmatmul.mubr.bf16.gmra.mxu0 %v389
      %v443 = vpop.f32.mrf.mxu0
      %v444 = vadd.f32 0.0, %v443
      %v445 = vpop.f32.mrf.mxu0
      %v446 = vpop.f32.mrf.mxu0
      %v447 = vadd.f32 0.0, %v446
      %v448 = vpop.f32.mrf.mxu0
      %449 = vmatprep.mubr.bf16.mxu0 0
      %450 = vmatmul.mubr.bf16.gmra.mxu0 %v392
      %v451 = vpop.f32.mrf.mxu0
      %v452 = vadd.f32 0.0, %v451
      %v453 = vpop.f32.mrf.mxu0
      %v454 = vpop.f32.mrf.mxu0
      %v455 = vadd.f32 0.0, %v454
      %v456 = vpop.f32.mrf.mxu0
      %457 = vmatprep.mubr.bf16.mxu0 0
      %458 = vmatmul.mubr.bf16.gmra.mxu0 %v395
      %v459 = vpop.f32.mrf.mxu0
      %v460 = vadd.f32 0.0, %v459
      %v461 = vpop.f32.mrf.mxu0
      %v462 = vpop.f32.mrf.mxu0
      %v463 = vadd.f32 0.0, %v462
      %v464 = vpop.f32.mrf.mxu0
      %465 = vdwg.mxu0
      %v466 = vadd.f32 %v347, %v436
      %v467 = vadd.f32 %v348, %v439
      %v468 = vadd.f32 %v349, %v444
      %v469 = vadd.f32 %v350, %v447
      %v470 = vadd.f32 %v351, %v452
      %v471 = vadd.f32 %v352, %v455
      %v472 = vadd.f32 %v353, %v460
      %v473 = vadd.f32 %v354, %v463
      %v474 = vld [vmem:[%s275] sm:$0xf]
      %v475 = vld [vmem:[%s275 + $0x4] sm:$0x1]
      %v476 = vld [vmem:[%s275 + $0x8] sm:$0xf]
      %v477 = vld [vmem:[%s275 + $0xc] sm:$0x1]
      %v478 = vld [vmem:[%s275 + $0x10] sm:$0xf]
      %v479 = vld [vmem:[%s275 + $0x14] sm:$0x1]
      %v480 = vld [vmem:[%s275 + $0x18] sm:$0xf]
      %v481 = vld [vmem:[%s275 + $0x1c] sm:$0x1]
      %v482 = vld [vmem:[%s275 + $0x20] sm:$0xf]
      %v483 = vld [vmem:[%s275 + $0x24] sm:$0x1]
      %v484 = vld [vmem:[%s275 + $0x28] sm:$0xf]
      %v485 = vld [vmem:[%s275 + $0x2c] sm:$0x1]
      %v486 = vld [vmem:[%s275 + $0x30] sm:$0xf]
      %v487 = vld [vmem:[%s275 + $0x34] sm:$0x1]
      %v488 = vld [vmem:[%s275 + $0x38] sm:$0xf]
      %v489 = vld [vmem:[%s275 + $0x3c] sm:$0x1]
      %vm490 = vsmask.f32 3328
      %vm491 = vsmask.f32 7440
      %vm492 = vmor %vm490, %vm491
      %v494 = vshrl.u32 %v474, 16
      %v496 = vrot.slane %v494, 4
      %v497 = vshll.u32 %v474, 16
      %v499 = vrot.slane %v497, 5
      %v500 = vor.u32 %v496, %v499
      %v501 = vrot.slane %v500, 4
      %v503 = vshll.u32 %v475, 16
      %v505 = vrot.slane %v503, 5
      %v506 = vsel %vm492, %v501, %v505
      %v508 = vshrl.u32 %v476, 16
      %v510 = vrot.slane %v508, 4
      %v511 = vshll.u32 %v476, 16
      %v513 = vrot.slane %v511, 5
      %v514 = vor.u32 %v510, %v513
      %v515 = vrot.slane %v514, 4
      %v517 = vshll.u32 %v477, 16
      %v519 = vrot.slane %v517, 5
      %v520 = vsel %vm492, %v515, %v519
      %v522 = vshrl.u32 %v478, 16
      %v524 = vrot.slane %v522, 4
      %v525 = vshll.u32 %v478, 16
      %v527 = vrot.slane %v525, 5
      %v528 = vor.u32 %v524, %v527
      %v529 = vrot.slane %v528, 4
      %v531 = vshll.u32 %v479, 16
      %v533 = vrot.slane %v531, 5
      %v534 = vsel %vm492, %v529, %v533
      %v536 = vshrl.u32 %v480, 16
      %v538 = vrot.slane %v536, 4
      %v539 = vshll.u32 %v480, 16
      %v541 = vrot.slane %v539, 5
      %v542 = vor.u32 %v538, %v541
      %v543 = vrot.slane %v542, 4
      %v545 = vshll.u32 %v481, 16
      %v547 = vrot.slane %v545, 5
      %v548 = vsel %vm492, %v543, %v547
      %v550 = vshrl.u32 %v482, 16
      %v552 = vrot.slane %v550, 4
      %v553 = vshll.u32 %v482, 16
      %v555 = vrot.slane %v553, 5
      %v556 = vor.u32 %v552, %v555
      %v557 = vrot.slane %v556, 4
      %v559 = vshll.u32 %v483, 16
      %v561 = vrot.slane %v559, 5
      %v562 = vsel %vm492, %v557, %v561
      %v564 = vshrl.u32 %v484, 16
      %v566 = vrot.slane %v564, 4
      %v567 = vshll.u32 %v484, 16
      %v569 = vrot.slane %v567, 5
      %v570 = vor.u32 %v566, %v569
      %v571 = vrot.slane %v570, 4
      %v573 = vshll.u32 %v485, 16
      %v575 = vrot.slane %v573, 5
      %v576 = vsel %vm492, %v571, %v575
      %v578 = vshrl.u32 %v486, 16
      %v580 = vrot.slane %v578, 4
      %v581 = vshll.u32 %v486, 16
      %v583 = vrot.slane %v581, 5
      %v584 = vor.u32 %v580, %v583
      %v585 = vrot.slane %v584, 4
      %v587 = vshll.u32 %v487, 16
      %v589 = vrot.slane %v587, 5
      %v590 = vsel %vm492, %v585, %v589
      %v592 = vshrl.u32 %v488, 16
      %v594 = vrot.slane %v592, 4
      %v595 = vshll.u32 %v488, 16
      %v597 = vrot.slane %v595, 5
      %v598 = vor.u32 %v594, %v597
      %v599 = vrot.slane %v598, 4
      %v601 = vshll.u32 %v489, 16
      %v603 = vrot.slane %v601, 5
      %v604 = vsel %vm492, %v599, %v603
      %s605 = scalar_lea.vmem %s283, 4
      %v606 = vld [vmem:[%s605] sm:$0xf]
      %v607 = vunpack.c.l.b16 %v506
      %v608 = vunpack.c.l.b16 %v520
      %v609 = vunpack.c.l.b16 %v534
      %v610 = vunpack.c.l.b16 %v548
      %v611 = vunpack.c.l.b16 %v562
      %v612 = vunpack.c.l.b16 %v576
      %v613 = vunpack.c.l.b16 %v590
      %v614 = vunpack.c.l.b16 %v604
      %v615 = vpack.c.b16 %v608, %v607
      %v616 = vpack.c.b16 %v610, %v609
      %v617 = vpack.c.b16 %v612, %v611
      %v618 = vpack.c.b16 %v614, %v613
      %v620 = vsel %vm384, %v615, 0
      %v623 = vsel %vm384, %v616, 0
      %v626 = vsel %vm384, %v617, 0
      %v629 = vsel %vm384, %v618, 0
      %v632 = vsel %vm397, %v606, 0
      %634 = vmatprep.subr.bf16.mxu0 0
      %635 = vmatpush1.bf16.msra.mxu0 0
      %636 = vmatprep.subr.bf16.mxu0 0
      %637 = vmatpush1.bf16.msra.mxu0 0
      %638 = vmatprep.subr.bf16.mxu0 0
      %639 = vmatpush1.bf16.msra.mxu0 0
      %640 = vmatprep.subr.bf16.mxu0 0
      %641 = vmatpush1.bf16.msra.mxu0 0
      %642 = vmatprep.subr.bf16.mxu0 0
      %643 = vmatpush1.bf16.msra.mxu0 0
      %644 = vmatprep.subr.bf16.mxu0 0
      %645 = vmatpush1.bf16.msra.mxu0 0
      %646 = vmatprep.subr.bf16.mxu0 0
      %647 = vmatpush1.bf16.msra.mxu0 0
      %648 = vmatprep.subr.bf16.mxu0 0
      %649 = vmatpush1.bf16.msra.mxu0 %v632
      %650 = vmatprep.subr.bf16.mxu0 0
      %651 = vmatpush2.bf16.msra.mxu0 0
      %652 = vmatprep.subr.bf16.mxu0 0
      %653 = vmatpush2.bf16.msra.mxu0 0
      %654 = vmatprep.subr.bf16.mxu0 0
      %655 = vmatpush2.bf16.msra.mxu0 0
      %656 = vmatprep.subr.bf16.mxu0 0
      %657 = vmatpush2.bf16.msra.mxu0 0
      %658 = vmatprep.subr.bf16.mxu0 0
      %659 = vmatpush2.bf16.msra.mxu0 0
      %660 = vmatprep.subr.bf16.mxu0 0
      %661 = vmatpush2.bf16.msra.mxu0 0
      %662 = vmatprep.subr.bf16.mxu0 0
      %663 = vmatpush2.bf16.msra.mxu0 0
      %664 = vmatprep.subr.bf16.mxu0 0
      %665 = vmatpush2.bf16.msra.mxu0 0
      %666 = vmatprep.mubr.bf16.mxu0 0
      %667 = vmatmul.mubr.bf16.gmra.mxu0 %v620
      %v668 = vpop.f32.mrf.mxu0
      %v669 = vadd.f32 0.0, %v668
      %v670 = vpop.f32.mrf.mxu0
      %v671 = vpop.f32.mrf.mxu0
      %v672 = vadd.f32 0.0, %v671
      %v673 = vpop.f32.mrf.mxu0
      %674 = vmatprep.mubr.bf16.mxu0 0
      %675 = vmatmul.mubr.bf16.gmra.mxu0 %v623
      %v676 = vpop.f32.mrf.mxu0
      %v677 = vadd.f32 0.0, %v676
      %v678 = vpop.f32.mrf.mxu0
      %v679 = vpop.f32.mrf.mxu0
      %v680 = vadd.f32 0.0, %v679
      %v681 = vpop.f32.mrf.mxu0
      %682 = vmatprep.mubr.bf16.mxu0 0
      %683 = vmatmul.mubr.bf16.gmra.mxu0 %v626
      %v684 = vpop.f32.mrf.mxu0
      %v685 = vadd.f32 0.0, %v684
      %v686 = vpop.f32.mrf.mxu0
      %v687 = vpop.f32.mrf.mxu0
      %v688 = vadd.f32 0.0, %v687
      %v689 = vpop.f32.mrf.mxu0
      %690 = vmatprep.mubr.bf16.mxu0 0
      %691 = vmatmul.mubr.bf16.gmra.mxu0 %v629
      %v692 = vpop.f32.mrf.mxu0
      %v693 = vadd.f32 0.0, %v692
      %v694 = vpop.f32.mrf.mxu0
      %v695 = vpop.f32.mrf.mxu0
      %v696 = vadd.f32 0.0, %v695
      %v697 = vpop.f32.mrf.mxu0
      %698 = vdwg.mxu0
      %v699 = vadd.f32 %v466, %v669
      %v700 = vadd.f32 %v467, %v672
      %v701 = vadd.f32 %v468, %v677
      %v702 = vadd.f32 %v469, %v680
      %v703 = vadd.f32 %v470, %v685
      %v704 = vadd.f32 %v471, %v688
      %v705 = vadd.f32 %v472, %v693
      %v706 = vadd.f32 %v473, %v696
      %v707 = vld [vmem:[%s275] sm:$0xe]
      %v708 = vld [vmem:[%s275 + $0x8] sm:$0xe]
      %v709 = vld [vmem:[%s275 + $0x10] sm:$0xe]
      %v710 = vld [vmem:[%s275 + $0x18] sm:$0xe]
      %v711 = vld [vmem:[%s275 + $0x20] sm:$0xe]
      %v712 = vld [vmem:[%s275 + $0x28] sm:$0xe]
      %v713 = vld [vmem:[%s275 + $0x30] sm:$0xe]
      %v714 = vld [vmem:[%s275 + $0x38] sm:$0xe]
      %vm731 = vcmask 1042432
      %vm732 = vcmask 1046532
      %vm733 = vmor %vm731, %vm732
      %v734 = vrot.slane %v707, 5
      %v735 = vrot.slane %v734, 4
      %v736 = vrot.slane %v475, 5
      %v737 = vsel %vm733, %v735, %v736
      %v738 = vrot.slane %v708, 5
      %v739 = vrot.slane %v738, 4
      %v740 = vrot.slane %v477, 5
      %v741 = vsel %vm733, %v739, %v740
      %v742 = vrot.slane %v709, 5
      %v743 = vrot.slane %v742, 4
      %v744 = vrot.slane %v479, 5
      %v745 = vsel %vm733, %v743, %v744
      %v746 = vrot.slane %v710, 5
      %v747 = vrot.slane %v746, 4
      %v748 = vrot.slane %v481, 5
      %v749 = vsel %vm733, %v747, %v748
      %v750 = vrot.slane %v711, 5
      %v751 = vrot.slane %v750, 4
      %v752 = vrot.slane %v483, 5
      %v753 = vsel %vm733, %v751, %v752
      %v754 = vrot.slane %v712, 5
      %v755 = vrot.slane %v754, 4
      %v756 = vrot.slane %v485, 5
      %v757 = vsel %vm733, %v755, %v756
      %v758 = vrot.slane %v713, 5
      %v759 = vrot.slane %v758, 4
      %v760 = vrot.slane %v487, 5
      %v761 = vsel %vm733, %v759, %v760
      %v762 = vrot.slane %v714, 5
      %v763 = vrot.slane %v762, 4
      %v764 = vrot.slane %v489, 5
      %v765 = vsel %vm733, %v763, %v764
      %s766 = scalar_lea.vmem %s283, 8
      %v767 = vld [vmem:[%s766] sm:$0xf]
      %v768 = vunpack.c.l.b16 %v737
      %v769 = vunpack.c.l.b16 %v741
      %v770 = vunpack.c.l.b16 %v745
      %v771 = vunpack.c.l.b16 %v749
      %v772 = vunpack.c.l.b16 %v753
      %v773 = vunpack.c.l.b16 %v757
      %v774 = vunpack.c.l.b16 %v761
      %v775 = vunpack.c.l.b16 %v765
      %v776 = vpack.c.b16 %v769, %v768
      %v777 = vpack.c.b16 %v771, %v770
      %v778 = vpack.c.b16 %v773, %v772
      %v779 = vpack.c.b16 %v775, %v774
      %v781 = vsel %vm384, %v776, 0
      %v784 = vsel %vm384, %v777, 0
      %v787 = vsel %vm384, %v778, 0
      %v790 = vsel %vm384, %v779, 0
      %v793 = vsel %vm397, %v767, 0
      %795 = vmatprep.subr.bf16.mxu0 0
      %796 = vmatpush1.bf16.msra.mxu0 0
      %797 = vmatprep.subr.bf16.mxu0 0
      %798 = vmatpush1.bf16.msra.mxu0 0
      %799 = vmatprep.subr.bf16.mxu0 0
      %800 = vmatpush1.bf16.msra.mxu0 0
      %801 = vmatprep.subr.bf16.mxu0 0
      %802 = vmatpush1.bf16.msra.mxu0 0
      %803 = vmatprep.subr.bf16.mxu0 0
      %804 = vmatpush1.bf16.msra.mxu0 0
      %805 = vmatprep.subr.bf16.mxu0 0
      %806 = vmatpush1.bf16.msra.mxu0 0
      %807 = vmatprep.subr.bf16.mxu0 0
      %808 = vmatpush1.bf16.msra.mxu0 0
      %809 = vmatprep.subr.bf16.mxu0 0
      %810 = vmatpush1.bf16.msra.mxu0 %v793
      %811 = vmatprep.subr.bf16.mxu0 0
      %812 = vmatpush2.bf16.msra.mxu0 0
      %813 = vmatprep.subr.bf16.mxu0 0
      %814 = vmatpush2.bf16.msra.mxu0 0
      %815 = vmatprep.subr.bf16.mxu0 0
      %816 = vmatpush2.bf16.msra.mxu0 0
      %817 = vmatprep.subr.bf16.mxu0 0
      %818 = vmatpush2.bf16.msra.mxu0 0
      %819 = vmatprep.subr.bf16.mxu0 0
      %820 = vmatpush2.bf16.msra.mxu0 0
      %821 = vmatprep.subr.bf16.mxu0 0
      %822 = vmatpush2.bf16.msra.mxu0 0
      %823 = vmatprep.subr.bf16.mxu0 0
      %824 = vmatpush2.bf16.msra.mxu0 0
      %825 = vmatprep.subr.bf16.mxu0 0
      %826 = vmatpush2.bf16.msra.mxu0 0
      %827 = vmatprep.mubr.bf16.mxu0 0
      %828 = vmatmul.mubr.bf16.gmra.mxu0 %v781
      %v829 = vpop.f32.mrf.mxu0
      %v830 = vadd.f32 0.0, %v829
      %v831 = vpop.f32.mrf.mxu0
      %v832 = vpop.f32.mrf.mxu0
      %v833 = vadd.f32 0.0, %v832
      %v834 = vpop.f32.mrf.mxu0
      %835 = vmatprep.mubr.bf16.mxu0 0
      %836 = vmatmul.mubr.bf16.gmra.mxu0 %v784
      %v837 = vpop.f32.mrf.mxu0
      %v838 = vadd.f32 0.0, %v837
      %v839 = vpop.f32.mrf.mxu0
      %v840 = vpop.f32.mrf.mxu0
      %v841 = vadd.f32 0.0, %v840
      %v842 = vpop.f32.mrf.mxu0
      %843 = vmatprep.mubr.bf16.mxu0 0
      %844 = vmatmul.mubr.bf16.gmra.mxu0 %v787
      %v845 = vpop.f32.mrf.mxu0
      %v846 = vadd.f32 0.0, %v845
      %v847 = vpop.f32.mrf.mxu0
      %v848 = vpop.f32.mrf.mxu0
      %v849 = vadd.f32 0.0, %v848
      %v850 = vpop.f32.mrf.mxu0
      %851 = vmatprep.mubr.bf16.mxu0 0
      %852 = vmatmul.mubr.bf16.gmra.mxu0 %v790
      %v853 = vpop.f32.mrf.mxu0
      %v854 = vadd.f32 0.0, %v853
      %v855 = vpop.f32.mrf.mxu0
      %v856 = vpop.f32.mrf.mxu0
      %v857 = vadd.f32 0.0, %v856
      %v858 = vpop.f32.mrf.mxu0
      %859 = vdwg.mxu0
      %v860 = vadd.f32 %v699, %v830
      %v861 = vadd.f32 %v700, %v833
      %v862 = vadd.f32 %v701, %v838
      %v863 = vadd.f32 %v702, %v841
      %v864 = vadd.f32 %v703, %v846
      %v865 = vadd.f32 %v704, %v849
      %v866 = vadd.f32 %v705, %v854
      %v867 = vadd.f32 %v706, %v857
      %s868 = scalar_lea.vmem %s275, 8
      %v869 = vld [vmem:[%s868] sm:$0xf]
      %v870 = vld [vmem:[%s868 + $0x8] sm:$0xf]
      %v871 = vld [vmem:[%s868 + $0x10] sm:$0xf]
      %v872 = vld [vmem:[%s868 + $0x18] sm:$0xf]
      %v873 = vld [vmem:[%s868 + $0x20] sm:$0xf]
      %v874 = vld [vmem:[%s868 + $0x28] sm:$0xf]
      %v875 = vld [vmem:[%s868 + $0x30] sm:$0xf]
      %v876 = vld [vmem:[%s868 + $0x38] sm:$0xf]
      %s877 = scalar_lea.vmem %s283, 12
      %v878 = vld [vmem:[%s877] sm:$0xf]
      %v887 = vunpack.c.l.b16 %v869
      %v888 = vunpack.c.l.b16 %v870
      %v889 = vunpack.c.l.b16 %v871
      %v890 = vunpack.c.l.b16 %v872
      %v891 = vunpack.c.l.b16 %v873
      %v892 = vunpack.c.l.b16 %v874
      %v893 = vunpack.c.l.b16 %v875
      %v894 = vunpack.c.l.b16 %v876
      %v895 = vpack.c.b16 %v888, %v887
      %v896 = vpack.c.b16 %v890, %v889
      %v897 = vpack.c.b16 %v892, %v891
      %v898 = vpack.c.b16 %v894, %v893
      %v900 = vsel %vm384, %v895, 0
      %v903 = vsel %vm384, %v896, 0
      %v906 = vsel %vm384, %v897, 0
      %v909 = vsel %vm384, %v898, 0
      %v912 = vsel %vm397, %v878, 0
      %914 = vmatprep.subr.bf16.mxu0 0
      %915 = vmatpush1.bf16.msra.mxu0 0
      %916 = vmatprep.subr.bf16.mxu0 0
      %917 = vmatpush1.bf16.msra.mxu0 0
      %918 = vmatprep.subr.bf16.mxu0 0
      %919 = vmatpush1.bf16.msra.mxu0 0
      %920 = vmatprep.subr.bf16.mxu0 0
      %921 = vmatpush1.bf16.msra.mxu0 0
      %922 = vmatprep.subr.bf16.mxu0 0
      %923 = vmatpush1.bf16.msra.mxu0 0
      %924 = vmatprep.subr.bf16.mxu0 0
      %925 = vmatpush1.bf16.msra.mxu0 0
      %926 = vmatprep.subr.bf16.mxu0 0
      %927 = vmatpush1.bf16.msra.mxu0 0
      %928 = vmatprep.subr.bf16.mxu0 0
      %929 = vmatpush1.bf16.msra.mxu0 %v912
      %930 = vmatprep.subr.bf16.mxu0 0
      %931 = vmatpush2.bf16.msra.mxu0 0
      %932 = vmatprep.subr.bf16.mxu0 0
      %933 = vmatpush2.bf16.msra.mxu0 0
      %934 = vmatprep.subr.bf16.mxu0 0
      %935 = vmatpush2.bf16.msra.mxu0 0
      %936 = vmatprep.subr.bf16.mxu0 0
      %937 = vmatpush2.bf16.msra.mxu0 0
      %938 = vmatprep.subr.bf16.mxu0 0
      %939 = vmatpush2.bf16.msra.mxu0 0
      %940 = vmatprep.subr.bf16.mxu0 0
      %941 = vmatpush2.bf16.msra.mxu0 0
      %942 = vmatprep.subr.bf16.mxu0 0
      %943 = vmatpush2.bf16.msra.mxu0 0
      %944 = vmatprep.subr.bf16.mxu0 0
      %945 = vmatpush2.bf16.msra.mxu0 0
      %946 = vmatprep.mubr.bf16.mxu0 0
      %947 = vmatmul.mubr.bf16.gmra.mxu0 %v900
      %v948 = vpop.f32.mrf.mxu0
      %v949 = vadd.f32 0.0, %v948
      %v950 = vpop.f32.mrf.mxu0
      %v951 = vpop.f32.mrf.mxu0
      %v952 = vadd.f32 0.0, %v951
      %v953 = vpop.f32.mrf.mxu0
      %954 = vmatprep.mubr.bf16.mxu0 0
      %955 = vmatmul.mubr.bf16.gmra.mxu0 %v903
      %v956 = vpop.f32.mrf.mxu0
      %v957 = vadd.f32 0.0, %v956
      %v958 = vpop.f32.mrf.mxu0
      %v959 = vpop.f32.mrf.mxu0
      %v960 = vadd.f32 0.0, %v959
      %v961 = vpop.f32.mrf.mxu0
      %962 = vmatprep.mubr.bf16.mxu0 0
      %963 = vmatmul.mubr.bf16.gmra.mxu0 %v906
      %v964 = vpop.f32.mrf.mxu0
      %v965 = vadd.f32 0.0, %v964
      %v966 = vpop.f32.mrf.mxu0
      %v967 = vpop.f32.mrf.mxu0
      %v968 = vadd.f32 0.0, %v967
      %v969 = vpop.f32.mrf.mxu0
      %970 = vmatprep.mubr.bf16.mxu0 0
      %971 = vmatmul.mubr.bf16.gmra.mxu0 %v909
      %v972 = vpop.f32.mrf.mxu0
      %v973 = vadd.f32 0.0, %v972
      %v974 = vpop.f32.mrf.mxu0
      %v975 = vpop.f32.mrf.mxu0
      %v976 = vadd.f32 0.0, %v975
      %v977 = vpop.f32.mrf.mxu0
      %978 = vdwg.mxu0
      %v979 = vadd.f32 %v860, %v949
      %v980 = vadd.f32 %v861, %v952
      %v981 = vadd.f32 %v862, %v957
      %v982 = vadd.f32 %v863, %v960
      %v983 = vadd.f32 %v864, %v965
      %v984 = vadd.f32 %v865, %v968
      %v985 = vadd.f32 %v866, %v973
      %v986 = vadd.f32 %v867, %v976
      %v987 = vld [vmem:[%s868] sm:$0xf]
      %v988 = vld [vmem:[%s868 + $0x4] sm:$0x1]
      %v989 = vld [vmem:[%s868 + $0x8] sm:$0xf]
      %v990 = vld [vmem:[%s868 + $0xc] sm:$0x1]
      %v991 = vld [vmem:[%s868 + $0x10] sm:$0xf]
      %v992 = vld [vmem:[%s868 + $0x14] sm:$0x1]
      %v993 = vld [vmem:[%s868 + $0x18] sm:$0xf]
      %v994 = vld [vmem:[%s868 + $0x1c] sm:$0x1]
      %v995 = vld [vmem:[%s868 + $0x20] sm:$0xf]
      %v996 = vld [vmem:[%s868 + $0x24] sm:$0x1]
      %v997 = vld [vmem:[%s868 + $0x28] sm:$0xf]
      %v998 = vld [vmem:[%s868 + $0x2c] sm:$0x1]
      %v999 = vld [vmem:[%s868 + $0x30] sm:$0xf]
      %v1000 = vld [vmem:[%s868 + $0x34] sm:$0x1]
      %v1001 = vld [vmem:[%s868 + $0x38] sm:$0xf]
      %v1002 = vld [vmem:[%s868 + $0x3c] sm:$0x1]
      %v1004 = vshrl.u32 %v987, 16
      %v1006 = vrot.slane %v1004, 4
      %v1007 = vshll.u32 %v987, 16
      %v1009 = vrot.slane %v1007, 5
      %v1010 = vor.u32 %v1006, %v1009
      %v1011 = vrot.slane %v1010, 4
      %v1013 = vshll.u32 %v988, 16
      %v1015 = vrot.slane %v1013, 5
      %v1016 = vsel %vm492, %v1011, %v1015
      %v1018 = vshrl.u32 %v989, 16
      %v1020 = vrot.slane %v1018, 4
      %v1021 = vshll.u32 %v989, 16
      %v1023 = vrot.slane %v1021, 5
      %v1024 = vor.u32 %v1020, %v1023
      %v1025 = vrot.slane %v1024, 4
      %v1027 = vshll.u32 %v990, 16
      %v1029 = vrot.slane %v1027, 5
      %v1030 = vsel %vm492, %v1025, %v1029
      %v1032 = vshrl.u32 %v991, 16
      %v1034 = vrot.slane %v1032, 4
      %v1035 = vshll.u32 %v991, 16
      %v1037 = vrot.slane %v1035, 5
      %v1038 = vor.u32 %v1034, %v1037
      %v1039 = vrot.slane %v1038, 4
      %v1041 = vshll.u32 %v992, 16
      %v1043 = vrot.slane %v1041, 5
      %v1044 = vsel %vm492, %v1039, %v1043
      %v1046 = vshrl.u32 %v993, 16
      %v1048 = vrot.slane %v1046, 4
      %v1049 = vshll.u32 %v993, 16
      %v1051 = vrot.slane %v1049, 5
      %v1052 = vor.u32 %v1048, %v1051
      %v1053 = vrot.slane %v1052, 4
      %v1055 = vshll.u32 %v994, 16
      %v1057 = vrot.slane %v1055, 5
      %v1058 = vsel %vm492, %v1053, %v1057
      %v1060 = vshrl.u32 %v995, 16
      %v1062 = vrot.slane %v1060, 4
      %v1063 = vshll.u32 %v995, 16
      %v1065 = vrot.slane %v1063, 5
      %v1066 = vor.u32 %v1062, %v1065
      %v1067 = vrot.slane %v1066, 4
      %v1069 = vshll.u32 %v996, 16
      %v1071 = vrot.slane %v1069, 5
      %v1072 = vsel %vm492, %v1067, %v1071
      %v1074 = vshrl.u32 %v997, 16
      %v1076 = vrot.slane %v1074, 4
      %v1077 = vshll.u32 %v997, 16
      %v1079 = vrot.slane %v1077, 5
      %v1080 = vor.u32 %v1076, %v1079
      %v1081 = vrot.slane %v1080, 4
      %v1083 = vshll.u32 %v998, 16
      %v1085 = vrot.slane %v1083, 5
      %v1086 = vsel %vm492, %v1081, %v1085
      %v1088 = vshrl.u32 %v999, 16
      %v1090 = vrot.slane %v1088, 4
      %v1091 = vshll.u32 %v999, 16
      %v1093 = vrot.slane %v1091, 5
      %v1094 = vor.u32 %v1090, %v1093
      %v1095 = vrot.slane %v1094, 4
      %v1097 = vshll.u32 %v1000, 16
      %v1099 = vrot.slane %v1097, 5
      %v1100 = vsel %vm492, %v1095, %v1099
      %v1102 = vshrl.u32 %v1001, 16
      %v1104 = vrot.slane %v1102, 4
      %v1105 = vshll.u32 %v1001, 16
      %v1107 = vrot.slane %v1105, 5
      %v1108 = vor.u32 %v1104, %v1107
      %v1109 = vrot.slane %v1108, 4
      %v1111 = vshll.u32 %v1002, 16
      %v1113 = vrot.slane %v1111, 5
      %v1114 = vsel %vm492, %v1109, %v1113
      %s1115 = scalar_lea.vmem %s283, 16
      %v1116 = vld [vmem:[%s1115] sm:$0xf]
      %v1117 = vunpack.c.l.b16 %v1016
      %v1118 = vunpack.c.l.b16 %v1030
      %v1119 = vunpack.c.l.b16 %v1044
      %v1120 = vunpack.c.l.b16 %v1058
      %v1121 = vunpack.c.l.b16 %v1072
      %v1122 = vunpack.c.l.b16 %v1086
      %v1123 = vunpack.c.l.b16 %v1100
      %v1124 = vunpack.c.l.b16 %v1114
      %v1125 = vpack.c.b16 %v1118, %v1117
      %v1126 = vpack.c.b16 %v1120, %v1119
      %v1127 = vpack.c.b16 %v1122, %v1121
      %v1128 = vpack.c.b16 %v1124, %v1123
      %v1130 = vsel %vm384, %v1125, 0
      %v1133 = vsel %vm384, %v1126, 0
      %v1136 = vsel %vm384, %v1127, 0
      %v1139 = vsel %vm384, %v1128, 0
      %v1142 = vsel %vm397, %v1116, 0
      %1144 = vmatprep.subr.bf16.mxu0 0
      %1145 = vmatpush1.bf16.msra.mxu0 0
      %1146 = vmatprep.subr.bf16.mxu0 0
      %1147 = vmatpush1.bf16.msra.mxu0 0
      %1148 = vmatprep.subr.bf16.mxu0 0
      %1149 = vmatpush1.bf16.msra.mxu0 0
      %1150 = vmatprep.subr.bf16.mxu0 0
      %1151 = vmatpush1.bf16.msra.mxu0 0
      %1152 = vmatprep.subr.bf16.mxu0 0
      %1153 = vmatpush1.bf16.msra.mxu0 0
      %1154 = vmatprep.subr.bf16.mxu0 0
      %1155 = vmatpush1.bf16.msra.mxu0 0
      %1156 = vmatprep.subr.bf16.mxu0 0
      %1157 = vmatpush1.bf16.msra.mxu0 0
      %1158 = vmatprep.subr.bf16.mxu0 0
      %1159 = vmatpush1.bf16.msra.mxu0 %v1142
      %1160 = vmatprep.subr.bf16.mxu0 0
      %1161 = vmatpush2.bf16.msra.mxu0 0
      %1162 = vmatprep.subr.bf16.mxu0 0
      %1163 = vmatpush2.bf16.msra.mxu0 0
      %1164 = vmatprep.subr.bf16.mxu0 0
      %1165 = vmatpush2.bf16.msra.mxu0 0
      %1166 = vmatprep.subr.bf16.mxu0 0
      %1167 = vmatpush2.bf16.msra.mxu0 0
      %1168 = vmatprep.subr.bf16.mxu0 0
      %1169 = vmatpush2.bf16.msra.mxu0 0
      %1170 = vmatprep.subr.bf16.mxu0 0
      %1171 = vmatpush2.bf16.msra.mxu0 0
      %1172 = vmatprep.subr.bf16.mxu0 0
      %1173 = vmatpush2.bf16.msra.mxu0 0
      %1174 = vmatprep.subr.bf16.mxu0 0
      %1175 = vmatpush2.bf16.msra.mxu0 0
      %1176 = vmatprep.mubr.bf16.mxu0 0
      %1177 = vmatmul.mubr.bf16.gmra.mxu0 %v1130
      %v1178 = vpop.f32.mrf.mxu0
      %v1179 = vadd.f32 0.0, %v1178
      %v1180 = vpop.f32.mrf.mxu0
      %v1181 = vpop.f32.mrf.mxu0
      %v1182 = vadd.f32 0.0, %v1181
      %v1183 = vpop.f32.mrf.mxu0
      %1184 = vmatprep.mubr.bf16.mxu0 0
      %1185 = vmatmul.mubr.bf16.gmra.mxu0 %v1133
      %v1186 = vpop.f32.mrf.mxu0
      %v1187 = vadd.f32 0.0, %v1186
      %v1188 = vpop.f32.mrf.mxu0
      %v1189 = vpop.f32.mrf.mxu0
      %v1190 = vadd.f32 0.0, %v1189
      %v1191 = vpop.f32.mrf.mxu0
      %1192 = vmatprep.mubr.bf16.mxu0 0
      %1193 = vmatmul.mubr.bf16.gmra.mxu0 %v1136
      %v1194 = vpop.f32.mrf.mxu0
      %v1195 = vadd.f32 0.0, %v1194
      %v1196 = vpop.f32.mrf.mxu0
      %v1197 = vpop.f32.mrf.mxu0
      %v1198 = vadd.f32 0.0, %v1197
      %v1199 = vpop.f32.mrf.mxu0
      %1200 = vmatprep.mubr.bf16.mxu0 0
      %1201 = vmatmul.mubr.bf16.gmra.mxu0 %v1139
      %v1202 = vpop.f32.mrf.mxu0
      %v1203 = vadd.f32 0.0, %v1202
      %v1204 = vpop.f32.mrf.mxu0
      %v1205 = vpop.f32.mrf.mxu0
      %v1206 = vadd.f32 0.0, %v1205
      %v1207 = vpop.f32.mrf.mxu0
      %1208 = vdwg.mxu0
      %v1209 = vadd.f32 %v979, %v1179
      %v1210 = vadd.f32 %v980, %v1182
      %v1211 = vadd.f32 %v981, %v1187
      %v1212 = vadd.f32 %v982, %v1190
      %v1213 = vadd.f32 %v983, %v1195
      %v1214 = vadd.f32 %v984, %v1198
      %v1215 = vadd.f32 %v985, %v1203
      %v1216 = vadd.f32 %v986, %v1206
      %v1217 = vld [vmem:[%s868] sm:$0xe]
      %v1218 = vld [vmem:[%s868 + $0x8] sm:$0xe]
      %v1219 = vld [vmem:[%s868 + $0x10] sm:$0xe]
      %v1220 = vld [vmem:[%s868 + $0x18] sm:$0xe]
      %v1221 = vld [vmem:[%s868 + $0x20] sm:$0xe]
      %v1222 = vld [vmem:[%s868 + $0x28] sm:$0xe]
      %v1223 = vld [vmem:[%s868 + $0x30] sm:$0xe]
      %v1224 = vld [vmem:[%s868 + $0x38] sm:$0xe]
      %v1241 = vrot.slane %v1217, 5
      %v1242 = vrot.slane %v1241, 4
      %v1243 = vrot.slane %v988, 5
      %v1244 = vsel %vm733, %v1242, %v1243
      %v1245 = vrot.slane %v1218, 5
      %v1246 = vrot.slane %v1245, 4
      %v1247 = vrot.slane %v990, 5
      %v1248 = vsel %vm733, %v1246, %v1247
      %v1249 = vrot.slane %v1219, 5
      %v1250 = vrot.slane %v1249, 4
      %v1251 = vrot.slane %v992, 5
      %v1252 = vsel %vm733, %v1250, %v1251
      %v1253 = vrot.slane %v1220, 5
      %v1254 = vrot.slane %v1253, 4
      %v1255 = vrot.slane %v994, 5
      %v1256 = vsel %vm733, %v1254, %v1255
      %v1257 = vrot.slane %v1221, 5
      %v1258 = vrot.slane %v1257, 4
      %v1259 = vrot.slane %v996, 5
      %v1260 = vsel %vm733, %v1258, %v1259
      %v1261 = vrot.slane %v1222, 5
      %v1262 = vrot.slane %v1261, 4
      %v1263 = vrot.slane %v998, 5
      %v1264 = vsel %vm733, %v1262, %v1263
      %v1265 = vrot.slane %v1223, 5
      %v1266 = vrot.slane %v1265, 4
      %v1267 = vrot.slane %v1000, 5
      %v1268 = vsel %vm733, %v1266, %v1267
      %v1269 = vrot.slane %v1224, 5
      %v1270 = vrot.slane %v1269, 4
      %v1271 = vrot.slane %v1002, 5
      %v1272 = vsel %vm733, %v1270, %v1271
      %s1273 = scalar_lea.vmem %s283, 20
      %v1274 = vld [vmem:[%s1273] sm:$0xf]
      %v1275 = vunpack.c.l.b16 %v1244
      %v1276 = vunpack.c.l.b16 %v1248
      %v1277 = vunpack.c.l.b16 %v1252
      %v1278 = vunpack.c.l.b16 %v1256
      %v1279 = vunpack.c.l.b16 %v1260
      %v1280 = vunpack.c.l.b16 %v1264
      %v1281 = vunpack.c.l.b16 %v1268
      %v1282 = vunpack.c.l.b16 %v1272
      %v1283 = vpack.c.b16 %v1276, %v1275
      %v1284 = vpack.c.b16 %v1278, %v1277
      %v1285 = vpack.c.b16 %v1280, %v1279
      %v1286 = vpack.c.b16 %v1282, %v1281
      %v1288 = vsel %vm384, %v1283, 0
      %v1291 = vsel %vm384, %v1284, 0
      %v1294 = vsel %vm384, %v1285, 0
      %v1297 = vsel %vm384, %v1286, 0
      %v1300 = vsel %vm397, %v1274, 0
      %1302 = vmatprep.subr.bf16.mxu0 0
      %1303 = vmatpush1.bf16.msra.mxu0 0
      %1304 = vmatprep.subr.bf16.mxu0 0
      %1305 = vmatpush1.bf16.msra.mxu0 0
      %1306 = vmatprep.subr.bf16.mxu0 0
      %1307 = vmatpush1.bf16.msra.mxu0 0
      %1308 = vmatprep.subr.bf16.mxu0 0
      %1309 = vmatpush1.bf16.msra.mxu0 0
      %1310 = vmatprep.subr.bf16.mxu0 0
      %1311 = vmatpush1.bf16.msra.mxu0 0
      %1312 = vmatprep.subr.bf16.mxu0 0
      %1313 = vmatpush1.bf16.msra.mxu0 0
      %1314 = vmatprep.subr.bf16.mxu0 0
      %1315 = vmatpush1.bf16.msra.mxu0 0
      %1316 = vmatprep.subr.bf16.mxu0 0
      %1317 = vmatpush1.bf16.msra.mxu0 %v1300
      %1318 = vmatprep.subr.bf16.mxu0 0
      %1319 = vmatpush2.bf16.msra.mxu0 0
      %1320 = vmatprep.subr.bf16.mxu0 0
      %1321 = vmatpush2.bf16.msra.mxu0 0
      %1322 = vmatprep.subr.bf16.mxu0 0
      %1323 = vmatpush2.bf16.msra.mxu0 0
      %1324 = vmatprep.subr.bf16.mxu0 0
      %1325 = vmatpush2.bf16.msra.mxu0 0
      %1326 = vmatprep.subr.bf16.mxu0 0
      %1327 = vmatpush2.bf16.msra.mxu0 0
      %1328 = vmatprep.subr.bf16.mxu0 0
      %1329 = vmatpush2.bf16.msra.mxu0 0
      %1330 = vmatprep.subr.bf16.mxu0 0
      %1331 = vmatpush2.bf16.msra.mxu0 0
      %1332 = vmatprep.subr.bf16.mxu0 0
      %1333 = vmatpush2.bf16.msra.mxu0 0
      %1334 = vmatprep.mubr.bf16.mxu0 0
      %1335 = vmatmul.mubr.bf16.gmra.mxu0 %v1288
      %v1336 = vpop.f32.mrf.mxu0
      %v1337 = vadd.f32 0.0, %v1336
      %v1338 = vpop.f32.mrf.mxu0
      %v1339 = vpop.f32.mrf.mxu0
      %v1340 = vadd.f32 0.0, %v1339
      %v1341 = vpop.f32.mrf.mxu0
      %1342 = vmatprep.mubr.bf16.mxu0 0
      %1343 = vmatmul.mubr.bf16.gmra.mxu0 %v1291
      %v1344 = vpop.f32.mrf.mxu0
      %v1345 = vadd.f32 0.0, %v1344
      %v1346 = vpop.f32.mrf.mxu0
      %v1347 = vpop.f32.mrf.mxu0
      %v1348 = vadd.f32 0.0, %v1347
      %v1349 = vpop.f32.mrf.mxu0
      %1350 = vmatprep.mubr.bf16.mxu0 0
      %1351 = vmatmul.mubr.bf16.gmra.mxu0 %v1294
      %v1352 = vpop.f32.mrf.mxu0
      %v1353 = vadd.f32 0.0, %v1352
      %v1354 = vpop.f32.mrf.mxu0
      %v1355 = vpop.f32.mrf.mxu0
      %v1356 = vadd.f32 0.0, %v1355
      %v1357 = vpop.f32.mrf.mxu0
      %1358 = vmatprep.mubr.bf16.mxu0 0
      %1359 = vmatmul.mubr.bf16.gmra.mxu0 %v1297
      %v1360 = vpop.f32.mrf.mxu0
      %v1361 = vadd.f32 0.0, %v1360
      %v1362 = vpop.f32.mrf.mxu0
      %v1363 = vpop.f32.mrf.mxu0
      %v1364 = vadd.f32 0.0, %v1363
      %v1365 = vpop.f32.mrf.mxu0
      %1366 = vdwg.mxu0
      %v1367 = vadd.f32 %v1209, %v1337
      %v1368 = vadd.f32 %v1210, %v1340
      %v1369 = vadd.f32 %v1211, %v1345
      %v1370 = vadd.f32 %v1212, %v1348
      %v1371 = vadd.f32 %v1213, %v1353
      %v1372 = vadd.f32 %v1214, %v1356
      %v1373 = vadd.f32 %v1215, %v1361
      %v1374 = vadd.f32 %v1216, %v1364
      %s1375 = scalar_lea.vmem %s275, 16
      %v1376 = vld [vmem:[%s1375] sm:$0xf]
      %v1377 = vld [vmem:[%s1375 + $0x8] sm:$0xf]
      %v1378 = vld [vmem:[%s1375 + $0x10] sm:$0xf]
      %v1379 = vld [vmem:[%s1375 + $0x18] sm:$0xf]
      %v1380 = vld [vmem:[%s1375 + $0x20] sm:$0xf]
      %v1381 = vld [vmem:[%s1375 + $0x28] sm:$0xf]
      %v1382 = vld [vmem:[%s1375 + $0x30] sm:$0xf]
      %v1383 = vld [vmem:[%s1375 + $0x38] sm:$0xf]
      %s1384 = scalar_lea.vmem %s283, 24
      %v1385 = vld [vmem:[%s1384] sm:$0xf]
      %v1394 = vunpack.c.l.b16 %v1376
      %v1395 = vunpack.c.l.b16 %v1377
      %v1396 = vunpack.c.l.b16 %v1378
      %v1397 = vunpack.c.l.b16 %v1379
      %v1398 = vunpack.c.l.b16 %v1380
      %v1399 = vunpack.c.l.b16 %v1381
      %v1400 = vunpack.c.l.b16 %v1382
      %v1401 = vunpack.c.l.b16 %v1383
      %v1402 = vpack.c.b16 %v1395, %v1394
      %v1403 = vpack.c.b16 %v1397, %v1396
      %v1404 = vpack.c.b16 %v1399, %v1398
      %v1405 = vpack.c.b16 %v1401, %v1400
      %v1407 = vsel %vm384, %v1402, 0
      %v1410 = vsel %vm384, %v1403, 0
      %v1413 = vsel %vm384, %v1404, 0
      %v1416 = vsel %vm384, %v1405, 0
      %v1419 = vsel %vm397, %v1385, 0
      %1421 = vmatprep.subr.bf16.mxu0 0
      %1422 = vmatpush1.bf16.msra.mxu0 0
      %1423 = vmatprep.subr.bf16.mxu0 0
      %1424 = vmatpush1.bf16.msra.mxu0 0
      %1425 = vmatprep.subr.bf16.mxu0 0
      %1426 = vmatpush1.bf16.msra.mxu0 0
      %1427 = vmatprep.subr.bf16.mxu0 0
      %1428 = vmatpush1.bf16.msra.mxu0 0
      %1429 = vmatprep.subr.bf16.mxu0 0
      %1430 = vmatpush1.bf16.msra.mxu0 0
      %1431 = vmatprep.subr.bf16.mxu0 0
      %1432 = vmatpush1.bf16.msra.mxu0 0
      %1433 = vmatprep.subr.bf16.mxu0 0
      %1434 = vmatpush1.bf16.msra.mxu0 0
      %1435 = vmatprep.subr.bf16.mxu0 0
      %1436 = vmatpush1.bf16.msra.mxu0 %v1419
      %1437 = vmatprep.subr.bf16.mxu0 0
      %1438 = vmatpush2.bf16.msra.mxu0 0
      %1439 = vmatprep.subr.bf16.mxu0 0
      %1440 = vmatpush2.bf16.msra.mxu0 0
      %1441 = vmatprep.subr.bf16.mxu0 0
      %1442 = vmatpush2.bf16.msra.mxu0 0
      %1443 = vmatprep.subr.bf16.mxu0 0
      %1444 = vmatpush2.bf16.msra.mxu0 0
      %1445 = vmatprep.subr.bf16.mxu0 0
      %1446 = vmatpush2.bf16.msra.mxu0 0
      %1447 = vmatprep.subr.bf16.mxu0 0
      %1448 = vmatpush2.bf16.msra.mxu0 0
      %1449 = vmatprep.subr.bf16.mxu0 0
      %1450 = vmatpush2.bf16.msra.mxu0 0
      %1451 = vmatprep.subr.bf16.mxu0 0
      %1452 = vmatpush2.bf16.msra.mxu0 0
      %1453 = vmatprep.mubr.bf16.mxu0 0
      %1454 = vmatmul.mubr.bf16.gmra.mxu0 %v1407
      %v1455 = vpop.f32.mrf.mxu0
      %v1456 = vadd.f32 0.0, %v1455
      %v1457 = vpop.f32.mrf.mxu0
      %v1458 = vpop.f32.mrf.mxu0
      %v1459 = vadd.f32 0.0, %v1458
      %v1460 = vpop.f32.mrf.mxu0
      %1461 = vmatprep.mubr.bf16.mxu0 0
      %1462 = vmatmul.mubr.bf16.gmra.mxu0 %v1410
      %v1463 = vpop.f32.mrf.mxu0
      %v1464 = vadd.f32 0.0, %v1463
      %v1465 = vpop.f32.mrf.mxu0
      %v1466 = vpop.f32.mrf.mxu0
      %v1467 = vadd.f32 0.0, %v1466
      %v1468 = vpop.f32.mrf.mxu0
      %1469 = vmatprep.mubr.bf16.mxu0 0
      %1470 = vmatmul.mubr.bf16.gmra.mxu0 %v1413
      %v1471 = vpop.f32.mrf.mxu0
      %v1472 = vadd.f32 0.0, %v1471
      %v1473 = vpop.f32.mrf.mxu0
      %v1474 = vpop.f32.mrf.mxu0
      %v1475 = vadd.f32 0.0, %v1474
      %v1476 = vpop.f32.mrf.mxu0
      %1477 = vmatprep.mubr.bf16.mxu0 0
      %1478 = vmatmul.mubr.bf16.gmra.mxu0 %v1416
      %v1479 = vpop.f32.mrf.mxu0
      %v1480 = vadd.f32 0.0, %v1479
      %v1481 = vpop.f32.mrf.mxu0
      %v1482 = vpop.f32.mrf.mxu0
      %v1483 = vadd.f32 0.0, %v1482
      %v1484 = vpop.f32.mrf.mxu0
      %1485 = vdwg.mxu0
      %v1486 = vadd.f32 %v1367, %v1456
      %v1487 = vadd.f32 %v1368, %v1459
      %v1488 = vadd.f32 %v1369, %v1464
      %v1489 = vadd.f32 %v1370, %v1467
      %v1490 = vadd.f32 %v1371, %v1472
      %v1491 = vadd.f32 %v1372, %v1475
      %v1492 = vadd.f32 %v1373, %v1480
      %v1493 = vadd.f32 %v1374, %v1483
      %v1494 = vld [vmem:[%s1375] sm:$0xf]
      %v1495 = vld [vmem:[%s1375 + $0x4] sm:$0x1]
      %v1496 = vld [vmem:[%s1375 + $0x8] sm:$0xf]
      %v1497 = vld [vmem:[%s1375 + $0xc] sm:$0x1]
      %v1498 = vld [vmem:[%s1375 + $0x10] sm:$0xf]
      %v1499 = vld [vmem:[%s1375 + $0x14] sm:$0x1]
      %v1500 = vld [vmem:[%s1375 + $0x18] sm:$0xf]
      %v1501 = vld [vmem:[%s1375 + $0x1c] sm:$0x1]
      %v1502 = vld [vmem:[%s1375 + $0x20] sm:$0xf]
      %v1503 = vld [vmem:[%s1375 + $0x24] sm:$0x1]
      %v1504 = vld [vmem:[%s1375 + $0x28] sm:$0xf]
      %v1505 = vld [vmem:[%s1375 + $0x2c] sm:$0x1]
      %v1506 = vld [vmem:[%s1375 + $0x30] sm:$0xf]
      %v1507 = vld [vmem:[%s1375 + $0x34] sm:$0x1]
      %v1508 = vld [vmem:[%s1375 + $0x38] sm:$0xf]
      %v1509 = vld [vmem:[%s1375 + $0x3c] sm:$0x1]
      %v1511 = vshrl.u32 %v1494, 16
      %v1513 = vrot.slane %v1511, 4
      %v1514 = vshll.u32 %v1494, 16
      %v1516 = vrot.slane %v1514, 5
      %v1517 = vor.u32 %v1513, %v1516
      %v1518 = vrot.slane %v1517, 4
      %v1520 = vshll.u32 %v1495, 16
      %v1522 = vrot.slane %v1520, 5
      %v1523 = vsel %vm492, %v1518, %v1522
      %v1525 = vshrl.u32 %v1496, 16
      %v1527 = vrot.slane %v1525, 4
      %v1528 = vshll.u32 %v1496, 16
      %v1530 = vrot.slane %v1528, 5
      %v1531 = vor.u32 %v1527, %v1530
      %v1532 = vrot.slane %v1531, 4
      %v1534 = vshll.u32 %v1497, 16
      %v1536 = vrot.slane %v1534, 5
      %v1537 = vsel %vm492, %v1532, %v1536
      %v1539 = vshrl.u32 %v1498, 16
      %v1541 = vrot.slane %v1539, 4
      %v1542 = vshll.u32 %v1498, 16
      %v1544 = vrot.slane %v1542, 5
      %v1545 = vor.u32 %v1541, %v1544
      %v1546 = vrot.slane %v1545, 4
      %v1548 = vshll.u32 %v1499, 16
      %v1550 = vrot.slane %v1548, 5
      %v1551 = vsel %vm492, %v1546, %v1550
      %v1553 = vshrl.u32 %v1500, 16
      %v1555 = vrot.slane %v1553, 4
      %v1556 = vshll.u32 %v1500, 16
      %v1558 = vrot.slane %v1556, 5
      %v1559 = vor.u32 %v1555, %v1558
      %v1560 = vrot.slane %v1559, 4
      %v1562 = vshll.u32 %v1501, 16
      %v1564 = vrot.slane %v1562, 5
      %v1565 = vsel %vm492, %v1560, %v1564
      %v1567 = vshrl.u32 %v1502, 16
      %v1569 = vrot.slane %v1567, 4
      %v1570 = vshll.u32 %v1502, 16
      %v1572 = vrot.slane %v1570, 5
      %v1573 = vor.u32 %v1569, %v1572
      %v1574 = vrot.slane %v1573, 4
      %v1576 = vshll.u32 %v1503, 16
      %v1578 = vrot.slane %v1576, 5
      %v1579 = vsel %vm492, %v1574, %v1578
      %v1581 = vshrl.u32 %v1504, 16
      %v1583 = vrot.slane %v1581, 4
      %v1584 = vshll.u32 %v1504, 16
      %v1586 = vrot.slane %v1584, 5
      %v1587 = vor.u32 %v1583, %v1586
      %v1588 = vrot.slane %v1587, 4
      %v1590 = vshll.u32 %v1505, 16
      %v1592 = vrot.slane %v1590, 5
      %v1593 = vsel %vm492, %v1588, %v1592
      %v1595 = vshrl.u32 %v1506, 16
      %v1597 = vrot.slane %v1595, 4
      %v1598 = vshll.u32 %v1506, 16
      %v1600 = vrot.slane %v1598, 5
      %v1601 = vor.u32 %v1597, %v1600
      %v1602 = vrot.slane %v1601, 4
      %v1604 = vshll.u32 %v1507, 16
      %v1606 = vrot.slane %v1604, 5
      %v1607 = vsel %vm492, %v1602, %v1606
      %v1609 = vshrl.u32 %v1508, 16
      %v1611 = vrot.slane %v1609, 4
      %v1612 = vshll.u32 %v1508, 16
      %v1614 = vrot.slane %v1612, 5
      %v1615 = vor.u32 %v1611, %v1614
      %v1616 = vrot.slane %v1615, 4
      %v1618 = vshll.u32 %v1509, 16
      %v1620 = vrot.slane %v1618, 5
      %v1621 = vsel %vm492, %v1616, %v1620
      %s1622 = scalar_lea.vmem %s283, 28
      %v1623 = vld [vmem:[%s1622] sm:$0xf]
      %v1624 = vunpack.c.l.b16 %v1523
      %v1625 = vunpack.c.l.b16 %v1537
      %v1626 = vunpack.c.l.b16 %v1551
      %v1627 = vunpack.c.l.b16 %v1565
      %v1628 = vunpack.c.l.b16 %v1579
      %v1629 = vunpack.c.l.b16 %v1593
      %v1630 = vunpack.c.l.b16 %v1607
      %v1631 = vunpack.c.l.b16 %v1621
      %v1632 = vpack.c.b16 %v1625, %v1624
      %v1633 = vpack.c.b16 %v1627, %v1626
      %v1634 = vpack.c.b16 %v1629, %v1628
      %v1635 = vpack.c.b16 %v1631, %v1630
      %v1637 = vsel %vm384, %v1632, 0
      %v1640 = vsel %vm384, %v1633, 0
      %v1643 = vsel %vm384, %v1634, 0
      %v1646 = vsel %vm384, %v1635, 0
      %v1649 = vsel %vm397, %v1623, 0
      %1651 = vmatprep.subr.bf16.mxu0 0
      %1652 = vmatpush1.bf16.msra.mxu0 0
      %1653 = vmatprep.subr.bf16.mxu0 0
      %1654 = vmatpush1.bf16.msra.mxu0 0
      %1655 = vmatprep.subr.bf16.mxu0 0
      %1656 = vmatpush1.bf16.msra.mxu0 0
      %1657 = vmatprep.subr.bf16.mxu0 0
      %1658 = vmatpush1.bf16.msra.mxu0 0
      %1659 = vmatprep.subr.bf16.mxu0 0
      %1660 = vmatpush1.bf16.msra.mxu0 0
      %1661 = vmatprep.subr.bf16.mxu0 0
      %1662 = vmatpush1.bf16.msra.mxu0 0
      %1663 = vmatprep.subr.bf16.mxu0 0
      %1664 = vmatpush1.bf16.msra.mxu0 0
      %1665 = vmatprep.subr.bf16.mxu0 0
      %1666 = vmatpush1.bf16.msra.mxu0 %v1649
      %1667 = vmatprep.subr.bf16.mxu0 0
      %1668 = vmatpush2.bf16.msra.mxu0 0
      %1669 = vmatprep.subr.bf16.mxu0 0
      %1670 = vmatpush2.bf16.msra.mxu0 0
      %1671 = vmatprep.subr.bf16.mxu0 0
      %1672 = vmatpush2.bf16.msra.mxu0 0
      %1673 = vmatprep.subr.bf16.mxu0 0
      %1674 = vmatpush2.bf16.msra.mxu0 0
      %1675 = vmatprep.subr.bf16.mxu0 0
      %1676 = vmatpush2.bf16.msra.mxu0 0
      %1677 = vmatprep.subr.bf16.mxu0 0
      %1678 = vmatpush2.bf16.msra.mxu0 0
      %1679 = vmatprep.subr.bf16.mxu0 0
      %1680 = vmatpush2.bf16.msra.mxu0 0
      %1681 = vmatprep.subr.bf16.mxu0 0
      %1682 = vmatpush2.bf16.msra.mxu0 0
      %1683 = vmatprep.mubr.bf16.mxu0 0
      %1684 = vmatmul.mubr.bf16.gmra.mxu0 %v1637
      %v1685 = vpop.f32.mrf.mxu0
      %v1686 = vadd.f32 0.0, %v1685
      %v1687 = vpop.f32.mrf.mxu0
      %v1688 = vpop.f32.mrf.mxu0
      %v1689 = vadd.f32 0.0, %v1688
      %v1690 = vpop.f32.mrf.mxu0
      %1691 = vmatprep.mubr.bf16.mxu0 0
      %1692 = vmatmul.mubr.bf16.gmra.mxu0 %v1640
      %v1693 = vpop.f32.mrf.mxu0
      %v1694 = vadd.f32 0.0, %v1693
      %v1695 = vpop.f32.mrf.mxu0
      %v1696 = vpop.f32.mrf.mxu0
      %v1697 = vadd.f32 0.0, %v1696
      %v1698 = vpop.f32.mrf.mxu0
      %1699 = vmatprep.mubr.bf16.mxu0 0
      %1700 = vmatmul.mubr.bf16.gmra.mxu0 %v1643
      %v1701 = vpop.f32.mrf.mxu0
      %v1702 = vadd.f32 0.0, %v1701
      %v1703 = vpop.f32.mrf.mxu0
      %v1704 = vpop.f32.mrf.mxu0
      %v1705 = vadd.f32 0.0, %v1704
      %v1706 = vpop.f32.mrf.mxu0
      %1707 = vmatprep.mubr.bf16.mxu0 0
      %1708 = vmatmul.mubr.bf16.gmra.mxu0 %v1646
      %v1709 = vpop.f32.mrf.mxu0
      %v1710 = vadd.f32 0.0, %v1709
      %v1711 = vpop.f32.mrf.mxu0
      %v1712 = vpop.f32.mrf.mxu0
      %v1713 = vadd.f32 0.0, %v1712
      %v1714 = vpop.f32.mrf.mxu0
      %1715 = vdwg.mxu0
      %v1716 = vadd.f32 %v1486, %v1686
      %v1717 = vadd.f32 %v1487, %v1689
      %v1718 = vadd.f32 %v1488, %v1694
      %v1719 = vadd.f32 %v1489, %v1697
      %v1720 = vadd.f32 %v1490, %v1702
      %v1721 = vadd.f32 %v1491, %v1705
      %v1722 = vadd.f32 %v1492, %v1710
      %v1723 = vadd.f32 %v1493, %v1713
      %v1724 = vld [vmem:[%s1375] sm:$0xe]
      %v1725 = vld [vmem:[%s1375 + $0x8] sm:$0xe]
      %v1726 = vld [vmem:[%s1375 + $0x10] sm:$0xe]
      %v1727 = vld [vmem:[%s1375 + $0x18] sm:$0xe]
      %v1728 = vld [vmem:[%s1375 + $0x20] sm:$0xe]
      %v1729 = vld [vmem:[%s1375 + $0x28] sm:$0xe]
      %v1730 = vld [vmem:[%s1375 + $0x30] sm:$0xe]
      %v1731 = vld [vmem:[%s1375 + $0x38] sm:$0xe]
      %v1748 = vrot.slane %v1724, 5
      %v1749 = vrot.slane %v1748, 4
      %v1750 = vrot.slane %v1495, 5
      %v1751 = vsel %vm733, %v1749, %v1750
      %v1752 = vrot.slane %v1725, 5
      %v1753 = vrot.slane %v1752, 4
      %v1754 = vrot.slane %v1497, 5
      %v1755 = vsel %vm733, %v1753, %v1754
      %v1756 = vrot.slane %v1726, 5
      %v1757 = vrot.slane %v1756, 4
      %v1758 = vrot.slane %v1499, 5
      %v1759 = vsel %vm733, %v1757, %v1758
      %v1760 = vrot.slane %v1727, 5
      %v1761 = vrot.slane %v1760, 4
      %v1762 = vrot.slane %v1501, 5
      %v1763 = vsel %vm733, %v1761, %v1762
      %v1764 = vrot.slane %v1728, 5
      %v1765 = vrot.slane %v1764, 4
      %v1766 = vrot.slane %v1503, 5
      %v1767 = vsel %vm733, %v1765, %v1766
      %v1768 = vrot.slane %v1729, 5
      %v1769 = vrot.slane %v1768, 4
      %v1770 = vrot.slane %v1505, 5
      %v1771 = vsel %vm733, %v1769, %v1770
      %v1772 = vrot.slane %v1730, 5
      %v1773 = vrot.slane %v1772, 4
      %v1774 = vrot.slane %v1507, 5
      %v1775 = vsel %vm733, %v1773, %v1774
      %v1776 = vrot.slane %v1731, 5
      %v1777 = vrot.slane %v1776, 4
      %v1778 = vrot.slane %v1509, 5
      %v1779 = vsel %vm733, %v1777, %v1778
      %s1780 = scalar_lea.vmem %s283, 32
      %v1781 = vld [vmem:[%s1780] sm:$0xf]
      %v1782 = vunpack.c.l.b16 %v1751
      %v1783 = vunpack.c.l.b16 %v1755
      %v1784 = vunpack.c.l.b16 %v1759
      %v1785 = vunpack.c.l.b16 %v1763
      %v1786 = vunpack.c.l.b16 %v1767
      %v1787 = vunpack.c.l.b16 %v1771
      %v1788 = vunpack.c.l.b16 %v1775
      %v1789 = vunpack.c.l.b16 %v1779
      %v1790 = vpack.c.b16 %v1783, %v1782
      %v1791 = vpack.c.b16 %v1785, %v1784
      %v1792 = vpack.c.b16 %v1787, %v1786
      %v1793 = vpack.c.b16 %v1789, %v1788
      %v1795 = vsel %vm384, %v1790, 0
      %v1798 = vsel %vm384, %v1791, 0
      %v1801 = vsel %vm384, %v1792, 0
      %v1804 = vsel %vm384, %v1793, 0
      %v1807 = vsel %vm397, %v1781, 0
      %1809 = vmatprep.subr.bf16.mxu0 0
      %1810 = vmatpush1.bf16.msra.mxu0 0
      %1811 = vmatprep.subr.bf16.mxu0 0
      %1812 = vmatpush1.bf16.msra.mxu0 0
      %1813 = vmatprep.subr.bf16.mxu0 0
      %1814 = vmatpush1.bf16.msra.mxu0 0
      %1815 = vmatprep.subr.bf16.mxu0 0
      %1816 = vmatpush1.bf16.msra.mxu0 0
      %1817 = vmatprep.subr.bf16.mxu0 0
      %1818 = vmatpush1.bf16.msra.mxu0 0
      %1819 = vmatprep.subr.bf16.mxu0 0
      %1820 = vmatpush1.bf16.msra.mxu0 0
      %1821 = vmatprep.subr.bf16.mxu0 0
      %1822 = vmatpush1.bf16.msra.mxu0 0
      %1823 = vmatprep.subr.bf16.mxu0 0
      %1824 = vmatpush1.bf16.msra.mxu0 %v1807
      %1825 = vmatprep.subr.bf16.mxu0 0
      %1826 = vmatpush2.bf16.msra.mxu0 0
      %1827 = vmatprep.subr.bf16.mxu0 0
      %1828 = vmatpush2.bf16.msra.mxu0 0
      %1829 = vmatprep.subr.bf16.mxu0 0
      %1830 = vmatpush2.bf16.msra.mxu0 0
      %1831 = vmatprep.subr.bf16.mxu0 0
      %1832 = vmatpush2.bf16.msra.mxu0 0
      %1833 = vmatprep.subr.bf16.mxu0 0
      %1834 = vmatpush2.bf16.msra.mxu0 0
      %1835 = vmatprep.subr.bf16.mxu0 0
      %1836 = vmatpush2.bf16.msra.mxu0 0
      %1837 = vmatprep.subr.bf16.mxu0 0
      %1838 = vmatpush2.bf16.msra.mxu0 0
      %1839 = vmatprep.subr.bf16.mxu0 0
      %1840 = vmatpush2.bf16.msra.mxu0 0
      %1841 = vmatprep.mubr.bf16.mxu0 0
      %1842 = vmatmul.mubr.bf16.gmra.mxu0 %v1795
      %v1843 = vpop.f32.mrf.mxu0
      %v1844 = vadd.f32 0.0, %v1843
      %v1845 = vpop.f32.mrf.mxu0
      %v1846 = vpop.f32.mrf.mxu0
      %v1847 = vadd.f32 0.0, %v1846
      %v1848 = vpop.f32.mrf.mxu0
      %1849 = vmatprep.mubr.bf16.mxu0 0
      %1850 = vmatmul.mubr.bf16.gmra.mxu0 %v1798
      %v1851 = vpop.f32.mrf.mxu0
      %v1852 = vadd.f32 0.0, %v1851
      %v1853 = vpop.f32.mrf.mxu0
      %v1854 = vpop.f32.mrf.mxu0
      %v1855 = vadd.f32 0.0, %v1854
      %v1856 = vpop.f32.mrf.mxu0
      %1857 = vmatprep.mubr.bf16.mxu0 0
      %1858 = vmatmul.mubr.bf16.gmra.mxu0 %v1801
      %v1859 = vpop.f32.mrf.mxu0
      %v1860 = vadd.f32 0.0, %v1859
      %v1861 = vpop.f32.mrf.mxu0
      %v1862 = vpop.f32.mrf.mxu0
      %v1863 = vadd.f32 0.0, %v1862
      %v1864 = vpop.f32.mrf.mxu0
      %1865 = vmatprep.mubr.bf16.mxu0 0
      %1866 = vmatmul.mubr.bf16.gmra.mxu0 %v1804
      %v1867 = vpop.f32.mrf.mxu0
      %v1868 = vadd.f32 0.0, %v1867
      %v1869 = vpop.f32.mrf.mxu0
      %v1870 = vpop.f32.mrf.mxu0
      %v1871 = vadd.f32 0.0, %v1870
      %v1872 = vpop.f32.mrf.mxu0
      %1873 = vdwg.mxu0
      %v1874 = vadd.f32 %v1716, %v1844
      %v1875 = vadd.f32 %v1717, %v1847
      %v1876 = vadd.f32 %v1718, %v1852
      %v1877 = vadd.f32 %v1719, %v1855
      %v1878 = vadd.f32 %v1720, %v1860
      %v1879 = vadd.f32 %v1721, %v1863
      %v1880 = vadd.f32 %v1722, %v1868
      %v1881 = vadd.f32 %v1723, %v1871
      %1882 = vst.msk [vmem:[#allocation2] sm:$0xff] %vm384, %v1874
      %1883 = vst.msk [vmem:[#allocation2 + $0x8] sm:$0xff] %vm384, %v1875
      %1884 = vst.msk [vmem:[#allocation2 + $0x10] sm:$0xff] %vm384, %v1876
      %1885 = vst.msk [vmem:[#allocation2 + $0x18] sm:$0xff] %vm384, %v1877
      %1886 = vst.msk [vmem:[#allocation2 + $0x20] sm:$0xff] %vm384, %v1878
      %1887 = vst.msk [vmem:[#allocation2 + $0x28] sm:$0xff] %vm384, %v1879
      %1888 = vst.msk [vmem:[#allocation2 + $0x30] sm:$0xff] %vm384, %v1880
      %1889 = vst.msk [vmem:[#allocation2 + $0x38] sm:$0xff] %vm384, %v1881
      %p1890 = scmp.eq.s32.totalorder %s22, 2
      // Predicated region
      $region41: #{unet_down_blk_forward.3} parent=35 // pred_check
        %p1891 = pneg %p1890
      $region42: #{unet_down_blk_forward.3} parent=35 // pred_check_branch
        %1893 = sbr.rel (%p1891) target = $region44
      $region43: #{unet_down_blk_forward.3} parent=35 // pred_region
        %v1894 = vld [vmem:[#allocation2] sm:$0xff]
        %v1895 = vld [vmem:[#allocation2 + $0x8] sm:$0xff]
        %v1896 = vld [vmem:[#allocation2 + $0x10] sm:$0xff]
        %v1897 = vld [vmem:[#allocation2 + $0x18] sm:$0xff]
        %v1898 = vld [vmem:[#allocation2 + $0x20] sm:$0xff]
        %v1899 = vld [vmem:[#allocation2 + $0x28] sm:$0xff]
        %v1900 = vld [vmem:[#allocation2 + $0x30] sm:$0xff]
        %v1901 = vld [vmem:[#allocation2 + $0x38] sm:$0xff]
        %v1902 = vpack.c.bf16 %v1895, %v1894
        %v1903 = vpack.c.bf16 %v1897, %v1896
        %v1904 = vpack.c.bf16 %v1899, %v1898
        %v1905 = vpack.c.bf16 %v1901, %v1900
        %v1910 = vunpack.c.l.b16 %v1902
        %v1911 = vunpack.c.h.b16 %v1902
        %v1912 = vunpack.c.l.b16 %v1903
        %v1913 = vunpack.c.h.b16 %v1903
        %v1914 = vunpack.c.l.b16 %v1904
        %v1915 = vunpack.c.h.b16 %v1904
        %v1916 = vunpack.c.l.b16 %v1905
        %v1917 = vunpack.c.h.b16 %v1905
        %v1918 = vpack.c.b16 %v1910, %v1910
        %v1919 = vpack.c.b16 %v1911, %v1911
        %v1920 = vpack.c.b16 %v1912, %v1912
        %v1921 = vpack.c.b16 %v1913, %v1913
        %v1922 = vpack.c.b16 %v1914, %v1914
        %v1923 = vpack.c.b16 %v1915, %v1915
        %v1924 = vpack.c.b16 %v1916, %v1916
        %v1925 = vpack.c.b16 %v1917, %v1917
        %vm1934 = vcmask 60416
        %1935 = vst.msk [vmem:[%s299] sm:$0xf] %vm1934, %v1918
        %1936 = vst.msk [vmem:[%s299 + $0x4] sm:$0xf] %vm1934, %v1919
        %1937 = vst.msk [vmem:[%s299 + $0x8] sm:$0xf] %vm1934, %v1920
        %1938 = vst.msk [vmem:[%s299 + $0xc] sm:$0xf] %vm1934, %v1921
        %1939 = vst.msk [vmem:[%s299 + $0x10] sm:$0xf] %vm1934, %v1922
        %1940 = vst.msk [vmem:[%s299 + $0x14] sm:$0xf] %vm1934, %v1923
        %1941 = vst.msk [vmem:[%s299 + $0x18] sm:$0xf] %vm1934, %v1924
        %1942 = vst.msk [vmem:[%s299 + $0x1c] sm:$0xf] %vm1934, %v1925
      $region44: #{unet_down_blk_forward.3} parent=35 // pred_fallthru
        _
      %s1943 = smul.u32 %s20, 4
      %s1944 = sadd.s32 %s1943, %s21
      %p1945 = scmp.lt.s32.totalorder %s1944, 7
      %s1946 = scalar_select %p1945, %s1944, 7
      %s1947 = smul.addr %s1946, 8
      %s1948 = smul.addr %s1947, 4
      %s1949 = scalar_lea.vmem %s4, %s1948
      // Predicated region
      $region45: #{unet_down_blk_forward.3} parent=35 // pred_check
        %p1950 = pneg %p165
      $region46: #{unet_down_blk_forward.3} parent=35 // pred_check_branch
        %1952 = sbr.rel (%p1950) target = $region48
      $region47: #{unet_down_blk_forward.3} parent=35 // pred_region
        %s1953 = smul.u32 %s20, 4
        %s1954 = sadd.s32 %s1953, %s21
      $region48: #{unet_down_blk_forward.3} parent=35 // pred_fallthru
        _
    $region36: #{unet_down_blk_forward.3} parent=5 // pred_fallthru
      _
    %p1955 = scmp.le.s32.totalorder 2, %s10
    // Predicated region
    $region49: #{unet_down_blk_forward.3} parent=5 // pred_check
      %p1956 = pneg %p1955
    $region50: #{unet_down_blk_forward.3} parent=5 // pred_check_branch
      %1958 = sbr.rel (%p1956) target = $region52
    $region51: #{unet_down_blk_forward.3} parent=5 // pred_region
      %s1959 = ssub.s32 %s10, 2
      // Predicated region
      $region53: #{unet_down_blk_forward.3} parent=51 // pred_check
        %p1960 = pneg %p171
      $region54: #{unet_down_blk_forward.3} parent=51 // pred_check_branch
        %1962 = sbr.rel (%p1960) target = $region56
      $region55: #{unet_down_blk_forward.3} parent=51 // pred_region
        %s1963 = smul.u32 %s23, 4
        %s1964 = sadd.s32 %s1963, %s24
        %p1965 = scmp.lt.s32.totalorder %s1964, 7
        %s1966 = scalar_select %p1965, %s1964, 7
        %s1967 = smul.addr %s1966, 8
        %s1968 = smul.addr %s1967, 4
        %s1969 = scalar_lea.vmem %s4, %s1968
      $region56: #{unet_down_blk_forward.3} parent=51 // pred_fallthru
        _
    $region52: #{unet_down_blk_forward.3} parent=5 // pred_fallthru
      _
  $region6: #{unet_down_blk_forward.3} parent=0 // loop_footer
    %s14 = sadd.s32 1, %s10
  $region7: #{unet_down_blk_forward.3} parent=0 // loop_footer_branch
    %9 = sbr.rel target = $region3
  $region8: #{unet_down_blk_forward.3} parent=0 // loop_exit
    _

</llo_original>
